<compile_context>
chip_gen: v7x
topology: tpu7x:2x2x1
jax: 0.10.0
libtpu: 0.0.40
codegen_flags: <defaults>
</compile_context>

<pallas_src>
import functools

import jax
import jax.numpy as jnp
from jax import lax
from jax.experimental import pallas as pl
from jax.experimental.pallas import tpu as pltpu

LANE = 128        # channel dims are zero-padded to a multiple of the TPU lane width
_W_PAD = 8        # sublane-aligned halo margin inside the conv scratch tile
NEG_SLOPE = 0.2
BN_EPS = 1e-5


def _round_up(x, m):
    return (x + m - 1) // m * m


def _leaky(v):
    return jnp.where(v >= 0.0, v, NEG_SLOPE * v)


# --------------------------------------------------------------------------- #
# Per-generation sizing
# --------------------------------------------------------------------------- #
@functools.lru_cache(maxsize=None)
def _vmem_limit_bytes():
    """Scoped-VMEM limit from the device: ~96 MiB on v5e/v6e (128 MiB physical),
    ~48 MiB on v7x (64 MiB physical).  Falls back conservatively if the query fails."""
    phys = 64 * 1024 * 1024
    try:
        phys = int(getattr(pltpu.get_tpu_info(), "vmem_capacity_bytes", phys))
    except Exception:
        pass
    return min(phys * 3 // 4, 100 * 1024 * 1024)


def _conv_tile_bytes(th, w, cin, cp):
    """Rough per-grid-step VMEM footprint of the fused conv kernel."""
    bf, f32 = 2, 4
    io = 2 * th * w * (cin + cp) * bf            # double-buffered x / z blocks
    halo = 4 * w * cin * bf + 8 * cp * f32       # top/bot halo rows + stats blocks
    wgt = 2 * 9 * cin * cp * bf                  # weights (double-buffered)
    xp = (th + 2) * (w + 2 * _W_PAD) * cin * f32 # haloed scratch tile
    live = (th + 2) * w * cin * f32 + 3 * th * w * cp * f32   # window + acc/temporaries
    return io + halo + wgt + xp + live


def _pick_row_tile(n, h, w, cin, cp):
    """Largest row tile fitting the VMEM budget, preferring >= 4 grid steps so both
    v7x TensorCores (and the pipeline prefetch) have work."""
    budget = int(_vmem_limit_bytes() * 0.8)
    cands = [t for t in (256, 128, 64, 32, 16, 8) if t <= h and h % t == 0]
    if not cands:
        cands = [h]
    fits = [t for t in cands if _conv_tile_bytes(t, w, cin, cp) <= budget] or [cands[-1]]
    for t in fits:                                # descending
        if n * (h // t) >= 4:
            return t
    return fits[-1]


def _compiler_params():
    return pltpu.CompilerParams(
        dimension_semantics=("parallel", "parallel"),
        vmem_limit_bytes=_vmem_limit_bytes())


# --------------------------------------------------------------------------- #
# Kernels
# --------------------------------------------------------------------------- #
def _fused_conv_kernel(x_ref, top_ref, bot_ref, w_ref, sc_ref, sh_ref,
                       z_ref, sum_ref, sq_ref, xp_ref, *,
                       th, w_dim, cin, cout, apply_input_bn):
    """One (batch, row-tile) step of a 3x3 'same' conv, fused with
       - the previous stage's folded BatchNorm + LeakyReLU applied to the input tile
         (apply_input_bn=True), and
       - a per-channel sum / sum-of-squares epilogue (partial BN stats of this stage).

    x_ref   : (1, TH, W, Cin)  bf16  centre rows (raw, pre-BN output of previous stage)
    top_ref : (1, 1,  W, Cin)  bf16  row directly above the tile (zeros at image border)
    bot_ref : (1, 1,  W, Cin)  bf16  row directly below the tile (zeros at image border)
    w_ref   : (9, Cin, Cout)   bf16  conv weights, one (Cin, Cout) block per (kh, kw) tap
    sc_ref  : (1, Cin) f32     folded BN scale for the input (unused w/o apply_input_bn)
    sh_ref  : (1, Cin) f32     folded BN shift for the input
    z_ref   : (1, TH, W, Cout) bf16  raw conv output (pre-BN), Cout lane-dense
    sum_ref : (1, 1, 1, Cout)  f32   per-channel partial sum of z over this tile
    sq_ref  : (1, 1, 1, Cout)  f32   per-channel partial sum of z*z over this tile
    xp_ref  : (TH+2, W+2*_W_PAD, Cin) f32 scratch: haloed input tile
    """
    off = _W_PAD

    top = top_ref[0].astype(jnp.float32)          # (1, W, Cin)
    ctr = x_ref[0].astype(jnp.float32)            # (TH, W, Cin)
    bot = bot_ref[0].astype(jnp.float32)          # (1, W, Cin)

    if apply_input_bn:
        sc = sc_ref[...].reshape(1, 1, cin)
        sh = sh_ref[...].reshape(1, 1, cin)
        bn_act = lambda v: _leaky(v * sc + sh)
        j = pl.program_id(1)
        ctr = bn_act(ctr)
        # Border halo rows hold zeros of the *raw* previous-conv output; conv padding
        # must be zero in post-BN/activation space, so mask them back to exactly zero.
        top = bn_act(top) * (j > 0).astype(jnp.float32)
        bot = bn_act(bot) * (j < pl.num_programs(1) - 1).astype(jnp.float32)

    # Assemble the haloed tile.  Only the two boundary columns (off-1 and off+W) are
    # ever read outside the data region, so zero just those.  Done every step: scratch
    # is per-core and persistent, and grid steps may be sharded across TensorCores.
    zcol = jnp.zeros((th + 2, 1, cin), jnp.float32)
    xp_ref[:, off - 1:off, :] = zcol
    xp_ref[:, off + w_dim:off + w_dim + 1, :] = zcol
    xp_ref[0:1, off:off + w_dim, :] = top
    xp_ref[1:1 + th, off:off + w_dim, :] = ctr
    xp_ref[1 + th:2 + th, off:off + w_dim, :] = bot

    # 3x3 conv = 9 accumulated MXU dots with bf16 operands / f32 accumulation.  The
    # three column-shifted windows are loaded once each; kh slices of a loaded window
    # are leading-dim slices (free).
    acc = jnp.zeros((th * w_dim, cout), jnp.float32)
    for kw in range(3):
        win = xp_ref[:, off - 1 + kw:off - 1 + kw + w_dim, :]     # (TH+2, W, Cin) f32
        for kh in range(3):
            patch = win[kh:kh + th].reshape(th * w_dim, cin)
            acc = acc + jnp.dot(patch.astype(jnp.bfloat16),
                                w_ref[kh * 3 + kw],
                                preferred_element_type=jnp.float32)

    z_ref[...] = acc.reshape(1, th, w_dim, cout).astype(jnp.bfloat16)
    # BatchNorm statistics epilogue (partial sums; reduced across the grid in JAX),
    # computed from the f32 accumulator (not the rounded bf16 store).
    sum_ref[...] = jnp.sum(acc, axis=0).reshape(1, 1, 1, cout)
    sq_ref[...] = jnp.sum(acc * acc, axis=0).reshape(1, 1, 1, cout)


def _bn_act_kernel(z_ref, sc_ref, sh_ref, o_ref, *, cout):
    """Folded BatchNorm (per-channel affine) + LeakyReLU(0.2) on one row tile.
    Writes the channel-unpadded output directly."""
    z = z_ref[...][..., :cout].astype(jnp.float32)
    y = z * sc_ref[...].reshape(1, 1, 1, cout) + sh_ref[...].reshape(1, 1, 1, cout)
    o_ref[...] = _leaky(y)
    # TODO(synk): for lane-friendly W, also fuse the NHWC->NCHW transpose here and write
    # the NCHW block directly (saves one more full-tensor HBM round trip).


# --------------------------------------------------------------------------- #
# Wrappers
# --------------------------------------------------------------------------- #
def _row_halos(a, th):
    """Rows directly above/below each row tile (zeros at the image border).
    Costs ~2/TH of one activation pass — replaces a full jnp.pad HBM copy."""
    n, h, w, c = a.shape
    nh = h // th
    zrow = jnp.zeros((n, 1, w, c), a.dtype)
    if nh == 1:
        return zrow, zrow
    top = jnp.concatenate([zrow, a[:, th - 1:h - 1:th]], axis=1)   # (n, nh, w, c)
    bot = jnp.concatenate([a[:, th:h:th], zrow], axis=1)           # (n, nh, w, c)
    return top, bot


def _fused_conv(x, top, bot, w3d, scale, shift, *, th, apply_input_bn):
    """Conv3x3 (stride 1, pad 1) with fused input-BN/act and BN-stats epilogue.  NHWC."""
    n, h, w, cin = x.shape
    cout = w3d.shape[-1]
    nh = h // th

    kernel = functools.partial(
        _fused_conv_kernel, th=th, w_dim=w, cin=cin, cout=cout,
        apply_input_bn=apply_input_bn)

    # TODO(synk): add a Cout grid axis (256-wide blocks on v6e/v7x) for Cout >> 128.
    # TODO(synk): on v5e, if xprof still shows exposed input DMA after these changes,
    #             add pipeline_mode=pl.Buffered(3) to the x / z BlockSpecs.
    return pl.pallas_call(
        kernel,
        out_shape=(jax.ShapeDtypeStruct((n, h, w, cout), jnp.bfloat16),
                   jax.ShapeDtypeStruct((n, nh, 1, cout), jnp.float32),
                   jax.ShapeDtypeStruct((n, nh, 1, cout), jnp.float32)),
        grid=(n, nh),
        in_specs=[
            pl.BlockSpec((1, th, w, cin), lambda i, j: (i, j, 0, 0)),
            pl.BlockSpec((1, 1, w, cin), lambda i, j: (i, j, 0, 0)),
            pl.BlockSpec((1, 1, w, cin), lambda i, j: (i, j, 0, 0)),
            pl.BlockSpec((9, cin, cout), lambda i, j: (0, 0, 0)),
            pl.BlockSpec((1, cin), lambda i, j: (0, 0)),
            pl.BlockSpec((1, cin), lambda i, j: (0, 0)),
        ],
        out_specs=(
            pl.BlockSpec((1, th, w, cout), lambda i, j: (i, j, 0, 0)),
            pl.BlockSpec((1, 1, 1, cout), lambda i, j: (i, j, 0, 0)),
            pl.BlockSpec((1, 1, 1, cout), lambda i, j: (i, j, 0, 0)),
        ),
        scratch_shapes=[pltpu.VMEM((th + 2, w + 2 * _W_PAD, cin), jnp.float32)],
        compiler_params=_compiler_params(),
    )(x, top, bot, w3d, scale, shift)


def _bn_scale_shift(psum, psq, gamma, beta, count):
    """Fold training-mode BN (batch mean, biased var, eps=1e-5) into scale/shift."""
    # TODO(synk): switch to a Welford/two-pass reduction if N*H*W grows large enough
    # for the E[x^2] - mean^2 cancellation to matter.
    mean = jnp.sum(psum, axis=(0, 1, 2)) / count
    var = jnp.sum(psq, axis=(0, 1, 2)) / count - mean * mean
    var = jnp.maximum(var, 0.0)
    scale = gamma / jnp.sqrt(var + BN_EPS)
    shift = beta - scale * mean
    c = scale.shape[0]
    return scale.reshape(1, c), shift.reshape(1, c)


def _bn_act(z, scale, shift, cout, *, th):
    n, h, w, cp = z.shape
    nh = h // th
    return pl.pallas_call(
        functools.partial(_bn_act_kernel, cout=cout),
        out_shape=jax.ShapeDtypeStruct((n, h, w, cout), jnp.float32),
        grid=(n, nh),
        in_specs=[pl.BlockSpec((1, th, w, cp), lambda i, j: (i, j, 0, 0)),
                  pl.BlockSpec((1, cout), lambda i, j: (0, 0)),
                  pl.BlockSpec((1, cout), lambda i, j: (0, 0))],
        out_specs=pl.BlockSpec((1, th, w, cout), lambda i, j: (i, j, 0, 0)),
        compiler_params=_compiler_params(),
    )(z, scale, shift)


@jax.jit
def double_conv_forward(x_nchw, params):
    """DoubleConv forward (Conv3x3 -> BN(train) -> LeakyReLU(0.2), twice).  NCHW in/out."""
    n, cin, h, w = x_nchw.shape
    cout = params["w1"].shape[-1]
    cp = _round_up(cout, LANE)
    assert w % 8 == 0, "kernel assumes W is a multiple of 8"  # TODO(synk): general W
    th = _pick_row_tile(n, h, w, cp, cp)

    # NCHW -> NHWC (channels on the TPU lane dim); activations cross HBM as bf16.
    x = jnp.transpose(x_nchw, (0, 2, 3, 1)).astype(jnp.bfloat16)

    # Weights: HWIO, channels zero-padded to lane-dense multiples of 128, reshaped to
    # (9, Cin, Cout) bf16 so each (kh, kw) tap is one MXU dot.  Parameter-sized (tiny).
    w1 = jnp.pad(params["w1"], ((0, 0), (0, 0), (0, 0), (0, cp - cout)))
    w1 = w1.reshape(9, cin, cp).astype(jnp.bfloat16)
    w2 = jnp.pad(params["w2"], ((0, 0), (0, 0), (0, cp - cout), (0, cp - cout)))
    w2 = w2.reshape(9, cp, cp).astype(jnp.bfloat16)
    g1 = jnp.pad(params["g1"], (0, cp - cout))
    be1 = jnp.pad(params["be1"], (0, cp - cout))
    # NOTE: Conv2d biases (b1/b2) are intentionally unused: training-mode BatchNorm
    # subtracts the batch mean right after the conv, cancelling them exactly.

    ones = jnp.ones((1, cin), jnp.float32)
    zeros = jnp.zeros((1, cin), jnp.float32)
    count = float(n * h * w)

    # --- stage 1: conv1 + BN1 partial stats (fused epilogue) -------------------------
    top, bot = _row_halos(x, th)
    z1, ps1, pq1 = _fused_conv(x, top, bot, w1, ones, zeros, th=th, apply_input_bn=False)
    sc1, sh1 = _bn_scale_shift(ps1, pq1, g1, be1, count)

    # --- stage 2: BN1 + LeakyReLU folded into conv2's input, + BN2 stats -------------
    top1, bot1 = _row_halos(z1, th)
    z2, ps2, pq2 = _fused_conv(z1, top1, bot1, w2, sc1, sh1, th=th, apply_input_bn=True)
    sc2, sh2 = _bn_scale_shift(ps2[..., :cout], pq2[..., :cout],
                               params["g2"], params["be2"], count)

    # --- final BN2 + LeakyReLU (tiled; writes channel-unpadded NHWC) ------------------
    y2 = _bn_act(z2, sc2, sh2, cout, th=th)

    # NHWC -> NCHW at the boundary.
    return jnp.transpose(y2, (0, 3, 1, 2))


def init_params(key, in_ch, out_ch):
    ks = jax.random.split(key, 8)
    # Conv weights in HWIO (3, 3, Cin, Cout); biases kept for parity with nn.Conv2d but
    # mathematically cancelled by the training-mode BatchNorm that follows.
    return dict(
        w1=0.1 * jax.random.normal(ks[0], (3, 3, in_ch, out_ch), jnp.float32),
        b1=0.05 * jax.random.normal(ks[1], (out_ch,), jnp.float32),
        w2=0.1 * jax.random.normal(ks[2], (3, 3, out_ch, out_ch), jnp.float32),
        b2=0.05 * jax.random.normal(ks[3], (out_ch,), jnp.float32),
        g1=1.0 + 0.1 * jax.random.normal(ks[4], (out_ch,), jnp.float32),
        be1=0.1 * jax.random.normal(ks[5], (out_ch,), jnp.float32),
        g2=1.0 + 0.1 * jax.random.normal(ks[6], (out_ch,), jnp.float32),
        be2=0.1 * jax.random.normal(ks[7], (out_ch,), jnp.float32),
    )


def _reference(x_nchw, params):
    """Pure-JAX f32 reference with PyTorch semantics (includes the conv biases)."""
    def conv_bn_act(x, w_hwio, b, gamma, beta):
        w_oihw = jnp.transpose(w_hwio, (3, 2, 0, 1))
        z = lax.conv_general_dilated(
            x, w_oihw, window_strides=(1, 1), padding=((1, 1), (1, 1)),
            dimension_numbers=("NCHW", "OIHW", "NCHW"),
            precision=lax.Precision.HIGHEST) + b.reshape(1, -1, 1, 1)
        mean = jnp.mean(z, axis=(0, 2, 3), keepdims=True)
        var = jnp.mean((z - mean) ** 2, axis=(0, 2, 3), keepdims=True)
        y = (z - mean) / jnp.sqrt(var + BN_EPS) * gamma.reshape(1, -1, 1, 1) \
            + beta.reshape(1, -1, 1, 1)
        return jnp.where(y >= 0.0, y, NEG_SLOPE * y)

    y = conv_bn_act(x_nchw, params["w1"], params["b1"], params["g1"], params["be1"])
    return conv_bn_act(y, params["w2"], params["b2"], params["g2"], params["be2"])


if __name__ == "__main__":
    key = jax.random.PRNGKey(0)
    k_x, k_p = jax.random.split(key)

    N, in_ch, out_ch, H, W = 2, 4, 8, 16, 16
    x = jax.random.normal(k_x, (N, in_ch, H, W), jnp.float32)   # NCHW, like PyTorch
    params = init_params(k_p, in_ch, out_ch)

    out = jax.block_until_ready(double_conv_forward(x, params))
    assert out.shape == (N, out_ch, H, W), out.shape
    assert bool(jnp.all(jnp.isfinite(out)))

    ref = jax.block_until_ready(_reference(x, params))
    err = jnp.abs(out - ref)
    max_err = float(jnp.max(err))
    mean_err = float(jnp.mean(err))
    # bf16 matmuls + bf16 inter-stage activations vs. an f32 HIGHEST-precision reference.
    assert max_err < 1.2e-1 and mean_err < 2.5e-2, (max_err, mean_err)

    print("KERNEL_OK")
</pallas_src>

<mosaic_0001>
module attributes {stable_mosaic.version = 11 : i64} {
  func.func @_fused_conv_kernel(%arg0: i32, %arg1: i32, %arg2: memref<1x8x16x4xbf16, #tpu.memory_space<vmem>>, %arg3: memref<1x1x16x4xbf16, #tpu.memory_space<vmem>>, %arg4: memref<1x1x16x4xbf16, #tpu.memory_space<vmem>>, %arg5: memref<9x4x128xbf16, #tpu.memory_space<vmem>>, %arg6: memref<1x4xf32, #tpu.memory_space<vmem>>, %arg7: memref<1x4xf32, #tpu.memory_space<vmem>>, %arg8: memref<1x8x16x128xbf16, #tpu.memory_space<vmem>>, %arg9: memref<1x1x1x128xf32, #tpu.memory_space<vmem>>, %arg10: memref<1x1x1x128xf32, #tpu.memory_space<vmem>>, %arg11: memref<10x32x4xf32, #tpu.memory_space<vmem>>) attributes {dimension_semantics = [#tpu.dimension_semantics<parallel>, #tpu.dimension_semantics<parallel>], iteration_bounds = array<i64: 2, 2>, scalar_prefetch = 0 : i64, scratch_operands = 1 : i64, tpu.core_type = #tpu.core_type<tc>, window_params = [{transform_indices = @transform_0, window_bounds = array<i64: 1, 8, 16, 4>}, {transform_indices = @transform_1, window_bounds = array<i64: 1, 1, 16, 4>}, {transform_indices = @transform_2, window_bounds = array<i64: 1, 1, 16, 4>}, {pipeline_mode = #tpu.pipeline_mode<synchronous>, transform_indices = @transform_3, window_bounds = array<i64: 9, 4, 128>}, {pipeline_mode = #tpu.pipeline_mode<synchronous>, transform_indices = @transform_4, window_bounds = array<i64: 1, 4>}, {pipeline_mode = #tpu.pipeline_mode<synchronous>, transform_indices = @transform_5, window_bounds = array<i64: 1, 4>}, {transform_indices = @transform_6, window_bounds = array<i64: 1, 8, 16, 128>}, {transform_indices = @transform_7, window_bounds = array<i64: 1, 1, 1, 128>}, {transform_indices = @transform_8, window_bounds = array<i64: 1, 1, 1, 128>}]} {
    %c0 = arith.constant 0 : index
    %c0_0 = arith.constant 0 : index
    %c0_1 = arith.constant 0 : index
    %c0_2 = arith.constant 0 : index
    %0 = vector.load %arg3[%c0, %c0_0, %c0_1, %c0_2] : memref<1x1x16x4xbf16, #tpu.memory_space<vmem>>, vector<1x1x16x4xbf16>
    %1 = vector.shape_cast %0 : vector<1x1x16x4xbf16> to vector<1x16x4xbf16>
    %2 = arith.extf %1 : vector<1x16x4xbf16> to vector<1x16x4xf32>
    %c0_3 = arith.constant 0 : index
    %c0_4 = arith.constant 0 : index
    %c0_5 = arith.constant 0 : index
    %c0_6 = arith.constant 0 : index
    %3 = vector.load %arg2[%c0_3, %c0_4, %c0_5, %c0_6] : memref<1x8x16x4xbf16, #tpu.memory_space<vmem>>, vector<1x8x16x4xbf16>
    %4 = vector.shape_cast %3 : vector<1x8x16x4xbf16> to vector<8x16x4xbf16>
    %5 = arith.extf %4 : vector<8x16x4xbf16> to vector<8x16x4xf32>
    %c0_7 = arith.constant 0 : index
    %c0_8 = arith.constant 0 : index
    %c0_9 = arith.constant 0 : index
    %c0_10 = arith.constant 0 : index
    %6 = vector.load %arg4[%c0_7, %c0_8, %c0_9, %c0_10] : memref<1x1x16x4xbf16, #tpu.memory_space<vmem>>, vector<1x1x16x4xbf16>
    %7 = vector.shape_cast %6 : vector<1x1x16x4xbf16> to vector<1x16x4xbf16>
    %8 = arith.extf %7 : vector<1x16x4xbf16> to vector<1x16x4xf32>
    %cst = arith.constant 0.000000e+00 : f32
    %9 = vector.broadcast %cst : f32 to vector<10x1x4xf32>
    %c0_11 = arith.constant 0 : index
    %c7 = arith.constant 7 : index
    %c0_12 = arith.constant 0 : index
    %10 = vector.load %arg11[%c0_11, %c7, %c0_12] : memref<10x32x4xf32, #tpu.memory_space<vmem>>, vector<10x1x4xf32>
    tpu.vector_store %arg11[%c0_11, %c7, %c0_12], %9 {strides = array<i32>} : memref<10x32x4xf32, #tpu.memory_space<vmem>>, vector<10x1x4xf32>,
    %c0_13 = arith.constant 0 : index
    %c24 = arith.constant 24 : index
    %c0_14 = arith.constant 0 : index
    %11 = vector.load %arg11[%c0_13, %c24, %c0_14] : memref<10x32x4xf32, #tpu.memory_space<vmem>>, vector<10x1x4xf32>
    tpu.vector_store %arg11[%c0_13, %c24, %c0_14], %9 {strides = array<i32>} : memref<10x32x4xf32, #tpu.memory_space<vmem>>, vector<10x1x4xf32>,
    %c0_15 = arith.constant 0 : index
    %c8 = arith.constant 8 : index
    %c0_16 = arith.constant 0 : index
    %12 = vector.load %arg11[%c0_15, %c8, %c0_16] : memref<10x32x4xf32, #tpu.memory_space<vmem>>, vector<1x16x4xf32>
    tpu.vector_store %arg11[%c0_15, %c8, %c0_16], %2 {strides = array<i32>} : memref<10x32x4xf32, #tpu.memory_space<vmem>>, vector<1x16x4xf32>,
    %c1 = arith.constant 1 : index
    %c8_17 = arith.constant 8 : index
    %c0_18 = arith.constant 0 : index
    %13 = vector.load %arg11[%c1, %c8_17, %c0_18] : memref<10x32x4xf32, #tpu.memory_space<vmem>>, vector<8x16x4xf32>
    tpu.vector_store %arg11[%c1, %c8_17, %c0_18], %5 {strides = array<i32>} : memref<10x32x4xf32, #tpu.memory_space<vmem>>, vector<8x16x4xf32>,
    %c9 = arith.constant 9 : index
    %c8_19 = arith.constant 8 : index
    %c0_20 = arith.constant 0 : index
    %14 = vector.load %arg11[%c9, %c8_19, %c0_20] : memref<10x32x4xf32, #tpu.memory_space<vmem>>, vector<1x16x4xf32>
    tpu.vector_store %arg11[%c9, %c8_19, %c0_20], %8 {strides = array<i32>} : memref<10x32x4xf32, #tpu.memory_space<vmem>>, vector<1x16x4xf32>,
    %cst_21 = arith.constant 0.000000e+00 : f32
    %15 = vector.broadcast %cst_21 : f32 to vector<128x128xf32>
    %c0_22 = arith.constant 0 : index
    %c7_23 = arith.constant 7 : index
    %c0_24 = arith.constant 0 : index
    %16 = vector.load %arg11[%c0_22, %c7_23, %c0_24] : memref<10x32x4xf32, #tpu.memory_space<vmem>>, vector<10x16x4xf32>
    %17 = vector.extract_strided_slice %16 {offsets = [0, 0, 0], sizes = [8, 16, 4], strides = [1, 1, 1]} : vector<10x16x4xf32> to vector<8x16x4xf32>
    %18 = vector.shape_cast %17 : vector<8x16x4xf32> to vector<128x4xf32>
    %19 = arith.truncf %18 : vector<128x4xf32> to vector<128x4xbf16>
    %c0_25 = arith.constant 0 : index
    %c0_26 = arith.constant 0 : index
    %c0_27 = arith.constant 0 : index
    %20 = vector.load %arg5[%c0_25, %c0_26, %c0_27] : memref<9x4x128xbf16, #tpu.memory_space<vmem>>, vector<1x4x128xbf16>
    %21 = vector.shape_cast %20 : vector<1x4x128xbf16> to vector<4x128xbf16>
    %cst_28 = arith.constant dense<0.000000e+00> : vector<128x128xf32>
    %22 = tpu.matmul %19, %21, %cst_28 {dimension_numbers = #tpu.dot_dimension_numbers<[1], [0], [0], [1], [0, 0, 1, 1], [], []>} : vector<128x4xbf16>, vector<4x128xbf16>, vector<128x128xf32> -> vector<128x128xf32>
    %23 = arith.addf %15, %22 : vector<128x128xf32>
    %24 = vector.extract_strided_slice %16 {offsets = [1, 0, 0], sizes = [8, 16, 4], strides = [1, 1, 1]} : vector<10x16x4xf32> to vector<8x16x4xf32>
    %25 = vector.shape_cast %24 : vector<8x16x4xf32> to vector<128x4xf32>
    %26 = arith.truncf %25 : vector<128x4xf32> to vector<128x4xbf16>
    %c3 = arith.constant 3 : index
    %c0_29 = arith.constant 0 : index
    %c0_30 = arith.constant 0 : index
    %27 = vector.load %arg5[%c3, %c0_29, %c0_30] : memref<9x4x128xbf16, #tpu.memory_space<vmem>>, vector<1x4x128xbf16>
    %28 = vector.shape_cast %27 : vector<1x4x128xbf16> to vector<4x128xbf16>
    %cst_31 = arith.constant dense<0.000000e+00> : vector<128x128xf32>
    %29 = tpu.matmul %26, %28, %cst_31 {dimension_numbers = #tpu.dot_dimension_numbers<[1], [0], [0], [1], [0, 0, 1, 1], [], []>} : vector<128x4xbf16>, vector<4x128xbf16>, vector<128x128xf32> -> vector<128x128xf32>
    %30 = arith.addf %23, %29 : vector<128x128xf32>
    %31 = vector.extract_strided_slice %16 {offsets = [2, 0, 0], sizes = [8, 16, 4], strides = [1, 1, 1]} : vector<10x16x4xf32> to vector<8x16x4xf32>
    %32 = vector.shape_cast %31 : vector<8x16x4xf32> to vector<128x4xf32>
    %33 = arith.truncf %32 : vector<128x4xf32> to vector<128x4xbf16>
    %c6 = arith.constant 6 : index
    %c0_32 = arith.constant 0 : index
    %c0_33 = arith.constant 0 : index
    %34 = vector.load %arg5[%c6, %c0_32, %c0_33] : memref<9x4x128xbf16, #tpu.memory_space<vmem>>, vector<1x4x128xbf16>
    %35 = vector.shape_cast %34 : vector<1x4x128xbf16> to vector<4x128xbf16>
    %cst_34 = arith.constant dense<0.000000e+00> : vector<128x128xf32>
    %36 = tpu.matmul %33, %35, %cst_34 {dimension_numbers = #tpu.dot_dimension_numbers<[1], [0], [0], [1], [0, 0, 1, 1], [], []>} : vector<128x4xbf16>, vector<4x128xbf16>, vector<128x128xf32> -> vector<128x128xf32>
    %37 = arith.addf %30, %36 : vector<128x128xf32>
    %c0_35 = arith.constant 0 : index
    %c8_36 = arith.constant 8 : index
    %c0_37 = arith.constant 0 : index
    %38 = vector.load %arg11[%c0_35, %c8_36, %c0_37] : memref<10x32x4xf32, #tpu.memory_space<vmem>>, vector<10x16x4xf32>
    %39 = vector.extract_strided_slice %38 {offsets = [0, 0, 0], sizes = [8, 16, 4], strides = [1, 1, 1]} : vector<10x16x4xf32> to vector<8x16x4xf32>
    %40 = vector.shape_cast %39 : vector<8x16x4xf32> to vector<128x4xf32>
    %41 = arith.truncf %40 : vector<128x4xf32> to vector<128x4xbf16>
    %c1_38 = arith.constant 1 : index
    %c0_39 = arith.constant 0 : index
    %c0_40 = arith.constant 0 : index
    %42 = vector.load %arg5[%c1_38, %c0_39, %c0_40] : memref<9x4x128xbf16, #tpu.memory_space<vmem>>, vector<1x4x128xbf16>
    %43 = vector.shape_cast %42 : vector<1x4x128xbf16> to vector<4x128xbf16>
    %cst_41 = arith.constant dense<0.000000e+00> : vector<128x128xf32>
    %44 = tpu.matmul %41, %43, %cst_41 {dimension_numbers = #tpu.dot_dimension_numbers<[1], [0], [0], [1], [0, 0, 1, 1], [], []>} : vector<128x4xbf16>, vector<4x128xbf16>, vector<128x128xf32> -> vector<128x128xf32>
    %45 = arith.addf %37, %44 : vector<128x128xf32>
    %46 = vector.extract_strided_slice %38 {offsets = [1, 0, 0], sizes = [8, 16, 4], strides = [1, 1, 1]} : vector<10x16x4xf32> to vector<8x16x4xf32>
    %47 = vector.shape_cast %46 : vector<8x16x4xf32> to vector<128x4xf32>
    %48 = arith.truncf %47 : vector<128x4xf32> to vector<128x4xbf16>
    %c4 = arith.constant 4 : index
    %c0_42 = arith.constant 0 : index
    %c0_43 = arith.constant 0 : index
    %49 = vector.load %arg5[%c4, %c0_42, %c0_43] : memref<9x4x128xbf16, #tpu.memory_space<vmem>>, vector<1x4x128xbf16>
    %50 = vector.shape_cast %49 : vector<1x4x128xbf16> to vector<4x128xbf16>
    %cst_44 = arith.constant dense<0.000000e+00> : vector<128x128xf32>
    %51 = tpu.matmul %48, %50, %cst_44 {dimension_numbers = #tpu.dot_dimension_numbers<[1], [0], [0], [1], [0, 0, 1, 1], [], []>} : vector<128x4xbf16>, vector<4x128xbf16>, vector<128x128xf32> -> vector<128x128xf32>
    %52 = arith.addf %45, %51 : vector<128x128xf32>
    %53 = vector.extract_strided_slice %38 {offsets = [2, 0, 0], sizes = [8, 16, 4], strides = [1, 1, 1]} : vector<10x16x4xf32> to vector<8x16x4xf32>
    %54 = vector.shape_cast %53 : vector<8x16x4xf32> to vector<128x4xf32>
    %55 = arith.truncf %54 : vector<128x4xf32> to vector<128x4xbf16>
    %c7_45 = arith.constant 7 : index
    %c0_46 = arith.constant 0 : index
    %c0_47 = arith.constant 0 : index
    %56 = vector.load %arg5[%c7_45, %c0_46, %c0_47] : memref<9x4x128xbf16, #tpu.memory_space<vmem>>, vector<1x4x128xbf16>
    %57 = vector.shape_cast %56 : vector<1x4x128xbf16> to vector<4x128xbf16>
    %cst_48 = arith.constant dense<0.000000e+00> : vector<128x128xf32>
    %58 = tpu.matmul %55, %57, %cst_48 {dimension_numbers = #tpu.dot_dimension_numbers<[1], [0], [0], [1], [0, 0, 1, 1], [], []>} : vector<128x4xbf16>, vector<4x128xbf16>, vector<128x128xf32> -> vector<128x128xf32>
    %59 = arith.addf %52, %58 : vector<128x128xf32>
    %c0_49 = arith.constant 0 : index
    %c9_50 = arith.constant 9 : index
    %c0_51 = arith.constant 0 : index
    %60 = vector.load %arg11[%c0_49, %c9_50, %c0_51] : memref<10x32x4xf32, #tpu.memory_space<vmem>>, vector<10x16x4xf32>
    %61 = vector.extract_strided_slice %60 {offsets = [0, 0, 0], sizes = [8, 16, 4], strides = [1, 1, 1]} : vector<10x16x4xf32> to vector<8x16x4xf32>
    %62 = vector.shape_cast %61 : vector<8x16x4xf32> to vector<128x4xf32>
    %63 = arith.truncf %62 : vector<128x4xf32> to vector<128x4xbf16>
    %c2 = arith.constant 2 : index
    %c0_52 = arith.constant 0 : index
    %c0_53 = arith.constant 0 : index
    %64 = vector.load %arg5[%c2, %c0_52, %c0_53] : memref<9x4x128xbf16, #tpu.memory_space<vmem>>, vector<1x4x128xbf16>
    %65 = vector.shape_cast %64 : vector<1x4x128xbf16> to vector<4x128xbf16>
    %cst_54 = arith.constant dense<0.000000e+00> : vector<128x128xf32>
    %66 = tpu.matmul %63, %65, %cst_54 {dimension_numbers = #tpu.dot_dimension_numbers<[1], [0], [0], [1], [0, 0, 1, 1], [], []>} : vector<128x4xbf16>, vector<4x128xbf16>, vector<128x128xf32> -> vector<128x128xf32>
    %67 = arith.addf %59, %66 : vector<128x128xf32>
    %68 = vector.extract_strided_slice %60 {offsets = [1, 0, 0], sizes = [8, 16, 4], strides = [1, 1, 1]} : vector<10x16x4xf32> to vector<8x16x4xf32>
    %69 = vector.shape_cast %68 : vector<8x16x4xf32> to vector<128x4xf32>
    %70 = arith.truncf %69 : vector<128x4xf32> to vector<128x4xbf16>
    %c5 = arith.constant 5 : index
    %c0_55 = arith.constant 0 : index
    %c0_56 = arith.constant 0 : index
    %71 = vector.load %arg5[%c5, %c0_55, %c0_56] : memref<9x4x128xbf16, #tpu.memory_space<vmem>>, vector<1x4x128xbf16>
    %72 = vector.shape_cast %71 : vector<1x4x128xbf16> to vector<4x128xbf16>
    %cst_57 = arith.constant dense<0.000000e+00> : vector<128x128xf32>
    %73 = tpu.matmul %70, %72, %cst_57 {dimension_numbers = #tpu.dot_dimension_numbers<[1], [0], [0], [1], [0, 0, 1, 1], [], []>} : vector<128x4xbf16>, vector<4x128xbf16>, vector<128x128xf32> -> vector<128x128xf32>
    %74 = arith.addf %67, %73 : vector<128x128xf32>
    %75 = vector.extract_strided_slice %60 {offsets = [2, 0, 0], sizes = [8, 16, 4], strides = [1, 1, 1]} : vector<10x16x4xf32> to vector<8x16x4xf32>
    %76 = vector.shape_cast %75 : vector<8x16x4xf32> to vector<128x4xf32>
    %77 = arith.truncf %76 : vector<128x4xf32> to vector<128x4xbf16>
    %c8_58 = arith.constant 8 : index
    %c0_59 = arith.constant 0 : index
    %c0_60 = arith.constant 0 : index
    %78 = vector.load %arg5[%c8_58, %c0_59, %c0_60] : memref<9x4x128xbf16, #tpu.memory_space<vmem>>, vector<1x4x128xbf16>
    %79 = vector.shape_cast %78 : vector<1x4x128xbf16> to vector<4x128xbf16>
    %cst_61 = arith.constant dense<0.000000e+00> : vector<128x128xf32>
    %80 = tpu.matmul %77, %79, %cst_61 {dimension_numbers = #tpu.dot_dimension_numbers<[1], [0], [0], [1], [0, 0, 1, 1], [], []>} : vector<128x4xbf16>, vector<4x128xbf16>, vector<128x128xf32> -> vector<128x128xf32>
    %81 = arith.addf %74, %80 : vector<128x128xf32>
    %82 = vector.shape_cast %81 : vector<128x128xf32> to vector<1x8x16x128xf32>
    %83 = arith.truncf %82 : vector<1x8x16x128xf32> to vector<1x8x16x128xbf16>
    %c0_62 = arith.constant 0 : index
    %c0_63 = arith.constant 0 : index
    %c0_64 = arith.constant 0 : index
    %c0_65 = arith.constant 0 : index
    %84 = vector.load %arg8[%c0_62, %c0_63, %c0_64, %c0_65] : memref<1x8x16x128xbf16, #tpu.memory_space<vmem>>, vector<1x8x16x128xbf16>
    tpu.vector_store %arg8[%c0_62, %c0_63, %c0_64, %c0_65], %83 {strides = array<i32>} : memref<1x8x16x128xbf16, #tpu.memory_space<vmem>>, vector<1x8x16x128xbf16>,
    %cst_66 = arith.constant dense<0.000000e+00> : vector<128xf32>
    %85 = vector.multi_reduction <add>, %81, %cst_66 [0] : vector<128x128xf32> to vector<128xf32>
    %86 = vector.shape_cast %85 : vector<128xf32> to vector<1x1x1x128xf32>
    %c0_67 = arith.constant 0 : index
    %c0_68 = arith.constant 0 : index
    %c0_69 = arith.constant 0 : index
    %c0_70 = arith.constant 0 : index
    %87 = vector.load %arg9[%c0_67, %c0_68, %c0_69, %c0_70] : memref<1x1x1x128xf32, #tpu.memory_space<vmem>>, vector<1x1x1x128xf32>
    tpu.vector_store %arg9[%c0_67, %c0_68, %c0_69, %c0_70], %86 {strides = array<i32>} : memref<1x1x1x128xf32, #tpu.memory_space<vmem>>, vector<1x1x1x128xf32>,
    %88 = arith.mulf %81, %81 : vector<128x128xf32>
    %cst_71 = arith.constant dense<0.000000e+00> : vector<128xf32>
    %89 = vector.multi_reduction <add>, %88, %cst_71 [0] : vector<128x128xf32> to vector<128xf32>
    %90 = vector.shape_cast %89 : vector<128xf32> to vector<1x1x1x128xf32>
    %c0_72 = arith.constant 0 : index
    %c0_73 = arith.constant 0 : index
    %c0_74 = arith.constant 0 : index
    %c0_75 = arith.constant 0 : index
    %91 = vector.load %arg10[%c0_72, %c0_73, %c0_74, %c0_75] : memref<1x1x1x128xf32, #tpu.memory_space<vmem>>, vector<1x1x1x128xf32>
    tpu.vector_store %arg10[%c0_72, %c0_73, %c0_74, %c0_75], %90 {strides = array<i32>} : memref<1x1x1x128xf32, #tpu.memory_space<vmem>>, vector<1x1x1x128xf32>,
    return
  }
  func.func @transform_0(%arg0: i32, %arg1: i32) -> (i32, i32, i32, i32) {
    %c0_i32 = arith.constant 0 : i32
    %c0_i32_0 = arith.constant 0 : i32
    %c0_i32_1 = arith.constant 0 : i32
    return %arg0, %arg1, %c0_i32, %c0_i32_0 : i32, i32, i32, i32
  }
  func.func @transform_1(%arg0: i32, %arg1: i32) -> (i32, i32, i32, i32) {
    %c0_i32 = arith.constant 0 : i32
    %c0_i32_0 = arith.constant 0 : i32
    %c0_i32_1 = arith.constant 0 : i32
    return %arg0, %arg1, %c0_i32, %c0_i32_0 : i32, i32, i32, i32
  }
  func.func @transform_2(%arg0: i32, %arg1: i32) -> (i32, i32, i32, i32) {
    %c0_i32 = arith.constant 0 : i32
    %c0_i32_0 = arith.constant 0 : i32
    %c0_i32_1 = arith.constant 0 : i32
    return %arg0, %arg1, %c0_i32, %c0_i32_0 : i32, i32, i32, i32
  }
  func.func @transform_3(%arg0: i32, %arg1: i32) -> (i32, i32, i32) {
    %c0_i32 = arith.constant 0 : i32
    %c0_i32_0 = arith.constant 0 : i32
    %c0_i32_1 = arith.constant 0 : i32
    %c0_i32_2 = arith.constant 0 : i32
    return %c0_i32, %c0_i32_0, %c0_i32_1 : i32, i32, i32
  }
  func.func @transform_4(%arg0: i32, %arg1: i32) -> (i32, i32) {
    %c0_i32 = arith.constant 0 : i32
    %c0_i32_0 = arith.constant 0 : i32
    %c0_i32_1 = arith.constant 0 : i32
    return %c0_i32, %c0_i32_0 : i32, i32
  }
  func.func @transform_5(%arg0: i32, %arg1: i32) -> (i32, i32) {
    %c0_i32 = arith.constant 0 : i32
    %c0_i32_0 = arith.constant 0 : i32
    %c0_i32_1 = arith.constant 0 : i32
    return %c0_i32, %c0_i32_0 : i32, i32
  }
  func.func @transform_6(%arg0: i32, %arg1: i32) -> (i32, i32, i32, i32) {
    %c0_i32 = arith.constant 0 : i32
    %c0_i32_0 = arith.constant 0 : i32
    %c0_i32_1 = arith.constant 0 : i32
    return %arg0, %arg1, %c0_i32, %c0_i32_0 : i32, i32, i32, i32
  }
  func.func @transform_7(%arg0: i32, %arg1: i32) -> (i32, i32, i32, i32) {
    %c0_i32 = arith.constant 0 : i32
    %c0_i32_0 = arith.constant 0 : i32
    %c0_i32_1 = arith.constant 0 : i32
    return %arg0, %arg1, %c0_i32, %c0_i32_0 : i32, i32, i32, i32
  }
  func.func @transform_8(%arg0: i32, %arg1: i32) -> (i32, i32, i32, i32) {
    %c0_i32 = arith.constant 0 : i32
    %c0_i32_0 = arith.constant 0 : i32
    %c0_i32_1 = arith.constant 0 : i32
    return %arg0, %arg1, %c0_i32, %c0_i32_0 : i32, i32, i32, i32
  }
}

module attributes {stable_mosaic.version = 11 : i64} {
  func.func @_fused_conv_kernel(%arg0: i32, %arg1: i32, %arg2: memref<1x8x16x128xbf16, #tpu.memory_space<vmem>>, %arg3: memref<1x1x16x128xbf16, #tpu.memory_space<vmem>>, %arg4: memref<1x1x16x128xbf16, #tpu.memory_space<vmem>>, %arg5: memref<9x128x128xbf16, #tpu.memory_space<vmem>>, %arg6: memref<1x128xf32, #tpu.memory_space<vmem>>, %arg7: memref<1x128xf32, #tpu.memory_space<vmem>>, %arg8: memref<1x8x16x128xbf16, #tpu.memory_space<vmem>>, %arg9: memref<1x1x1x128xf32, #tpu.memory_space<vmem>>, %arg10: memref<1x1x1x128xf32, #tpu.memory_space<vmem>>, %arg11: memref<10x32x128xf32, #tpu.memory_space<vmem>>) attributes {dimension_semantics = [#tpu.dimension_semantics<parallel>, #tpu.dimension_semantics<parallel>], iteration_bounds = array<i64: 2, 2>, scalar_prefetch = 0 : i64, scratch_operands = 1 : i64, tpu.core_type = #tpu.core_type<tc>, window_params = [{transform_indices = @transform_0, window_bounds = array<i64: 1, 8, 16, 128>}, {transform_indices = @transform_1, window_bounds = array<i64: 1, 1, 16, 128>}, {transform_indices = @transform_2, window_bounds = array<i64: 1, 1, 16, 128>}, {pipeline_mode = #tpu.pipeline_mode<synchronous>, transform_indices = @transform_3, window_bounds = array<i64: 9, 128, 128>}, {pipeline_mode = #tpu.pipeline_mode<synchronous>, transform_indices = @transform_4, window_bounds = array<i64: 1, 128>}, {pipeline_mode = #tpu.pipeline_mode<synchronous>, transform_indices = @transform_5, window_bounds = array<i64: 1, 128>}, {transform_indices = @transform_6, window_bounds = array<i64: 1, 8, 16, 128>}, {transform_indices = @transform_7, window_bounds = array<i64: 1, 1, 1, 128>}, {transform_indices = @transform_8, window_bounds = array<i64: 1, 1, 1, 128>}]} {
    %c0 = arith.constant 0 : index
    %c0_0 = arith.constant 0 : index
    %c0_1 = arith.constant 0 : index
    %c0_2 = arith.constant 0 : index
    %0 = vector.load %arg3[%c0, %c0_0, %c0_1, %c0_2] : memref<1x1x16x128xbf16, #tpu.memory_space<vmem>>, vector<1x1x16x128xbf16>
    %1 = vector.shape_cast %0 : vector<1x1x16x128xbf16> to vector<1x16x128xbf16>
    %2 = arith.extf %1 : vector<1x16x128xbf16> to vector<1x16x128xf32>
    %c0_3 = arith.constant 0 : index
    %c0_4 = arith.constant 0 : index
    %c0_5 = arith.constant 0 : index
    %c0_6 = arith.constant 0 : index
    %3 = vector.load %arg2[%c0_3, %c0_4, %c0_5, %c0_6] : memref<1x8x16x128xbf16, #tpu.memory_space<vmem>>, vector<1x8x16x128xbf16>
    %4 = vector.shape_cast %3 : vector<1x8x16x128xbf16> to vector<8x16x128xbf16>
    %5 = arith.extf %4 : vector<8x16x128xbf16> to vector<8x16x128xf32>
    %c0_7 = arith.constant 0 : index
    %c0_8 = arith.constant 0 : index
    %c0_9 = arith.constant 0 : index
    %c0_10 = arith.constant 0 : index
    %6 = vector.load %arg4[%c0_7, %c0_8, %c0_9, %c0_10] : memref<1x1x16x128xbf16, #tpu.memory_space<vmem>>, vector<1x1x16x128xbf16>
    %7 = vector.shape_cast %6 : vector<1x1x16x128xbf16> to vector<1x16x128xbf16>
    %8 = arith.extf %7 : vector<1x16x128xbf16> to vector<1x16x128xf32>
    %c0_11 = arith.constant 0 : index
    %c0_12 = arith.constant 0 : index
    %9 = vector.load %arg6[%c0_11, %c0_12] : memref<1x128xf32, #tpu.memory_space<vmem>>, vector<1x128xf32>
    %10 = vector.shape_cast %9 : vector<1x128xf32> to vector<1x1x128xf32>
    %c0_13 = arith.constant 0 : index
    %c0_14 = arith.constant 0 : index
    %11 = vector.load %arg7[%c0_13, %c0_14] : memref<1x128xf32, #tpu.memory_space<vmem>>, vector<1x128xf32>
    %12 = vector.shape_cast %11 : vector<1x128xf32> to vector<1x1x128xf32>
    %13 = vector.broadcast %10 : vector<1x1x128xf32> to vector<8x16x128xf32>
    %14 = arith.mulf %5, %13 : vector<8x16x128xf32>
    %15 = vector.broadcast %12 : vector<1x1x128xf32> to vector<8x16x128xf32>
    %16 = arith.addf %14, %15 : vector<8x16x128xf32>
    %cst = arith.constant 0.000000e+00 : f32
    %17 = vector.broadcast %cst : f32 to vector<8x16x128xf32>
    %18 = arith.cmpf oge, %16, %17 : vector<8x16x128xf32>
    %cst_15 = arith.constant 2.000000e-01 : f32
    %19 = vector.broadcast %cst_15 : f32 to vector<8x16x128xf32>
    %20 = arith.mulf %19, %16 : vector<8x16x128xf32>
    %21 = arith.select %18, %16, %20 : vector<8x16x128xi1>, vector<8x16x128xf32>
    %22 = vector.broadcast %10 : vector<1x1x128xf32> to vector<1x16x128xf32>
    %23 = arith.mulf %2, %22 : vector<1x16x128xf32>
    %24 = vector.broadcast %12 : vector<1x1x128xf32> to vector<1x16x128xf32>
    %25 = arith.addf %23, %24 : vector<1x16x128xf32>
    %cst_16 = arith.constant 0.000000e+00 : f32
    %26 = vector.broadcast %cst_16 : f32 to vector<1x16x128xf32>
    %27 = arith.cmpf oge, %25, %26 : vector<1x16x128xf32>
    %cst_17 = arith.constant 2.000000e-01 : f32
    %28 = vector.broadcast %cst_17 : f32 to vector<1x16x128xf32>
    %29 = arith.mulf %28, %25 : vector<1x16x128xf32>
    %30 = arith.select %27, %25, %29 : vector<1x16x128xi1>, vector<1x16x128xf32>
    %c0_i32 = arith.constant 0 : i32
    %31 = arith.cmpi sgt, %arg1, %c0_i32 : i32
    %32 = arith.extui %31 : i1 to i32
    %33 = arith.sitofp %32 : i32 to f32
    %34 = vector.broadcast %33 : f32 to vector<1x16x128xf32>
    %35 = arith.mulf %30, %34 : vector<1x16x128xf32>
    %36 = vector.broadcast %10 : vector<1x1x128xf32> to vector<1x16x128xf32>
    %37 = arith.mulf %8, %36 : vector<1x16x128xf32>
    %38 = vector.broadcast %12 : vector<1x1x128xf32> to vector<1x16x128xf32>
    %39 = arith.addf %37, %38 : vector<1x16x128xf32>
    %cst_18 = arith.constant 0.000000e+00 : f32
    %40 = vector.broadcast %cst_18 : f32 to vector<1x16x128xf32>
    %41 = arith.cmpf oge, %39, %40 : vector<1x16x128xf32>
    %cst_19 = arith.constant 2.000000e-01 : f32
    %42 = vector.broadcast %cst_19 : f32 to vector<1x16x128xf32>
    %43 = arith.mulf %42, %39 : vector<1x16x128xf32>
    %44 = arith.select %41, %39, %43 : vector<1x16x128xi1>, vector<1x16x128xf32>
    %c1_i32 = arith.constant 1 : i32
    %45 = arith.cmpi slt, %arg1, %c1_i32 : i32
    %46 = arith.extui %45 : i1 to i32
    %47 = arith.sitofp %46 : i32 to f32
    %48 = vector.broadcast %47 : f32 to vector<1x16x128xf32>
    %49 = arith.mulf %44, %48 : vector<1x16x128xf32>
    %cst_20 = arith.constant 0.000000e+00 : f32
    %50 = vector.broadcast %cst_20 : f32 to vector<10x1x128xf32>
    %c0_21 = arith.constant 0 : index
    %c7 = arith.constant 7 : index
    %c0_22 = arith.constant 0 : index
    %51 = vector.load %arg11[%c0_21, %c7, %c0_22] : memref<10x32x128xf32, #tpu.memory_space<vmem>>, vector<10x1x128xf32>
    tpu.vector_store %arg11[%c0_21, %c7, %c0_22], %50 {strides = array<i32>} : memref<10x32x128xf32, #tpu.memory_space<vmem>>, vector<10x1x128xf32>,
    %c0_23 = arith.constant 0 : index
    %c24 = arith.constant 24 : index
    %c0_24 = arith.constant 0 : index
    %52 = vector.load %arg11[%c0_23, %c24, %c0_24] : memref<10x32x128xf32, #tpu.memory_space<vmem>>, vector<10x1x128xf32>
    tpu.vector_store %arg11[%c0_23, %c24, %c0_24], %50 {strides = array<i32>} : memref<10x32x128xf32, #tpu.memory_space<vmem>>, vector<10x1x128xf32>,
    %c0_25 = arith.constant 0 : index
    %c8 = arith.constant 8 : index
    %c0_26 = arith.constant 0 : index
    %53 = vector.load %arg11[%c0_25, %c8, %c0_26] : memref<10x32x128xf32, #tpu.memory_space<vmem>>, vector<1x16x128xf32>
    tpu.vector_store %arg11[%c0_25, %c8, %c0_26], %35 {strides = array<i32>} : memref<10x32x128xf32, #tpu.memory_space<vmem>>, vector<1x16x128xf32>,
    %c1 = arith.constant 1 : index
    %c8_27 = arith.constant 8 : index
    %c0_28 = arith.constant 0 : index
    %54 = vector.load %arg11[%c1, %c8_27, %c0_28] : memref<10x32x128xf32, #tpu.memory_space<vmem>>, vector<8x16x128xf32>
    tpu.vector_store %arg11[%c1, %c8_27, %c0_28], %21 {strides = array<i32>} : memref<10x32x128xf32, #tpu.memory_space<vmem>>, vector<8x16x128xf32>,
    %c9 = arith.constant 9 : index
    %c8_29 = arith.constant 8 : index
    %c0_30 = arith.constant 0 : index
    %55 = vector.load %arg11[%c9, %c8_29, %c0_30] : memref<10x32x128xf32, #tpu.memory_space<vmem>>, vector<1x16x128xf32>
    tpu.vector_store %arg11[%c9, %c8_29, %c0_30], %49 {strides = array<i32>} : memref<10x32x128xf32, #tpu.memory_space<vmem>>, vector<1x16x128xf32>,
    %cst_31 = arith.constant 0.000000e+00 : f32
    %56 = vector.broadcast %cst_31 : f32 to vector<128x128xf32>
    %c0_32 = arith.constant 0 : index
    %c7_33 = arith.constant 7 : index
    %c0_34 = arith.constant 0 : index
    %57 = vector.load %arg11[%c0_32, %c7_33, %c0_34] : memref<10x32x128xf32, #tpu.memory_space<vmem>>, vector<10x16x128xf32>
    %58 = vector.extract_strided_slice %57 {offsets = [0, 0, 0], sizes = [8, 16, 128], strides = [1, 1, 1]} : vector<10x16x128xf32> to vector<8x16x128xf32>
    %59 = vector.shape_cast %58 : vector<8x16x128xf32> to vector<128x128xf32>
    %60 = arith.truncf %59 : vector<128x128xf32> to vector<128x128xbf16>
    %c0_35 = arith.constant 0 : index
    %c0_36 = arith.constant 0 : index
    %c0_37 = arith.constant 0 : index
    %61 = vector.load %arg5[%c0_35, %c0_36, %c0_37] : memref<9x128x128xbf16, #tpu.memory_space<vmem>>, vector<1x128x128xbf16>
    %62 = vector.shape_cast %61 : vector<1x128x128xbf16> to vector<128x128xbf16>
    %cst_38 = arith.constant dense<0.000000e+00> : vector<128x128xf32>
    %63 = tpu.matmul %60, %62, %cst_38 {dimension_numbers = #tpu.dot_dimension_numbers<[1], [0], [0], [1], [0, 0, 1, 1], [], []>} : vector<128x128xbf16>, vector<128x128xbf16>, vector<128x128xf32> -> vector<128x128xf32>
    %64 = arith.addf %56, %63 : vector<128x128xf32>
    %65 = vector.extract_strided_slice %57 {offsets = [1, 0, 0], sizes = [8, 16, 128], strides = [1, 1, 1]} : vector<10x16x128xf32> to vector<8x16x128xf32>
    %66 = vector.shape_cast %65 : vector<8x16x128xf32> to vector<128x128xf32>
    %67 = arith.truncf %66 : vector<128x128xf32> to vector<128x128xbf16>
    %c3 = arith.constant 3 : index
    %c0_39 = arith.constant 0 : index
    %c0_40 = arith.constant 0 : index
    %68 = vector.load %arg5[%c3, %c0_39, %c0_40] : memref<9x128x128xbf16, #tpu.memory_space<vmem>>, vector<1x128x128xbf16>
    %69 = vector.shape_cast %68 : vector<1x128x128xbf16> to vector<128x128xbf16>
    %cst_41 = arith.constant dense<0.000000e+00> : vector<128x128xf32>
    %70 = tpu.matmul %67, %69, %cst_41 {dimension_numbers = #tpu.dot_dimension_numbers<[1], [0], [0], [1], [0, 0, 1, 1], [], []>} : vector<128x128xbf16>, vector<128x128xbf16>, vector<128x128xf32> -> vector<128x128xf32>
    %71 = arith.addf %64, %70 : vector<128x128xf32>
    %72 = vector.extract_strided_slice %57 {offsets = [2, 0, 0], sizes = [8, 16, 128], strides = [1, 1, 1]} : vector<10x16x128xf32> to vector<8x16x128xf32>
    %73 = vector.shape_cast %72 : vector<8x16x128xf32> to vector<128x128xf32>
    %74 = arith.truncf %73 : vector<128x128xf32> to vector<128x128xbf16>
    %c6 = arith.constant 6 : index
    %c0_42 = arith.constant 0 : index
    %c0_43 = arith.constant 0 : index
    %75 = vector.load %arg5[%c6, %c0_42, %c0_43] : memref<9x128x128xbf16, #tpu.memory_space<vmem>>, vector<1x128x128xbf16>
    %76 = vector.shape_cast %75 : vector<1x128x128xbf16> to vector<128x128xbf16>
    %cst_44 = arith.constant dense<0.000000e+00> : vector<128x128xf32>
    %77 = tpu.matmul %74, %76, %cst_44 {dimension_numbers = #tpu.dot_dimension_numbers<[1], [0], [0], [1], [0, 0, 1, 1], [], []>} : vector<128x128xbf16>, vector<128x128xbf16>, vector<128x128xf32> -> vector<128x128xf32>
    %78 = arith.addf %71, %77 : vector<128x128xf32>
    %c0_45 = arith.constant 0 : index
    %c8_46 = arith.constant 8 : index
    %c0_47 = arith.constant 0 : index
    %79 = vector.load %arg11[%c0_45, %c8_46, %c0_47] : memref<10x32x128xf32, #tpu.memory_space<vmem>>, vector<10x16x128xf32>
    %80 = vector.extract_strided_slice %79 {offsets = [0, 0, 0], sizes = [8, 16, 128], strides = [1, 1, 1]} : vector<10x16x128xf32> to vector<8x16x128xf32>
    %81 = vector.shape_cast %80 : vector<8x16x128xf32> to vector<128x128xf32>
    %82 = arith.truncf %81 : vector<128x128xf32> to vector<128x128xbf16>
    %c1_48 = arith.constant 1 : index
    %c0_49 = arith.constant 0 : index
    %c0_50 = arith.constant 0 : index
    %83 = vector.load %arg5[%c1_48, %c0_49, %c0_50] : memref<9x128x128xbf16, #tpu.memory_space<vmem>>, vector<1x128x128xbf16>
    %84 = vector.shape_cast %83 : vector<1x128x128xbf16> to vector<128x128xbf16>
    %cst_51 = arith.constant dense<0.000000e+00> : vector<128x128xf32>
    %85 = tpu.matmul %82, %84, %cst_51 {dimension_numbers = #tpu.dot_dimension_numbers<[1], [0], [0], [1], [0, 0, 1, 1], [], []>} : vector<128x128xbf16>, vector<128x128xbf16>, vector<128x128xf32> -> vector<128x128xf32>
    %86 = arith.addf %78, %85 : vector<128x128xf32>
    %87 = vector.extract_strided_slice %79 {offsets = [1, 0, 0], sizes = [8, 16, 128], strides = [1, 1, 1]} : vector<10x16x128xf32> to vector<8x16x128xf32>
    %88 = vector.shape_cast %87 : vector<8x16x128xf32> to vector<128x128xf32>
    %89 = arith.truncf %88 : vector<128x128xf32> to vector<128x128xbf16>
    %c4 = arith.constant 4 : index
    %c0_52 = arith.constant 0 : index
    %c0_53 = arith.constant 0 : index
    %90 = vector.load %arg5[%c4, %c0_52, %c0_53] : memref<9x128x128xbf16, #tpu.memory_space<vmem>>, vector<1x128x128xbf16>
    %91 = vector.shape_cast %90 : vector<1x128x128xbf16> to vector<128x128xbf16>
    %cst_54 = arith.constant dense<0.000000e+00> : vector<128x128xf32>
    %92 = tpu.matmul %89, %91, %cst_54 {dimension_numbers = #tpu.dot_dimension_numbers<[1], [0], [0], [1], [0, 0, 1, 1], [], []>} : vector<128x128xbf16>, vector<128x128xbf16>, vector<128x128xf32> -> vector<128x128xf32>
    %93 = arith.addf %86, %92 : vector<128x128xf32>
    %94 = vector.extract_strided_slice %79 {offsets = [2, 0, 0], sizes = [8, 16, 128], strides = [1, 1, 1]} : vector<10x16x128xf32> to vector<8x16x128xf32>
    %95 = vector.shape_cast %94 : vector<8x16x128xf32> to vector<128x128xf32>
    %96 = arith.truncf %95 : vector<128x128xf32> to vector<128x128xbf16>
    %c7_55 = arith.constant 7 : index
    %c0_56 = arith.constant 0 : index
    %c0_57 = arith.constant 0 : index
    %97 = vector.load %arg5[%c7_55, %c0_56, %c0_57] : memref<9x128x128xbf16, #tpu.memory_space<vmem>>, vector<1x128x128xbf16>
    %98 = vector.shape_cast %97 : vector<1x128x128xbf16> to vector<128x128xbf16>
    %cst_58 = arith.constant dense<0.000000e+00> : vector<128x128xf32>
    %99 = tpu.matmul %96, %98, %cst_58 {dimension_numbers = #tpu.dot_dimension_numbers<[1], [0], [0], [1], [0, 0, 1, 1], [], []>} : vector<128x128xbf16>, vector<128x128xbf16>, vector<128x128xf32> -> vector<128x128xf32>
    %100 = arith.addf %93, %99 : vector<128x128xf32>
    %c0_59 = arith.constant 0 : index
    %c9_60 = arith.constant 9 : index
    %c0_61 = arith.constant 0 : index
    %101 = vector.load %arg11[%c0_59, %c9_60, %c0_61] : memref<10x32x128xf32, #tpu.memory_space<vmem>>, vector<10x16x128xf32>
    %102 = vector.extract_strided_slice %101 {offsets = [0, 0, 0], sizes = [8, 16, 128], strides = [1, 1, 1]} : vector<10x16x128xf32> to vector<8x16x128xf32>
    %103 = vector.shape_cast %102 : vector<8x16x128xf32> to vector<128x128xf32>
    %104 = arith.truncf %103 : vector<128x128xf32> to vector<128x128xbf16>
    %c2 = arith.constant 2 : index
    %c0_62 = arith.constant 0 : index
    %c0_63 = arith.constant 0 : index
    %105 = vector.load %arg5[%c2, %c0_62, %c0_63] : memref<9x128x128xbf16, #tpu.memory_space<vmem>>, vector<1x128x128xbf16>
    %106 = vector.shape_cast %105 : vector<1x128x128xbf16> to vector<128x128xbf16>
    %cst_64 = arith.constant dense<0.000000e+00> : vector<128x128xf32>
    %107 = tpu.matmul %104, %106, %cst_64 {dimension_numbers = #tpu.dot_dimension_numbers<[1], [0], [0], [1], [0, 0, 1, 1], [], []>} : vector<128x128xbf16>, vector<128x128xbf16>, vector<128x128xf32> -> vector<128x128xf32>
    %108 = arith.addf %100, %107 : vector<128x128xf32>
    %109 = vector.extract_strided_slice %101 {offsets = [1, 0, 0], sizes = [8, 16, 128], strides = [1, 1, 1]} : vector<10x16x128xf32> to vector<8x16x128xf32>
    %110 = vector.shape_cast %109 : vector<8x16x128xf32> to vector<128x128xf32>
    %111 = arith.truncf %110 : vector<128x128xf32> to vector<128x128xbf16>
    %c5 = arith.constant 5 : index
    %c0_65 = arith.constant 0 : index
    %c0_66 = arith.constant 0 : index
    %112 = vector.load %arg5[%c5, %c0_65, %c0_66] : memref<9x128x128xbf16, #tpu.memory_space<vmem>>, vector<1x128x128xbf16>
    %113 = vector.shape_cast %112 : vector<1x128x128xbf16> to vector<128x128xbf16>
    %cst_67 = arith.constant dense<0.000000e+00> : vector<128x128xf32>
    %114 = tpu.matmul %111, %113, %cst_67 {dimension_numbers = #tpu.dot_dimension_numbers<[1], [0], [0], [1], [0, 0, 1, 1], [], []>} : vector<128x128xbf16>, vector<128x128xbf16>, vector<128x128xf32> -> vector<128x128xf32>
    %115 = arith.addf %108, %114 : vector<128x128xf32>
    %116 = vector.extract_strided_slice %101 {offsets = [2, 0, 0], sizes = [8, 16, 128], strides = [1, 1, 1]} : vector<10x16x128xf32> to vector<8x16x128xf32>
    %117 = vector.shape_cast %116 : vector<8x16x128xf32> to vector<128x128xf32>
    %118 = arith.truncf %117 : vector<128x128xf32> to vector<128x128xbf16>
    %c8_68 = arith.constant 8 : index
    %c0_69 = arith.constant 0 : index
    %c0_70 = arith.constant 0 : index
    %119 = vector.load %arg5[%c8_68, %c0_69, %c0_70] : memref<9x128x128xbf16, #tpu.memory_space<vmem>>, vector<1x128x128xbf16>
    %120 = vector.shape_cast %119 : vector<1x128x128xbf16> to vector<128x128xbf16>
    %cst_71 = arith.constant dense<0.000000e+00> : vector<128x128xf32>
    %121 = tpu.matmul %118, %120, %cst_71 {dimension_numbers = #tpu.dot_dimension_numbers<[1], [0], [0], [1], [0, 0, 1, 1], [], []>} : vector<128x128xbf16>, vector<128x128xbf16>, vector<128x128xf32> -> vector<128x128xf32>
    %122 = arith.addf %115, %121 : vector<128x128xf32>
    %123 = vector.shape_cast %122 : vector<128x128xf32> to vector<1x8x16x128xf32>
    %124 = arith.truncf %123 : vector<1x8x16x128xf32> to vector<1x8x16x128xbf16>
    %c0_72 = arith.constant 0 : index
    %c0_73 = arith.constant 0 : index
    %c0_74 = arith.constant 0 : index
    %c0_75 = arith.constant 0 : index
    %125 = vector.load %arg8[%c0_72, %c0_73, %c0_74, %c0_75] : memref<1x8x16x128xbf16, #tpu.memory_space<vmem>>, vector<1x8x16x128xbf16>
    tpu.vector_store %arg8[%c0_72, %c0_73, %c0_74, %c0_75], %124 {strides = array<i32>} : memref<1x8x16x128xbf16, #tpu.memory_space<vmem>>, vector<1x8x16x128xbf16>,
    %cst_76 = arith.constant dense<0.000000e+00> : vector<128xf32>
    %126 = vector.multi_reduction <add>, %122, %cst_76 [0] : vector<128x128xf32> to vector<128xf32>
    %127 = vector.shape_cast %126 : vector<128xf32> to vector<1x1x1x128xf32>
    %c0_77 = arith.constant 0 : index
    %c0_78 = arith.constant 0 : index
    %c0_79 = arith.constant 0 : index
    %c0_80 = arith.constant 0 : index
    %128 = vector.load %arg9[%c0_77, %c0_78, %c0_79, %c0_80] : memref<1x1x1x128xf32, #tpu.memory_space<vmem>>, vector<1x1x1x128xf32>
    tpu.vector_store %arg9[%c0_77, %c0_78, %c0_79, %c0_80], %127 {strides = array<i32>} : memref<1x1x1x128xf32, #tpu.memory_space<vmem>>, vector<1x1x1x128xf32>,
    %129 = arith.mulf %122, %122 : vector<128x128xf32>
    %cst_81 = arith.constant dense<0.000000e+00> : vector<128xf32>
    %130 = vector.multi_reduction <add>, %129, %cst_81 [0] : vector<128x128xf32> to vector<128xf32>
    %131 = vector.shape_cast %130 : vector<128xf32> to vector<1x1x1x128xf32>
    %c0_82 = arith.constant 0 : index
    %c0_83 = arith.constant 0 : index
    %c0_84 = arith.constant 0 : index
    %c0_85 = arith.constant 0 : index
    %132 = vector.load %arg10[%c0_82, %c0_83, %c0_84, %c0_85] : memref<1x1x1x128xf32, #tpu.memory_space<vmem>>, vector<1x1x1x128xf32>
    tpu.vector_store %arg10[%c0_82, %c0_83, %c0_84, %c0_85], %131 {strides = array<i32>} : memref<1x1x1x128xf32, #tpu.memory_space<vmem>>, vector<1x1x1x128xf32>,
    return
  }
  func.func @transform_0(%arg0: i32, %arg1: i32) -> (i32, i32, i32, i32) {
    %c0_i32 = arith.constant 0 : i32
    %c0_i32_0 = arith.constant 0 : i32
    %c0_i32_1 = arith.constant 0 : i32
    return %arg0, %arg1, %c0_i32, %c0_i32_0 : i32, i32, i32, i32
  }
  func.func @transform_1(%arg0: i32, %arg1: i32) -> (i32, i32, i32, i32) {
    %c0_i32 = arith.constant 0 : i32
    %c0_i32_0 = arith.constant 0 : i32
    %c0_i32_1 = arith.constant 0 : i32
    return %arg0, %arg1, %c0_i32, %c0_i32_0 : i32, i32, i32, i32
  }
  func.func @transform_2(%arg0: i32, %arg1: i32) -> (i32, i32, i32, i32) {
    %c0_i32 = arith.constant 0 : i32
    %c0_i32_0 = arith.constant 0 : i32
    %c0_i32_1 = arith.constant 0 : i32
    return %arg0, %arg1, %c0_i32, %c0_i32_0 : i32, i32, i32, i32
  }
  func.func @transform_3(%arg0: i32, %arg1: i32) -> (i32, i32, i32) {
    %c0_i32 = arith.constant 0 : i32
    %c0_i32_0 = arith.constant 0 : i32
    %c0_i32_1 = arith.constant 0 : i32
    %c0_i32_2 = arith.constant 0 : i32
    return %c0_i32, %c0_i32_0, %c0_i32_1 : i32, i32, i32
  }
  func.func @transform_4(%arg0: i32, %arg1: i32) -> (i32, i32) {
    %c0_i32 = arith.constant 0 : i32
    %c0_i32_0 = arith.constant 0 : i32
    %c0_i32_1 = arith.constant 0 : i32
    return %c0_i32, %c0_i32_0 : i32, i32
  }
  func.func @transform_5(%arg0: i32, %arg1: i32) -> (i32, i32) {
    %c0_i32 = arith.constant 0 : i32
    %c0_i32_0 = arith.constant 0 : i32
    %c0_i32_1 = arith.constant 0 : i32
    return %c0_i32, %c0_i32_0 : i32, i32
  }
  func.func @transform_6(%arg0: i32, %arg1: i32) -> (i32, i32, i32, i32) {
    %c0_i32 = arith.constant 0 : i32
    %c0_i32_0 = arith.constant 0 : i32
    %c0_i32_1 = arith.constant 0 : i32
    return %arg0, %arg1, %c0_i32, %c0_i32_0 : i32, i32, i32, i32
  }
  func.func @transform_7(%arg0: i32, %arg1: i32) -> (i32, i32, i32, i32) {
    %c0_i32 = arith.constant 0 : i32
    %c0_i32_0 = arith.constant 0 : i32
    %c0_i32_1 = arith.constant 0 : i32
    return %arg0, %arg1, %c0_i32, %c0_i32_0 : i32, i32, i32, i32
  }
  func.func @transform_8(%arg0: i32, %arg1: i32) -> (i32, i32, i32, i32) {
    %c0_i32 = arith.constant 0 : i32
    %c0_i32_0 = arith.constant 0 : i32
    %c0_i32_1 = arith.constant 0 : i32
    return %arg0, %arg1, %c0_i32, %c0_i32_0 : i32, i32, i32, i32
  }
}

module attributes {stable_mosaic.version = 11 : i64} {
  func.func @_bn_act_kernel(%arg0: i32, %arg1: i32, %arg2: memref<1x8x16x128xbf16, #tpu.memory_space<vmem>>, %arg3: memref<1x8xf32, #tpu.memory_space<vmem>>, %arg4: memref<1x8xf32, #tpu.memory_space<vmem>>, %arg5: memref<1x8x16x8xf32, #tpu.memory_space<vmem>>) attributes {dimension_semantics = [#tpu.dimension_semantics<parallel>, #tpu.dimension_semantics<parallel>], iteration_bounds = array<i64: 2, 2>, scalar_prefetch = 0 : i64, scratch_operands = 0 : i64, tpu.core_type = #tpu.core_type<tc>, window_params = [{transform_indices = @transform_0, window_bounds = array<i64: 1, 8, 16, 128>}, {pipeline_mode = #tpu.pipeline_mode<synchronous>, transform_indices = @transform_1, window_bounds = array<i64: 1, 8>}, {pipeline_mode = #tpu.pipeline_mode<synchronous>, transform_indices = @transform_2, window_bounds = array<i64: 1, 8>}, {transform_indices = @transform_3, window_bounds = array<i64: 1, 8, 16, 8>}]} {
    %c0 = arith.constant 0 : index
    %c0_0 = arith.constant 0 : index
    %c0_1 = arith.constant 0 : index
    %c0_2 = arith.constant 0 : index
    %0 = vector.load %arg2[%c0, %c0_0, %c0_1, %c0_2] : memref<1x8x16x128xbf16, #tpu.memory_space<vmem>>, vector<1x8x16x128xbf16>
    %1 = vector.extract_strided_slice %0 {offsets = [0, 0, 0, 0], sizes = [1, 8, 16, 8], strides = [1, 1, 1, 1]} : vector<1x8x16x128xbf16> to vector<1x8x16x8xbf16>
    %2 = arith.extf %1 : vector<1x8x16x8xbf16> to vector<1x8x16x8xf32>
    %c0_3 = arith.constant 0 : index
    %c0_4 = arith.constant 0 : index
    %3 = vector.load %arg3[%c0_3, %c0_4] : memref<1x8xf32, #tpu.memory_space<vmem>>, vector<1x8xf32>
    %4 = vector.shape_cast %3 : vector<1x8xf32> to vector<1x1x1x8xf32>
    %5 = vector.broadcast %4 : vector<1x1x1x8xf32> to vector<1x8x16x8xf32>
    %6 = arith.mulf %2, %5 : vector<1x8x16x8xf32>
    %c0_5 = arith.constant 0 : index
    %c0_6 = arith.constant 0 : index
    %7 = vector.load %arg4[%c0_5, %c0_6] : memref<1x8xf32, #tpu.memory_space<vmem>>, vector<1x8xf32>
    %8 = vector.shape_cast %7 : vector<1x8xf32> to vector<1x1x1x8xf32>
    %9 = vector.broadcast %8 : vector<1x1x1x8xf32> to vector<1x8x16x8xf32>
    %10 = arith.addf %6, %9 : vector<1x8x16x8xf32>
    %cst = arith.constant 0.000000e+00 : f32
    %11 = vector.broadcast %cst : f32 to vector<1x8x16x8xf32>
    %12 = arith.cmpf oge, %10, %11 : vector<1x8x16x8xf32>
    %cst_7 = arith.constant 2.000000e-01 : f32
    %13 = vector.broadcast %cst_7 : f32 to vector<1x8x16x8xf32>
    %14 = arith.mulf %13, %10 : vector<1x8x16x8xf32>
    %15 = arith.select %12, %10, %14 : vector<1x8x16x8xi1>, vector<1x8x16x8xf32>
    %c0_8 = arith.constant 0 : index
    %c0_9 = arith.constant 0 : index
    %c0_10 = arith.constant 0 : index
    %c0_11 = arith.constant 0 : index
    %16 = vector.load %arg5[%c0_8, %c0_9, %c0_10, %c0_11] : memref<1x8x16x8xf32, #tpu.memory_space<vmem>>, vector<1x8x16x8xf32>
    tpu.vector_store %arg5[%c0_8, %c0_9, %c0_10, %c0_11], %15 {strides = array<i32>} : memref<1x8x16x8xf32, #tpu.memory_space<vmem>>, vector<1x8x16x8xf32>,
    return
  }
  func.func @transform_0(%arg0: i32, %arg1: i32) -> (i32, i32, i32, i32) {
    %c0_i32 = arith.constant 0 : i32
    %c0_i32_0 = arith.constant 0 : i32
    %c0_i32_1 = arith.constant 0 : i32
    return %arg0, %arg1, %c0_i32, %c0_i32_0 : i32, i32, i32, i32
  }
  func.func @transform_1(%arg0: i32, %arg1: i32) -> (i32, i32) {
    %c0_i32 = arith.constant 0 : i32
    %c0_i32_0 = arith.constant 0 : i32
    %c0_i32_1 = arith.constant 0 : i32
    return %c0_i32, %c0_i32_0 : i32, i32
  }
  func.func @transform_2(%arg0: i32, %arg1: i32) -> (i32, i32) {
    %c0_i32 = arith.constant 0 : i32
    %c0_i32_0 = arith.constant 0 : i32
    %c0_i32_1 = arith.constant 0 : i32
    return %c0_i32, %c0_i32_0 : i32, i32
  }
  func.func @transform_3(%arg0: i32, %arg1: i32) -> (i32, i32, i32, i32) {
    %c0_i32 = arith.constant 0 : i32
    %c0_i32_0 = arith.constant 0 : i32
    %c0_i32_1 = arith.constant 0 : i32
    return %arg0, %arg1, %c0_i32, %c0_i32_0 : i32, i32, i32, i32
  }
}

</mosaic_0001>

<llo_original>
// kernel: double_conv_forward.5
$region0: #{double_conv_forward.5}
  #allocation0 [shape = 'u32[]', space=smem, size = 0x4, offset = 0x4, fixed_abs, tag = 'smem constant byte address 0x4 - core index']
  #allocation1 [shape = 'u32[144,128]{1,0:T(1,128)}', space=vmem, size = 0x12000, scoped, tag = 'internal scratch']
  %s0 = inlined_call_operand.vmem [shape: bf16[2,16,16,128], index: 0, kind: input, shape index: {}]
  %s1 = inlined_call_operand.vmem [shape: f32[1,8], index: 1, kind: input, shape index: {}]
  %s2 = inlined_call_operand.vmem [shape: f32[1,8], index: 2, kind: input, shape index: {}]
  %s3 = inlined_call_operand.vmem [shape: f32[2,16,16,8], index: 3, kind: output, shape index: {}]
  %s4 = sld [smem:[#allocation0]]
  $region45: #{double_conv_forward.5} parent=0
    _
  %s6 = ssub.s32 1, %s4
  %s7 = scalar_select 0, %s6, %s4
  loop: start=0, step=1, limit=6
  $region2: #{double_conv_forward.5} parent=0 // loop_pre_header
    _
  $region3: #{double_conv_forward.5} parent=0 // loop_header
    %s9 = sphi 0, %s13
    %p10 = scmp.ge.s32.totalorder %s9, 6
    %s16 = sphi 0, %s28
    %s17 = sphi 0, %s24
    %s18 = sphi 0, %s16
    %s19 = sphi 0, %s17
    %s20 = sphi 0, %s18
    %s21 = sphi 0, %s19
    %s33 = sphi 0, %s35
    %s36 = sphi 0, %s33
    %s37 = sphi 0, %s36
    %s53 = sphi 0, %s37
    %s57 = sphi 0, %s57
    %s59 = sphi 0, %s57
    %s60 = sphi 0, %s59
    %s74 = sphi 0, %s60
    %s78 = sphi 0, %s78
    %s80 = sphi 0, %s78
    %s81 = sphi 0, %s80
    %s95 = sphi 0, %s81
    %s103 = sphi 0, %s105
    %s106 = sphi 0, %s103
    %s107 = sphi 0, %s106
    %s123 = sphi 0, %s107
  $region4: #{double_conv_forward.5} parent=0 // loop_header_branch
    %12 = sbr.rel (%p10) target = $region8
  $region5: #{double_conv_forward.5} parent=0 // loop_body
    %s14 = ssub.s32 %s9, 1
    %s15 = ssub.s32 %s9, 2
    %s22 = sadd.s32 1, %s17
    %p23 = scmp.ge.s32.totalorder %s22, 2
    %s24 = scalar_select %p23, 0, %s22
    %s25 = sadd.s32 1, %s16
    %s26 = scalar_select %p23, %s25, %s16
    %p27 = scmp.ge.s32.totalorder %s26, 2
    %s28 = scalar_select %p27, 0, %s26
    %s29 = ssub.s32 %s16, %s28
    %s30 = ssub.s32 %s17, %s24
    %s31 = sor.u32 %s29, %s30
    %p32 = scmp.eq.s32.totalorder %s31, 0
    %s34 = sadd.s32 %s33, 1
    %s35 = scalar_select %p32, %s33, %s34
    %p38 = pneg %p32
    %p39 = scmp.eq.s32.totalorder %s9, 3
    %p40 = por %p38, %p39
    %p41 = scmp.ne.s32.totalorder %s33, %s36
    %p42 = scmp.eq.s32.totalorder %s9, 0
    %p43 = por %p41, %p42
    %p44 = scmp.ne.s32.totalorder %s33, %s36
    %p45 = scmp.eq.s32.totalorder %s14, 3
    %p46 = por %p44, %p45
    %p47 = scmp.ne.s32.totalorder %s36, %s37
    %p48 = scmp.eq.s32.totalorder %s14, 0
    %p49 = por %p47, %p48
    %p50 = scmp.ne.s32.totalorder %s36, %s37
    %p51 = scmp.eq.s32.totalorder %s15, 3
    %p52 = por %p50, %p51
    %p54 = scmp.ne.s32.totalorder %s37, %s53
    %p55 = scmp.eq.s32.totalorder %s15, 0
    %p56 = por %p54, %p55
    %s58 = sadd.s32 %s57, 1
    %p61 = scmp.eq.s32.totalorder %s9, 3
    %p62 = scmp.ne.s32.totalorder %s57, %s59
    %p63 = scmp.eq.s32.totalorder %s9, 0
    %p64 = por %p62, %p63
    %p65 = scmp.ne.s32.totalorder %s57, %s59
    %p66 = scmp.eq.s32.totalorder %s14, 3
    %p67 = por %p65, %p66
    %p68 = scmp.ne.s32.totalorder %s59, %s60
    %p69 = scmp.eq.s32.totalorder %s14, 0
    %p70 = por %p68, %p69
    %p71 = scmp.ne.s32.totalorder %s59, %s60
    %p72 = scmp.eq.s32.totalorder %s15, 3
    %p73 = por %p71, %p72
    %p75 = scmp.ne.s32.totalorder %s60, %s74
    %p76 = scmp.eq.s32.totalorder %s15, 0
    %p77 = por %p75, %p76
    %s79 = sadd.s32 %s78, 1
    %p82 = scmp.eq.s32.totalorder %s9, 3
    %p83 = scmp.ne.s32.totalorder %s78, %s80
    %p84 = scmp.eq.s32.totalorder %s9, 0
    %p85 = por %p83, %p84
    %p86 = scmp.ne.s32.totalorder %s78, %s80
    %p87 = scmp.eq.s32.totalorder %s14, 3
    %p88 = por %p86, %p87
    %p89 = scmp.ne.s32.totalorder %s80, %s81
    %p90 = scmp.eq.s32.totalorder %s14, 0
    %p91 = por %p89, %p90
    %p92 = scmp.ne.s32.totalorder %s80, %s81
    %p93 = scmp.eq.s32.totalorder %s15, 3
    %p94 = por %p92, %p93
    %p96 = scmp.ne.s32.totalorder %s81, %s95
    %p97 = scmp.eq.s32.totalorder %s15, 0
    %p98 = por %p96, %p97
    %s99 = ssub.s32 %s16, %s28
    %s100 = ssub.s32 %s17, %s24
    %s101 = sor.u32 %s99, %s100
    %p102 = scmp.eq.s32.totalorder %s101, 0
    %s104 = sadd.s32 %s103, 1
    %s105 = scalar_select %p102, %s103, %s104
    %p108 = pneg %p102
    %p109 = scmp.eq.s32.totalorder %s9, 3
    %p110 = por %p108, %p109
    %p111 = scmp.ne.s32.totalorder %s103, %s106
    %p112 = scmp.eq.s32.totalorder %s9, 0
    %p113 = por %p111, %p112
    %p114 = scmp.ne.s32.totalorder %s103, %s106
    %p115 = scmp.eq.s32.totalorder %s14, 3
    %p116 = por %p114, %p115
    %p117 = scmp.ne.s32.totalorder %s106, %s107
    %p118 = scmp.eq.s32.totalorder %s14, 0
    %p119 = por %p117, %p118
    %p120 = scmp.ne.s32.totalorder %s106, %s107
    %p121 = scmp.eq.s32.totalorder %s15, 3
    %p122 = por %p120, %p121
    %p124 = scmp.ne.s32.totalorder %s107, %s123
    %p125 = scmp.eq.s32.totalorder %s15, 0
    %p126 = por %p124, %p125
    %p127 = scmp.le.s32.totalorder 1, %s9
    %p128 = scmp.lt.s32.totalorder %s9, 5
    %p129 = pnand %p127, %p128
    %p130 = pneg %p129
    // Predicated region
    $region9: #{double_conv_forward.5} parent=5 // pred_check
      _
    $region10: #{double_conv_forward.5} parent=5 // pred_check_branch
      %132 = sbr.rel (%p129) target = $region12
    $region11: #{double_conv_forward.5} parent=5 // pred_region
      %s133 = ssub.s32 %s9, 1
      // Predicated region
      $region13: #{double_conv_forward.5} parent=11 // pred_check
        %p134 = pneg %p70
      $region14: #{double_conv_forward.5} parent=11 // pred_check_branch
        %136 = sbr.rel (%p134) target = $region16
      $region15: #{double_conv_forward.5} parent=11 // pred_region
        _
      $region16: #{double_conv_forward.5} parent=11 // pred_fallthru
        _
      // Predicated region
      $region17: #{double_conv_forward.5} parent=11 // pred_check
        %p137 = pneg %p91
      $region18: #{double_conv_forward.5} parent=11 // pred_check_branch
        %139 = sbr.rel (%p137) target = $region20
      $region19: #{double_conv_forward.5} parent=11 // pred_region
        _
      $region20: #{double_conv_forward.5} parent=11 // pred_fallthru
        _
    $region12: #{double_conv_forward.5} parent=5 // pred_fallthru
      _
    %p140 = scmp.lt.s32.totalorder %s9, 4
    // Predicated region
    $region21: #{double_conv_forward.5} parent=5 // pred_check
      %p141 = pneg %p140
    $region22: #{double_conv_forward.5} parent=5 // pred_check_branch
      %143 = sbr.rel (%p141) target = $region24
    $region23: #{double_conv_forward.5} parent=5 // pred_region
      // Predicated region
      $region25: #{double_conv_forward.5} parent=23 // pred_check
        %p144 = pneg %p43
      $region26: #{double_conv_forward.5} parent=23 // pred_check_branch
        %146 = sbr.rel (%p144) target = $region28
      $region27: #{double_conv_forward.5} parent=23 // pred_region
        %s147 = smul.u32 8, %s17
        %p148 = scmp.lt.s32.totalorder %s16, 1
        %s149 = scalar_select %p148, %s16, 1
        %p150 = scmp.lt.s32.totalorder %s147, 15
        %s151 = scalar_select %p150, %s147, 15
        %s152 = smul.addr %s151, 2
        %s153 = smul.addr %s149, 32
        %s154 = sadd.s32 %s152, %s153
        %s155 = smul.addr %s154, 4
        %s156 = scalar_lea.vmem %s0, %s155
        %s157 = smul.u32 8, %s17
      $region28: #{double_conv_forward.5} parent=23 // pred_fallthru
        _
    $region24: #{double_conv_forward.5} parent=5 // pred_fallthru
      _
    %p158 = scmp.le.s32.totalorder 1, %s9
    %p159 = scmp.lt.s32.totalorder %s9, 5
    %p160 = pnand %p158, %p159
    %p161 = pneg %p160
    // Predicated region
    $region29: #{double_conv_forward.5} parent=5 // pred_check
      _
    $region30: #{double_conv_forward.5} parent=5 // pred_check_branch
      %163 = sbr.rel (%p160) target = $region32
    $region31: #{double_conv_forward.5} parent=5 // pred_region
      %s164 = ssub.s32 %s9, 1
      %s165 = smul.u32 8, %s19
      %p166 = scmp.lt.s32.totalorder %s18, 1
      %s167 = scalar_select %p166, %s18, 1
      %p168 = scmp.lt.s32.totalorder %s165, 15
      %s169 = scalar_select %p168, %s165, 15
      %s170 = smul.addr %s169, 2
      %s171 = smul.addr %s167, 32
      %s172 = sadd.s32 %s170, %s171
      %s173 = smul.addr %s172, 4
      %s174 = scalar_lea.vmem %s0, %s173
      %p175 = pneg %p49
      %p176 = pneg %p46
      %p177 = pneg %p70
      %p178 = pneg %p67
      %p179 = pneg %p91
      %p180 = pneg %p88
      %p181 = pneg %p119
      %p182 = pneg %p116
      %s183 = smul.u32 8, %s19
      %p184 = scmp.lt.s32.totalorder %s18, 1
      %s185 = scalar_select %p184, %s18, 1
      %p186 = scmp.lt.s32.totalorder %s183, 15
      %s187 = scalar_select %p186, %s183, 15
      %s188 = smul.addr %s187, 2
      %s189 = smul.addr %s185, 32
      %s190 = sadd.s32 %s188, %s189
      %s191 = smul.addr %s190, 8
      %s192 = scalar_lea.vmem %s3, %s191
      %s193 = smul.u32 8, %s19
      %p194 = scmp.lt.s32.totalorder %s18, 1
      %s195 = scalar_select %p194, %s18, 1
      %p196 = scmp.lt.s32.totalorder %s193, 15
      %s197 = scalar_select %p196, %s193, 15
      %s198 = smul.addr %s197, 2
      %s199 = smul.addr %s195, 32
      %s200 = sadd.s32 %s198, %s199
      %s201 = smul.addr %s200, 4
      %s202 = scalar_lea.vmem %s0, %s201
      %s203 = smul.u32 8, %s19
      %s204 = smul.u32 8, %s19
      %p205 = scmp.lt.s32.totalorder %s18, 1
      %s206 = scalar_select %p205, %s18, 1
      %p207 = scmp.lt.s32.totalorder %s204, 15
      %s208 = scalar_select %p207, %s204, 15
      %s209 = smul.addr %s208, 2
      %s210 = smul.addr %s206, 32
      %s211 = sadd.s32 %s209, %s210
      %s212 = smul.addr %s211, 8
      %s213 = scalar_lea.vmem %s3, %s212
      %s214 = smul.u32 8, %s19
      %v215 = vld [vmem:[%s202] sm:$0xf]
      %v216 = vld [vmem:[%s202 + $0x4] sm:$0xf]
      %v217 = vld [vmem:[%s202 + $0x8] sm:$0xf]
      %v218 = vld [vmem:[%s202 + $0xc] sm:$0xf]
      %v219 = vld [vmem:[%s202 + $0x10] sm:$0xf]
      %v220 = vld [vmem:[%s202 + $0x14] sm:$0xf]
      %v221 = vld [vmem:[%s202 + $0x18] sm:$0xf]
      %v222 = vld [vmem:[%s202 + $0x1c] sm:$0xf]
      %v223 = vld [vmem:[%s202 + $0x20] sm:$0xf]
      %v224 = vld [vmem:[%s202 + $0x24] sm:$0xf]
      %v225 = vld [vmem:[%s202 + $0x28] sm:$0xf]
      %v226 = vld [vmem:[%s202 + $0x2c] sm:$0xf]
      %v227 = vld [vmem:[%s202 + $0x30] sm:$0xf]
      %v228 = vld [vmem:[%s202 + $0x34] sm:$0xf]
      %v229 = vld [vmem:[%s202 + $0x38] sm:$0xf]
      %v230 = vld [vmem:[%s202 + $0x3c] sm:$0xf]
      %v231 = vunpack.c.l.bf16 %v215
      %v232 = vunpack.c.l.bf16 %v216
      %v233 = vunpack.c.l.bf16 %v217
      %v234 = vunpack.c.l.bf16 %v218
      %v235 = vunpack.c.l.bf16 %v219
      %v236 = vunpack.c.l.bf16 %v220
      %v237 = vunpack.c.l.bf16 %v221
      %v238 = vunpack.c.l.bf16 %v222
      %v239 = vunpack.c.l.bf16 %v223
      %v240 = vunpack.c.l.bf16 %v224
      %v241 = vunpack.c.l.bf16 %v225
      %v242 = vunpack.c.l.bf16 %v226
      %v243 = vunpack.c.l.bf16 %v227
      %v244 = vunpack.c.l.bf16 %v228
      %v245 = vunpack.c.l.bf16 %v229
      %v246 = vunpack.c.l.bf16 %v230
      %v247 = vld [vmem:[%s1] sm:$0x1]
      %v249 = vlaneseq
      %v250 = vshrl.u32 %v249, 7
      %v251 = vsub.s32 0, %v250
      %v252 = vrot.slane %v247, %v251
      %v254 = vmul.f32 %v231, %v252
      %v255 = vmul.f32 %v232, %v252
      %v256 = vmul.f32 %v233, %v252
      %v257 = vmul.f32 %v234, %v252
      %v258 = vmul.f32 %v235, %v252
      %v259 = vmul.f32 %v236, %v252
      %v260 = vmul.f32 %v237, %v252
      %v261 = vmul.f32 %v238, %v252
      %v262 = vmul.f32 %v239, %v252
      %v263 = vmul.f32 %v240, %v252
      %v264 = vmul.f32 %v241, %v252
      %v265 = vmul.f32 %v242, %v252
      %v266 = vmul.f32 %v243, %v252
      %v267 = vmul.f32 %v244, %v252
      %v268 = vmul.f32 %v245, %v252
      %v269 = vmul.f32 %v246, %v252
      %v270 = vld [vmem:[%s2] sm:$0x1]
      %v272 = vlaneseq
      %v273 = vshrl.u32 %v272, 7
      %v274 = vsub.s32 0, %v273
      %v275 = vrot.slane %v270, %v274
      %v277 = vadd.f32 %v254, %v275
      %v278 = vadd.f32 %v255, %v275
      %v279 = vadd.f32 %v256, %v275
      %v280 = vadd.f32 %v257, %v275
      %v281 = vadd.f32 %v258, %v275
      %v282 = vadd.f32 %v259, %v275
      %v283 = vadd.f32 %v260, %v275
      %v284 = vadd.f32 %v261, %v275
      %v285 = vadd.f32 %v262, %v275
      %v286 = vadd.f32 %v263, %v275
      %v287 = vadd.f32 %v264, %v275
      %v288 = vadd.f32 %v265, %v275
      %v289 = vadd.f32 %v266, %v275
      %v290 = vadd.f32 %v267, %v275
      %v291 = vadd.f32 %v268, %v275
      %v292 = vadd.f32 %v269, %v275
      %vm293 = vcmp.ge.f32.partialorder %v277, 0.0
      %vm294 = vcmp.ge.f32.partialorder %v278, 0.0
      %vm295 = vcmp.ge.f32.partialorder %v279, 0.0
      %vm296 = vcmp.ge.f32.partialorder %v280, 0.0
      %vm297 = vcmp.ge.f32.partialorder %v281, 0.0
      %vm298 = vcmp.ge.f32.partialorder %v282, 0.0
      %vm299 = vcmp.ge.f32.partialorder %v283, 0.0
      %vm300 = vcmp.ge.f32.partialorder %v284, 0.0
      %vm301 = vcmp.ge.f32.partialorder %v285, 0.0
      %vm302 = vcmp.ge.f32.partialorder %v286, 0.0
      %vm303 = vcmp.ge.f32.partialorder %v287, 0.0
      %vm304 = vcmp.ge.f32.partialorder %v288, 0.0
      %vm305 = vcmp.ge.f32.partialorder %v289, 0.0
      %vm306 = vcmp.ge.f32.partialorder %v290, 0.0
      %vm307 = vcmp.ge.f32.partialorder %v291, 0.0
      %vm308 = vcmp.ge.f32.partialorder %v292, 0.0
      %v309 = vmul.f32 %v277, 0.2
      %v310 = vmul.f32 %v278, 0.2
      %v311 = vmul.f32 %v279, 0.2
      %v312 = vmul.f32 %v280, 0.2
      %v313 = vmul.f32 %v281, 0.2
      %v314 = vmul.f32 %v282, 0.2
      %v315 = vmul.f32 %v283, 0.2
      %v316 = vmul.f32 %v284, 0.2
      %v317 = vmul.f32 %v285, 0.2
      %v318 = vmul.f32 %v286, 0.2
      %v319 = vmul.f32 %v287, 0.2
      %v320 = vmul.f32 %v288, 0.2
      %v321 = vmul.f32 %v289, 0.2
      %v322 = vmul.f32 %v290, 0.2
      %v323 = vmul.f32 %v291, 0.2
      %v324 = vmul.f32 %v292, 0.2
      %v325 = vsel %vm293, %v277, %v309
      %v326 = vsel %vm294, %v278, %v310
      %v327 = vsel %vm295, %v279, %v311
      %v328 = vsel %vm296, %v280, %v312
      %v329 = vsel %vm297, %v281, %v313
      %v330 = vsel %vm298, %v282, %v314
      %v331 = vsel %vm299, %v283, %v315
      %v332 = vsel %vm300, %v284, %v316
      %v333 = vsel %vm301, %v285, %v317
      %v334 = vsel %vm302, %v286, %v318
      %v335 = vsel %vm303, %v287, %v319
      %v336 = vsel %vm304, %v288, %v320
      %v337 = vsel %vm305, %v289, %v321
      %v338 = vsel %vm306, %v290, %v322
      %v339 = vsel %vm307, %v291, %v323
      %v340 = vsel %vm308, %v292, %v324
      %vm341 = vcmask 64512
      %342 = vst.msk [vmem:[%s213] sm:$0xff] %vm341, %v325
      %343 = vst.msk [vmem:[%s213 + $0x8] sm:$0xff] %vm341, %v326
      %344 = vst.msk [vmem:[%s213 + $0x10] sm:$0xff] %vm341, %v327
      %345 = vst.msk [vmem:[%s213 + $0x18] sm:$0xff] %vm341, %v328
      %346 = vst.msk [vmem:[%s213 + $0x20] sm:$0xff] %vm341, %v329
      %347 = vst.msk [vmem:[%s213 + $0x28] sm:$0xff] %vm341, %v330
      %348 = vst.msk [vmem:[%s213 + $0x30] sm:$0xff] %vm341, %v331
      %349 = vst.msk [vmem:[%s213 + $0x38] sm:$0xff] %vm341, %v332
      %350 = vst.msk [vmem:[%s213 + $0x40] sm:$0xff] %vm341, %v333
      %351 = vst.msk [vmem:[%s213 + $0x48] sm:$0xff] %vm341, %v334
      %352 = vst.msk [vmem:[%s213 + $0x50] sm:$0xff] %vm341, %v335
      %353 = vst.msk [vmem:[%s213 + $0x58] sm:$0xff] %vm341, %v336
      %354 = vst.msk [vmem:[%s213 + $0x60] sm:$0xff] %vm341, %v337
      %355 = vst.msk [vmem:[%s213 + $0x68] sm:$0xff] %vm341, %v338
      %356 = vst.msk [vmem:[%s213 + $0x70] sm:$0xff] %vm341, %v339
      %357 = vst.msk [vmem:[%s213 + $0x78] sm:$0xff] %vm341, %v340
      %s358 = smul.u32 8, %s19
      %p359 = scmp.lt.s32.totalorder %s18, 1
      %s360 = scalar_select %p359, %s18, 1
      %p361 = scmp.lt.s32.totalorder %s358, 15
      %s362 = scalar_select %p361, %s358, 15
      %s363 = smul.addr %s362, 2
      %s364 = smul.addr %s360, 32
      %s365 = sadd.s32 %s363, %s364
      %s366 = smul.addr %s365, 8
      %s367 = scalar_lea.vmem %s3, %s366
      // Predicated region
      $region33: #{double_conv_forward.5} parent=31 // pred_check
        %p368 = pneg %p116
      $region34: #{double_conv_forward.5} parent=31 // pred_check_branch
        %370 = sbr.rel (%p368) target = $region36
      $region35: #{double_conv_forward.5} parent=31 // pred_region
        %s371 = smul.u32 8, %s19
      $region36: #{double_conv_forward.5} parent=31 // pred_fallthru
        _
    $region32: #{double_conv_forward.5} parent=5 // pred_fallthru
      _
    %p372 = scmp.le.s32.totalorder 2, %s9
    // Predicated region
    $region37: #{double_conv_forward.5} parent=5 // pred_check
      %p373 = pneg %p372
    $region38: #{double_conv_forward.5} parent=5 // pred_check_branch
      %375 = sbr.rel (%p373) target = $region40
    $region39: #{double_conv_forward.5} parent=5 // pred_region
      %s376 = ssub.s32 %s9, 2
      // Predicated region
      $region41: #{double_conv_forward.5} parent=39 // pred_check
        %p377 = pneg %p122
      $region42: #{double_conv_forward.5} parent=39 // pred_check_branch
        %379 = sbr.rel (%p377) target = $region44
      $region43: #{double_conv_forward.5} parent=39 // pred_region
        %s380 = smul.u32 8, %s21
        %p381 = scmp.lt.s32.totalorder %s20, 1
        %s382 = scalar_select %p381, %s20, 1
        %p383 = scmp.lt.s32.totalorder %s380, 15
        %s384 = scalar_select %p383, %s380, 15
        %s385 = smul.addr %s384, 2
        %s386 = smul.addr %s382, 32
        %s387 = sadd.s32 %s385, %s386
        %s388 = smul.addr %s387, 8
        %s389 = scalar_lea.vmem %s3, %s388
      $region44: #{double_conv_forward.5} parent=39 // pred_fallthru
        _
    $region40: #{double_conv_forward.5} parent=5 // pred_fallthru
      _
  $region6: #{double_conv_forward.5} parent=0 // loop_footer
    %s13 = sadd.s32 1, %s9
  $region7: #{double_conv_forward.5} parent=0 // loop_footer_branch
    %8 = sbr.rel target = $region3
  $region8: #{double_conv_forward.5} parent=0 // loop_exit
    _

// kernel: double_conv_forward.3
$region0: #{double_conv_forward.3}
  #allocation0 [shape = 'u32[]', space=smem, size = 0x4, offset = 0x4, fixed_abs, tag = 'smem constant byte address 0x4 - core index']
  #allocation1 [shape = 'u32[144,128]{1,0:T(1,128)}', space=vmem, size = 0x12000, scoped, tag = 'internal scratch']
  #allocation2 [shape = 'f32[10,32,4]{2,1,0:T(8,128)}', space=vmem, size = 0x28000, scoped, tag = 'scratch operand']
  %s0 = inlined_call_operand.vmem [shape: bf16[2,16,16,4], index: 0, kind: input, shape index: {}]
  %s1 = inlined_call_operand.vmem [shape: bf16[2,2,16,4], index: 1, kind: input, shape index: {}]
  %s2 = inlined_call_operand.vmem [shape: bf16[2,2,16,4], index: 2, kind: input, shape index: {}]
  %s3 = inlined_call_operand.vmem [shape: bf16[9,4,128], index: 3, kind: input, shape index: {}]
  %s4 = inlined_call_operand.vmem [shape: f32[1,4], index: 4, kind: input, shape index: {}]
  %s5 = inlined_call_operand.vmem [shape: f32[1,4], index: 5, kind: input, shape index: {}]
  %s6 = inlined_call_operand.vmem [shape: bf16[2,16,16,128], index: 6, kind: output, shape index: {0}]
  %s7 = inlined_call_operand.vmem [shape: f32[2,2,1,128], index: 7, kind: output, shape index: {1}]
  %s8 = inlined_call_operand.vmem [shape: f32[2,2,1,128], index: 8, kind: output, shape index: {2}]
  %9 = xla_tuple %s6, %s7, %s8
  %s10 = sld [smem:[#allocation0]]
  $region73: #{double_conv_forward.3} parent=0
    _
  %s12 = ssub.s32 1, %s10
  %s13 = scalar_select 0, %s12, %s10
  loop: start=0, step=1, limit=6
  $region2: #{double_conv_forward.3} parent=0 // loop_pre_header
    _
  $region3: #{double_conv_forward.3} parent=0 // loop_header
    %s15 = sphi 0, %s19
    %p16 = scmp.ge.s32.totalorder %s15, 6
    %s22 = sphi 0, %s34
    %s23 = sphi 0, %s30
    %s24 = sphi 0, %s22
    %s25 = sphi 0, %s23
    %s26 = sphi 0, %s24
    %s27 = sphi 0, %s25
    %s39 = sphi 0, %s41
    %s42 = sphi 0, %s39
    %s43 = sphi 0, %s42
    %s59 = sphi 0, %s43
    %s67 = sphi 0, %s69
    %s70 = sphi 0, %s67
    %s71 = sphi 0, %s70
    %s87 = sphi 0, %s71
    %s95 = sphi 0, %s97
    %s98 = sphi 0, %s95
    %s99 = sphi 0, %s98
    %s115 = sphi 0, %s99
    %s119 = sphi 0, %s119
    %s121 = sphi 0, %s119
    %s122 = sphi 0, %s121
    %s136 = sphi 0, %s122
    %s140 = sphi 0, %s140
    %s142 = sphi 0, %s140
    %s143 = sphi 0, %s142
    %s157 = sphi 0, %s143
    %s161 = sphi 0, %s161
    %s163 = sphi 0, %s161
    %s164 = sphi 0, %s163
    %s178 = sphi 0, %s164
    %s186 = sphi 0, %s188
    %s189 = sphi 0, %s186
    %s190 = sphi 0, %s189
    %s206 = sphi 0, %s190
    %s214 = sphi 0, %s216
    %s217 = sphi 0, %s214
    %s218 = sphi 0, %s217
    %s234 = sphi 0, %s218
    %s242 = sphi 0, %s244
    %s245 = sphi 0, %s242
    %s246 = sphi 0, %s245
    %s262 = sphi 0, %s246
  $region4: #{double_conv_forward.3} parent=0 // loop_header_branch
    %18 = sbr.rel (%p16) target = $region8
  $region5: #{double_conv_forward.3} parent=0 // loop_body
    %s20 = ssub.s32 %s15, 1
    %s21 = ssub.s32 %s15, 2
    %s28 = sadd.s32 1, %s23
    %p29 = scmp.ge.s32.totalorder %s28, 2
    %s30 = scalar_select %p29, 0, %s28
    %s31 = sadd.s32 1, %s22
    %s32 = scalar_select %p29, %s31, %s22
    %p33 = scmp.ge.s32.totalorder %s32, 2
    %s34 = scalar_select %p33, 0, %s32
    %s35 = ssub.s32 %s22, %s34
    %s36 = ssub.s32 %s23, %s30
    %s37 = sor.u32 %s35, %s36
    %p38 = scmp.eq.s32.totalorder %s37, 0
    %s40 = sadd.s32 %s39, 1
    %s41 = scalar_select %p38, %s39, %s40
    %p44 = pneg %p38
    %p45 = scmp.eq.s32.totalorder %s15, 3
    %p46 = por %p44, %p45
    %p47 = scmp.ne.s32.totalorder %s39, %s42
    %p48 = scmp.eq.s32.totalorder %s15, 0
    %p49 = por %p47, %p48
    %p50 = scmp.ne.s32.totalorder %s39, %s42
    %p51 = scmp.eq.s32.totalorder %s20, 3
    %p52 = por %p50, %p51
    %p53 = scmp.ne.s32.totalorder %s42, %s43
    %p54 = scmp.eq.s32.totalorder %s20, 0
    %p55 = por %p53, %p54
    %p56 = scmp.ne.s32.totalorder %s42, %s43
    %p57 = scmp.eq.s32.totalorder %s21, 3
    %p58 = por %p56, %p57
    %p60 = scmp.ne.s32.totalorder %s43, %s59
    %p61 = scmp.eq.s32.totalorder %s21, 0
    %p62 = por %p60, %p61
    %s63 = ssub.s32 %s22, %s34
    %s64 = ssub.s32 %s23, %s30
    %s65 = sor.u32 %s63, %s64
    %p66 = scmp.eq.s32.totalorder %s65, 0
    %s68 = sadd.s32 %s67, 1
    %s69 = scalar_select %p66, %s67, %s68
    %p72 = pneg %p66
    %p73 = scmp.eq.s32.totalorder %s15, 3
    %p74 = por %p72, %p73
    %p75 = scmp.ne.s32.totalorder %s67, %s70
    %p76 = scmp.eq.s32.totalorder %s15, 0
    %p77 = por %p75, %p76
    %p78 = scmp.ne.s32.totalorder %s67, %s70
    %p79 = scmp.eq.s32.totalorder %s20, 3
    %p80 = por %p78, %p79
    %p81 = scmp.ne.s32.totalorder %s70, %s71
    %p82 = scmp.eq.s32.totalorder %s20, 0
    %p83 = por %p81, %p82
    %p84 = scmp.ne.s32.totalorder %s70, %s71
    %p85 = scmp.eq.s32.totalorder %s21, 3
    %p86 = por %p84, %p85
    %p88 = scmp.ne.s32.totalorder %s71, %s87
    %p89 = scmp.eq.s32.totalorder %s21, 0
    %p90 = por %p88, %p89
    %s91 = ssub.s32 %s22, %s34
    %s92 = ssub.s32 %s23, %s30
    %s93 = sor.u32 %s91, %s92
    %p94 = scmp.eq.s32.totalorder %s93, 0
    %s96 = sadd.s32 %s95, 1
    %s97 = scalar_select %p94, %s95, %s96
    %p100 = pneg %p94
    %p101 = scmp.eq.s32.totalorder %s15, 3
    %p102 = por %p100, %p101
    %p103 = scmp.ne.s32.totalorder %s95, %s98
    %p104 = scmp.eq.s32.totalorder %s15, 0
    %p105 = por %p103, %p104
    %p106 = scmp.ne.s32.totalorder %s95, %s98
    %p107 = scmp.eq.s32.totalorder %s20, 3
    %p108 = por %p106, %p107
    %p109 = scmp.ne.s32.totalorder %s98, %s99
    %p110 = scmp.eq.s32.totalorder %s20, 0
    %p111 = por %p109, %p110
    %p112 = scmp.ne.s32.totalorder %s98, %s99
    %p113 = scmp.eq.s32.totalorder %s21, 3
    %p114 = por %p112, %p113
    %p116 = scmp.ne.s32.totalorder %s99, %s115
    %p117 = scmp.eq.s32.totalorder %s21, 0
    %p118 = por %p116, %p117
    %s120 = sadd.s32 %s119, 1
    %p123 = scmp.eq.s32.totalorder %s15, 3
    %p124 = scmp.ne.s32.totalorder %s119, %s121
    %p125 = scmp.eq.s32.totalorder %s15, 0
    %p126 = por %p124, %p125
    %p127 = scmp.ne.s32.totalorder %s119, %s121
    %p128 = scmp.eq.s32.totalorder %s20, 3
    %p129 = por %p127, %p128
    %p130 = scmp.ne.s32.totalorder %s121, %s122
    %p131 = scmp.eq.s32.totalorder %s20, 0
    %p132 = por %p130, %p131
    %p133 = scmp.ne.s32.totalorder %s121, %s122
    %p134 = scmp.eq.s32.totalorder %s21, 3
    %p135 = por %p133, %p134
    %p137 = scmp.ne.s32.totalorder %s122, %s136
    %p138 = scmp.eq.s32.totalorder %s21, 0
    %p139 = por %p137, %p138
    %s141 = sadd.s32 %s140, 1
    %p144 = scmp.eq.s32.totalorder %s15, 3
    %p145 = scmp.ne.s32.totalorder %s140, %s142
    %p146 = scmp.eq.s32.totalorder %s15, 0
    %p147 = por %p145, %p146
    %p148 = scmp.ne.s32.totalorder %s140, %s142
    %p149 = scmp.eq.s32.totalorder %s20, 3
    %p150 = por %p148, %p149
    %p151 = scmp.ne.s32.totalorder %s142, %s143
    %p152 = scmp.eq.s32.totalorder %s20, 0
    %p153 = por %p151, %p152
    %p154 = scmp.ne.s32.totalorder %s142, %s143
    %p155 = scmp.eq.s32.totalorder %s21, 3
    %p156 = por %p154, %p155
    %p158 = scmp.ne.s32.totalorder %s143, %s157
    %p159 = scmp.eq.s32.totalorder %s21, 0
    %p160 = por %p158, %p159
    %s162 = sadd.s32 %s161, 1
    %p165 = scmp.eq.s32.totalorder %s15, 3
    %p166 = scmp.ne.s32.totalorder %s161, %s163
    %p167 = scmp.eq.s32.totalorder %s15, 0
    %p168 = por %p166, %p167
    %p169 = scmp.ne.s32.totalorder %s161, %s163
    %p170 = scmp.eq.s32.totalorder %s20, 3
    %p171 = por %p169, %p170
    %p172 = scmp.ne.s32.totalorder %s163, %s164
    %p173 = scmp.eq.s32.totalorder %s20, 0
    %p174 = por %p172, %p173
    %p175 = scmp.ne.s32.totalorder %s163, %s164
    %p176 = scmp.eq.s32.totalorder %s21, 3
    %p177 = por %p175, %p176
    %p179 = scmp.ne.s32.totalorder %s164, %s178
    %p180 = scmp.eq.s32.totalorder %s21, 0
    %p181 = por %p179, %p180
    %s182 = ssub.s32 %s22, %s34
    %s183 = ssub.s32 %s23, %s30
    %s184 = sor.u32 %s182, %s183
    %p185 = scmp.eq.s32.totalorder %s184, 0
    %s187 = sadd.s32 %s186, 1
    %s188 = scalar_select %p185, %s186, %s187
    %p191 = pneg %p185
    %p192 = scmp.eq.s32.totalorder %s15, 3
    %p193 = por %p191, %p192
    %p194 = scmp.ne.s32.totalorder %s186, %s189
    %p195 = scmp.eq.s32.totalorder %s15, 0
    %p196 = por %p194, %p195
    %p197 = scmp.ne.s32.totalorder %s186, %s189
    %p198 = scmp.eq.s32.totalorder %s20, 3
    %p199 = por %p197, %p198
    %p200 = scmp.ne.s32.totalorder %s189, %s190
    %p201 = scmp.eq.s32.totalorder %s20, 0
    %p202 = por %p200, %p201
    %p203 = scmp.ne.s32.totalorder %s189, %s190
    %p204 = scmp.eq.s32.totalorder %s21, 3
    %p205 = por %p203, %p204
    %p207 = scmp.ne.s32.totalorder %s190, %s206
    %p208 = scmp.eq.s32.totalorder %s21, 0
    %p209 = por %p207, %p208
    %s210 = ssub.s32 %s22, %s34
    %s211 = ssub.s32 %s23, %s30
    %s212 = sor.u32 %s210, %s211
    %p213 = scmp.eq.s32.totalorder %s212, 0
    %s215 = sadd.s32 %s214, 1
    %s216 = scalar_select %p213, %s214, %s215
    %p219 = pneg %p213
    %p220 = scmp.eq.s32.totalorder %s15, 3
    %p221 = por %p219, %p220
    %p222 = scmp.ne.s32.totalorder %s214, %s217
    %p223 = scmp.eq.s32.totalorder %s15, 0
    %p224 = por %p222, %p223
    %p225 = scmp.ne.s32.totalorder %s214, %s217
    %p226 = scmp.eq.s32.totalorder %s20, 3
    %p227 = por %p225, %p226
    %p228 = scmp.ne.s32.totalorder %s217, %s218
    %p229 = scmp.eq.s32.totalorder %s20, 0
    %p230 = por %p228, %p229
    %p231 = scmp.ne.s32.totalorder %s217, %s218
    %p232 = scmp.eq.s32.totalorder %s21, 3
    %p233 = por %p231, %p232
    %p235 = scmp.ne.s32.totalorder %s218, %s234
    %p236 = scmp.eq.s32.totalorder %s21, 0
    %p237 = por %p235, %p236
    %s238 = ssub.s32 %s22, %s34
    %s239 = ssub.s32 %s23, %s30
    %s240 = sor.u32 %s238, %s239
    %p241 = scmp.eq.s32.totalorder %s240, 0
    %s243 = sadd.s32 %s242, 1
    %s244 = scalar_select %p241, %s242, %s243
    %p247 = pneg %p241
    %p248 = scmp.eq.s32.totalorder %s15, 3
    %p249 = por %p247, %p248
    %p250 = scmp.ne.s32.totalorder %s242, %s245
    %p251 = scmp.eq.s32.totalorder %s15, 0
    %p252 = por %p250, %p251
    %p253 = scmp.ne.s32.totalorder %s242, %s245
    %p254 = scmp.eq.s32.totalorder %s20, 3
    %p255 = por %p253, %p254
    %p256 = scmp.ne.s32.totalorder %s245, %s246
    %p257 = scmp.eq.s32.totalorder %s20, 0
    %p258 = por %p256, %p257
    %p259 = scmp.ne.s32.totalorder %s245, %s246
    %p260 = scmp.eq.s32.totalorder %s21, 3
    %p261 = por %p259, %p260
    %p263 = scmp.ne.s32.totalorder %s246, %s262
    %p264 = scmp.eq.s32.totalorder %s21, 0
    %p265 = por %p263, %p264
    %p266 = scmp.le.s32.totalorder 1, %s15
    %p267 = scmp.lt.s32.totalorder %s15, 5
    %p268 = pnand %p266, %p267
    %p269 = pneg %p268
    // Predicated region
    $region9: #{double_conv_forward.3} parent=5 // pred_check
      _
    $region10: #{double_conv_forward.3} parent=5 // pred_check_branch
      %271 = sbr.rel (%p268) target = $region12
    $region11: #{double_conv_forward.3} parent=5 // pred_region
      %s272 = ssub.s32 %s15, 1
      // Predicated region
      $region13: #{double_conv_forward.3} parent=11 // pred_check
        %p273 = pneg %p132
      $region14: #{double_conv_forward.3} parent=11 // pred_check_branch
        %275 = sbr.rel (%p273) target = $region16
      $region15: #{double_conv_forward.3} parent=11 // pred_region
        _
      $region16: #{double_conv_forward.3} parent=11 // pred_fallthru
        _
      // Predicated region
      $region17: #{double_conv_forward.3} parent=11 // pred_check
        %p276 = pneg %p153
      $region18: #{double_conv_forward.3} parent=11 // pred_check_branch
        %278 = sbr.rel (%p276) target = $region20
      $region19: #{double_conv_forward.3} parent=11 // pred_region
        _
      $region20: #{double_conv_forward.3} parent=11 // pred_fallthru
        _
      // Predicated region
      $region21: #{double_conv_forward.3} parent=11 // pred_check
        %p279 = pneg %p174
      $region22: #{double_conv_forward.3} parent=11 // pred_check_branch
        %281 = sbr.rel (%p279) target = $region24
      $region23: #{double_conv_forward.3} parent=11 // pred_region
        _
      $region24: #{double_conv_forward.3} parent=11 // pred_fallthru
        _
    $region12: #{double_conv_forward.3} parent=5 // pred_fallthru
      _
    %p282 = scmp.lt.s32.totalorder %s15, 4
    // Predicated region
    $region25: #{double_conv_forward.3} parent=5 // pred_check
      %p283 = pneg %p282
    $region26: #{double_conv_forward.3} parent=5 // pred_check_branch
      %285 = sbr.rel (%p283) target = $region28
    $region27: #{double_conv_forward.3} parent=5 // pred_region
      // Predicated region
      $region29: #{double_conv_forward.3} parent=27 // pred_check
        %p286 = pneg %p49
      $region30: #{double_conv_forward.3} parent=27 // pred_check_branch
        %288 = sbr.rel (%p286) target = $region32
      $region31: #{double_conv_forward.3} parent=27 // pred_region
        %s289 = smul.u32 8, %s23
        %p290 = scmp.lt.s32.totalorder %s22, 1
        %s291 = scalar_select %p290, %s22, 1
        %p292 = scmp.lt.s32.totalorder %s289, 15
        %s293 = scalar_select %p292, %s289, 15
        %s294 = smul.addr %s293, 2
        %s295 = smul.addr %s291, 32
        %s296 = sadd.s32 %s294, %s295
        %s297 = smul.addr %s296, 4
        %s298 = scalar_lea.vmem %s0, %s297
        %s299 = smul.u32 8, %s23
      $region32: #{double_conv_forward.3} parent=27 // pred_fallthru
        _
      // Predicated region
      $region33: #{double_conv_forward.3} parent=27 // pred_check
        %p300 = pneg %p77
      $region34: #{double_conv_forward.3} parent=27 // pred_check_branch
        %302 = sbr.rel (%p300) target = $region36
      $region35: #{double_conv_forward.3} parent=27 // pred_region
        %p303 = scmp.lt.s32.totalorder %s22, 1
        %s304 = scalar_select %p303, %s22, 1
        %p305 = scmp.lt.s32.totalorder %s23, 1
        %s306 = scalar_select %p305, %s23, 1
        %s307 = smul.addr %s306, 2
        %s308 = smul.addr %s304, 4
        %s309 = sadd.s32 %s307, %s308
        %s310 = smul.addr %s309, 4
        %s311 = scalar_lea.vmem %s1, %s310
      $region36: #{double_conv_forward.3} parent=27 // pred_fallthru
        _
      // Predicated region
      $region37: #{double_conv_forward.3} parent=27 // pred_check
        %p312 = pneg %p105
      $region38: #{double_conv_forward.3} parent=27 // pred_check_branch
        %314 = sbr.rel (%p312) target = $region40
      $region39: #{double_conv_forward.3} parent=27 // pred_region
        %p315 = scmp.lt.s32.totalorder %s22, 1
        %s316 = scalar_select %p315, %s22, 1
        %p317 = scmp.lt.s32.totalorder %s23, 1
        %s318 = scalar_select %p317, %s23, 1
        %s319 = smul.addr %s318, 2
        %s320 = smul.addr %s316, 4
        %s321 = sadd.s32 %s319, %s320
        %s322 = smul.addr %s321, 4
        %s323 = scalar_lea.vmem %s2, %s322
      $region40: #{double_conv_forward.3} parent=27 // pred_fallthru
        _
    $region28: #{double_conv_forward.3} parent=5 // pred_fallthru
      _
    %p324 = scmp.le.s32.totalorder 1, %s15
    %p325 = scmp.lt.s32.totalorder %s15, 5
    %p326 = pnand %p324, %p325
    %p327 = pneg %p326
    // Predicated region
    $region41: #{double_conv_forward.3} parent=5 // pred_check
      _
    $region42: #{double_conv_forward.3} parent=5 // pred_check_branch
      %329 = sbr.rel (%p326) target = $region44
    $region43: #{double_conv_forward.3} parent=5 // pred_region
      %s330 = ssub.s32 %s15, 1
      %s331 = smul.u32 8, %s25
      %p332 = scmp.lt.s32.totalorder %s24, 1
      %s333 = scalar_select %p332, %s24, 1
      %p334 = scmp.lt.s32.totalorder %s331, 15
      %s335 = scalar_select %p334, %s331, 15
      %s336 = smul.addr %s335, 2
      %s337 = smul.addr %s333, 32
      %s338 = sadd.s32 %s336, %s337
      %s339 = smul.addr %s338, 4
      %s340 = scalar_lea.vmem %s0, %s339
      %p341 = pneg %p55
      %p342 = pneg %p52
      %p343 = scmp.lt.s32.totalorder %s24, 1
      %s344 = scalar_select %p343, %s24, 1
      %p345 = scmp.lt.s32.totalorder %s25, 1
      %s346 = scalar_select %p345, %s25, 1
      %s347 = smul.addr %s346, 2
      %s348 = smul.addr %s344, 4
      %s349 = sadd.s32 %s347, %s348
      %s350 = smul.addr %s349, 4
      %s351 = scalar_lea.vmem %s1, %s350
      %p352 = pneg %p83
      %p353 = pneg %p80
      %p354 = scmp.lt.s32.totalorder %s24, 1
      %s355 = scalar_select %p354, %s24, 1
      %p356 = scmp.lt.s32.totalorder %s25, 1
      %s357 = scalar_select %p356, %s25, 1
      %s358 = smul.addr %s357, 2
      %s359 = smul.addr %s355, 4
      %s360 = sadd.s32 %s358, %s359
      %s361 = smul.addr %s360, 4
      %s362 = scalar_lea.vmem %s2, %s361
      %p363 = pneg %p111
      %p364 = pneg %p108
      %p365 = pneg %p132
      %p366 = pneg %p129
      %p367 = pneg %p153
      %p368 = pneg %p150
      %p369 = pneg %p174
      %p370 = pneg %p171
      %p371 = pneg %p202
      %p372 = pneg %p199
      %s373 = smul.u32 8, %s25
      %p374 = scmp.lt.s32.totalorder %s24, 1
      %s375 = scalar_select %p374, %s24, 1
      %p376 = scmp.lt.s32.totalorder %s373, 15
      %s377 = scalar_select %p376, %s373, 15
      %s378 = smul.addr %s377, 2
      %s379 = smul.addr %s375, 32
      %s380 = sadd.s32 %s378, %s379
      %s381 = smul.addr %s380, 4
      %s382 = scalar_lea.vmem %s6, %s381
      %p383 = pneg %p230
      %p384 = pneg %p227
      %p385 = scmp.lt.s32.totalorder %s24, 1
      %s386 = scalar_select %p385, %s24, 1
      %p387 = scmp.lt.s32.totalorder %s25, 1
      %s388 = scalar_select %p387, %s25, 1
      %s389 = smul.addr %s386, 2
      %s390 = sadd.s32 %s388, %s389
      %s391 = scalar_lea.vmem %s7, %s390
      %p392 = pneg %p258
      %p393 = pneg %p255
      %p394 = scmp.lt.s32.totalorder %s24, 1
      %s395 = scalar_select %p394, %s24, 1
      %p396 = scmp.lt.s32.totalorder %s25, 1
      %s397 = scalar_select %p396, %s25, 1
      %s398 = smul.addr %s395, 2
      %s399 = sadd.s32 %s397, %s398
      %s400 = scalar_lea.vmem %s8, %s399
      %s401 = smul.u32 8, %s25
      %p402 = scmp.lt.s32.totalorder %s24, 1
      %s403 = scalar_select %p402, %s24, 1
      %p404 = scmp.lt.s32.totalorder %s401, 15
      %s405 = scalar_select %p404, %s401, 15
      %s406 = smul.addr %s405, 2
      %s407 = smul.addr %s403, 32
      %s408 = sadd.s32 %s406, %s407
      %s409 = smul.addr %s408, 4
      %s410 = scalar_lea.vmem %s0, %s409
      %s411 = smul.u32 8, %s25
      %p412 = scmp.lt.s32.totalorder %s24, 1
      %s413 = scalar_select %p412, %s24, 1
      %p414 = scmp.lt.s32.totalorder %s25, 1
      %s415 = scalar_select %p414, %s25, 1
      %s416 = smul.addr %s415, 2
      %s417 = smul.addr %s413, 4
      %s418 = sadd.s32 %s416, %s417
      %s419 = smul.addr %s418, 4
      %s420 = scalar_lea.vmem %s1, %s419
      %p421 = scmp.lt.s32.totalorder %s24, 1
      %s422 = scalar_select %p421, %s24, 1
      %p423 = scmp.lt.s32.totalorder %s25, 1
      %s424 = scalar_select %p423, %s25, 1
      %s425 = smul.addr %s424, 2
      %s426 = smul.addr %s422, 4
      %s427 = sadd.s32 %s425, %s426
      %s428 = smul.addr %s427, 4
      %s429 = scalar_lea.vmem %s2, %s428
      %s430 = smul.u32 8, %s25
      %p431 = scmp.lt.s32.totalorder %s24, 1
      %s432 = scalar_select %p431, %s24, 1
      %p433 = scmp.lt.s32.totalorder %s430, 15
      %s434 = scalar_select %p433, %s430, 15
      %s435 = smul.addr %s434, 2
      %s436 = smul.addr %s432, 32
      %s437 = sadd.s32 %s435, %s436
      %s438 = smul.addr %s437, 4
      %s439 = scalar_lea.vmem %s6, %s438
      %s440 = smul.u32 8, %s25
      %p441 = scmp.lt.s32.totalorder %s24, 1
      %s442 = scalar_select %p441, %s24, 1
      %p443 = scmp.lt.s32.totalorder %s25, 1
      %s444 = scalar_select %p443, %s25, 1
      %s445 = smul.addr %s442, 2
      %s446 = sadd.s32 %s444, %s445
      %s447 = scalar_lea.vmem %s7, %s446
      %p448 = scmp.lt.s32.totalorder %s24, 1
      %s449 = scalar_select %p448, %s24, 1
      %p450 = scmp.lt.s32.totalorder %s25, 1
      %s451 = scalar_select %p450, %s25, 1
      %s452 = smul.addr %s449, 2
      %s453 = sadd.s32 %s451, %s452
      %s454 = scalar_lea.vmem %s8, %s453
      %v456 = vld [vmem:[%s420] sm:$0xf]
      %v457 = vld [vmem:[%s420 + $0x4] sm:$0xf]
      %v458 = vunpack.c.l.bf16 %v456
      %v459 = vunpack.c.l.bf16 %v457
      %v460 = vld [vmem:[%s410] sm:$0xf]
      %v461 = vld [vmem:[%s410 + $0x4] sm:$0xf]
      %v462 = vld [vmem:[%s410 + $0x8] sm:$0xf]
      %v463 = vld [vmem:[%s410 + $0xc] sm:$0xf]
      %v464 = vld [vmem:[%s410 + $0x10] sm:$0xf]
      %v465 = vld [vmem:[%s410 + $0x14] sm:$0xf]
      %v466 = vld [vmem:[%s410 + $0x18] sm:$0xf]
      %v467 = vld [vmem:[%s410 + $0x1c] sm:$0xf]
      %v468 = vld [vmem:[%s410 + $0x20] sm:$0xf]
      %v469 = vld [vmem:[%s410 + $0x24] sm:$0xf]
      %v470 = vld [vmem:[%s410 + $0x28] sm:$0xf]
      %v471 = vld [vmem:[%s410 + $0x2c] sm:$0xf]
      %v472 = vld [vmem:[%s410 + $0x30] sm:$0xf]
      %v473 = vld [vmem:[%s410 + $0x34] sm:$0xf]
      %v474 = vld [vmem:[%s410 + $0x38] sm:$0xf]
      %v475 = vld [vmem:[%s410 + $0x3c] sm:$0xf]
      %v476 = vunpack.c.l.bf16 %v460
      %v477 = vunpack.c.l.bf16 %v461
      %v478 = vunpack.c.l.bf16 %v462
      %v479 = vunpack.c.l.bf16 %v463
      %v480 = vunpack.c.l.bf16 %v464
      %v481 = vunpack.c.l.bf16 %v465
      %v482 = vunpack.c.l.bf16 %v466
      %v483 = vunpack.c.l.bf16 %v467
      %v484 = vunpack.c.l.bf16 %v468
      %v485 = vunpack.c.l.bf16 %v469
      %v486 = vunpack.c.l.bf16 %v470
      %v487 = vunpack.c.l.bf16 %v471
      %v488 = vunpack.c.l.bf16 %v472
      %v489 = vunpack.c.l.bf16 %v473
      %v490 = vunpack.c.l.bf16 %v474
      %v491 = vunpack.c.l.bf16 %v475
      %v492 = vld [vmem:[%s429] sm:$0xf]
      %v493 = vld [vmem:[%s429 + $0x4] sm:$0xf]
      %v494 = vunpack.c.l.bf16 %v492
      %v495 = vunpack.c.l.bf16 %v493
      %vm496 = vcmask 24576
      %497 = vst.msk [vmem:[#allocation2 + $0x7] sm:$0x1] %vm496, 0.0
      %498 = vst.msk [vmem:[#allocation2 + $0x27] sm:$0x1] %vm496, 0.0
      %499 = vst.msk [vmem:[#allocation2 + $0x47] sm:$0x1] %vm496, 0.0
      %500 = vst.msk [vmem:[#allocation2 + $0x67] sm:$0x1] %vm496, 0.0
      %501 = vst.msk [vmem:[#allocation2 + $0x87] sm:$0x1] %vm496, 0.0
      %502 = vst.msk [vmem:[#allocation2 + $0xa7] sm:$0x1] %vm496, 0.0
      %503 = vst.msk [vmem:[#allocation2 + $0xc7] sm:$0x1] %vm496, 0.0
      %504 = vst.msk [vmem:[#allocation2 + $0xe7] sm:$0x1] %vm496, 0.0
      %505 = vst.msk [vmem:[#allocation2 + $0x107] sm:$0x1] %vm496, 0.0
      %506 = vst.msk [vmem:[#allocation2 + $0x127] sm:$0x1] %vm496, 0.0
      %507 = vst.msk [vmem:[#allocation2 + $0x18] sm:$0x1] %vm496, 0.0
      %508 = vst.msk [vmem:[#allocation2 + $0x38] sm:$0x1] %vm496, 0.0
      %509 = vst.msk [vmem:[#allocation2 + $0x58] sm:$0x1] %vm496, 0.0
      %510 = vst.msk [vmem:[#allocation2 + $0x78] sm:$0x1] %vm496, 0.0
      %511 = vst.msk [vmem:[#allocation2 + $0x98] sm:$0x1] %vm496, 0.0
      %512 = vst.msk [vmem:[#allocation2 + $0xb8] sm:$0x1] %vm496, 0.0
      %513 = vst.msk [vmem:[#allocation2 + $0xd8] sm:$0x1] %vm496, 0.0
      %514 = vst.msk [vmem:[#allocation2 + $0xf8] sm:$0x1] %vm496, 0.0
      %515 = vst.msk [vmem:[#allocation2 + $0x118] sm:$0x1] %vm496, 0.0
      %516 = vst.msk [vmem:[#allocation2 + $0x138] sm:$0x1] %vm496, 0.0
      %vm517 = vcmask 31744
      %518 = vst.msk [vmem:[#allocation2 + $0x8] sm:$0xff] %vm517, %v458
      %519 = vst.msk [vmem:[#allocation2 + $0x10] sm:$0xff] %vm517, %v459
      %s520 = scalar_lea.vmem [#allocation2], 32
      %521 = vst.msk [vmem:[%s520 + $0x8] sm:$0xff] %vm517, %v476
      %522 = vst.msk [vmem:[%s520 + $0x10] sm:$0xff] %vm517, %v477
      %523 = vst.msk [vmem:[%s520 + $0x28] sm:$0xff] %vm517, %v478
      %524 = vst.msk [vmem:[%s520 + $0x30] sm:$0xff] %vm517, %v479
      %525 = vst.msk [vmem:[%s520 + $0x48] sm:$0xff] %vm517, %v480
      %526 = vst.msk [vmem:[%s520 + $0x50] sm:$0xff] %vm517, %v481
      %527 = vst.msk [vmem:[%s520 + $0x68] sm:$0xff] %vm517, %v482
      %528 = vst.msk [vmem:[%s520 + $0x70] sm:$0xff] %vm517, %v483
      %529 = vst.msk [vmem:[%s520 + $0x88] sm:$0xff] %vm517, %v484
      %530 = vst.msk [vmem:[%s520 + $0x90] sm:$0xff] %vm517, %v485
      %531 = vst.msk [vmem:[%s520 + $0xa8] sm:$0xff] %vm517, %v486
      %532 = vst.msk [vmem:[%s520 + $0xb0] sm:$0xff] %vm517, %v487
      %533 = vst.msk [vmem:[%s520 + $0xc8] sm:$0xff] %vm517, %v488
      %534 = vst.msk [vmem:[%s520 + $0xd0] sm:$0xff] %vm517, %v489
      %535 = vst.msk [vmem:[%s520 + $0xe8] sm:$0xff] %vm517, %v490
      %536 = vst.msk [vmem:[%s520 + $0xf0] sm:$0xff] %vm517, %v491
      %s537 = scalar_lea.vmem [#allocation2], 288
      %538 = vst.msk [vmem:[%s537 + $0x8] sm:$0xff] %vm517, %v494
      %539 = vst.msk [vmem:[%s537 + $0x10] sm:$0xff] %vm517, %v495
      %v540 = vld [vmem:[#allocation2 + $0x7] sm:$0xff]
      %v541 = vld [vmem:[#allocation2 + $0xf] sm:$0xff]
      %v542 = vld [vmem:[#allocation2 + $0x27] sm:$0xff]
      %v543 = vld [vmem:[#allocation2 + $0x2f] sm:$0xff]
      %v544 = vld [vmem:[#allocation2 + $0x47] sm:$0xff]
      %v545 = vld [vmem:[#allocation2 + $0x4f] sm:$0xff]
      %v546 = vld [vmem:[#allocation2 + $0x67] sm:$0xff]
      %v547 = vld [vmem:[#allocation2 + $0x6f] sm:$0xff]
      %v548 = vld [vmem:[#allocation2 + $0x87] sm:$0xff]
      %v549 = vld [vmem:[#allocation2 + $0x8f] sm:$0xff]
      %v550 = vld [vmem:[#allocation2 + $0xa7] sm:$0xff]
      %v551 = vld [vmem:[#allocation2 + $0xaf] sm:$0xff]
      %v552 = vld [vmem:[#allocation2 + $0xc7] sm:$0xff]
      %v553 = vld [vmem:[#allocation2 + $0xcf] sm:$0xff]
      %v554 = vld [vmem:[#allocation2 + $0xe7] sm:$0xff]
      %v555 = vld [vmem:[#allocation2 + $0xef] sm:$0xff]
      %v556 = vld [vmem:[#allocation2 + $0x107] sm:$0xff]
      %v557 = vld [vmem:[#allocation2 + $0x10f] sm:$0xff]
      %v558 = vld [vmem:[#allocation2 + $0x127] sm:$0xff]
      %v559 = vld [vmem:[#allocation2 + $0x12f] sm:$0xff]
      %v560 = vpack.c.bf16 %v541, %v540
      %v561 = vpack.c.bf16 %v543, %v542
      %v562 = vpack.c.bf16 %v545, %v544
      %v563 = vpack.c.bf16 %v547, %v546
      %v564 = vpack.c.bf16 %v549, %v548
      %v565 = vpack.c.bf16 %v551, %v550
      %v566 = vpack.c.bf16 %v553, %v552
      %v567 = vpack.c.bf16 %v555, %v554
      %v568 = vld [vmem:[%s3] sm:$0x3]
      %v569 = vpack.c.bf16 %v557, %v556
      %s570 = scalar_lea.vmem %s3, 6
      %v571 = vld [vmem:[%s570] sm:$0x3]
      %v573 = vsel %vm517, %v561, 0
      %v576 = vsel %vm517, %v562, 0
      %v579 = vsel %vm517, %v563, 0
      %v582 = vsel %vm517, %v564, 0
      %v585 = vsel %vm517, %v565, 0
      %v588 = vsel %vm517, %v566, 0
      %v591 = vsel %vm517, %v567, 0
      %v594 = vsel %vm517, %v569, 0
      %vm596 = vcmask 1041408
      %v598 = vsel %vm596, %v571, 0
      %600 = vmatprep.subr.bf16.mxu0 0
      %601 = vmatpush1.bf16.msra.mxu0 %v598
      %602 = vmatprep.subr.bf16.mxu0 0
      %603 = vmatpush1.bf16.msra.mxu0 0
      %604 = vmatprep.subr.bf16.mxu0 0
      %605 = vmatpush1.bf16.msra.mxu0 0
      %606 = vmatprep.subr.bf16.mxu0 0
      %607 = vmatpush1.bf16.msra.mxu0 0
      %608 = vmatprep.subr.bf16.mxu0 0
      %609 = vmatpush1.bf16.msra.mxu0 0
      %610 = vmatprep.subr.bf16.mxu0 0
      %611 = vmatpush1.bf16.msra.mxu0 0
      %612 = vmatprep.subr.bf16.mxu0 0
      %613 = vmatpush1.bf16.msra.mxu0 0
      %614 = vmatprep.subr.bf16.mxu0 0
      %615 = vmatpush1.bf16.msra.mxu0 0
      %616 = vmatprep.subr.bf16.mxu0 0
      %617 = vmatpush1.bf16.msra.mxu0 0
      %618 = vmatprep.subr.bf16.mxu0 0
      %619 = vmatpush1.bf16.msra.mxu0 0
      %620 = vmatprep.subr.bf16.mxu0 0
      %621 = vmatpush1.bf16.msra.mxu0 0
      %622 = vmatprep.subr.bf16.mxu0 0
      %623 = vmatpush1.bf16.msra.mxu0 0
      %624 = vmatprep.subr.bf16.mxu0 0
      %625 = vmatpush1.bf16.msra.mxu0 0
      %626 = vmatprep.subr.bf16.mxu0 0
      %627 = vmatpush1.bf16.msra.mxu0 0
      %628 = vmatprep.subr.bf16.mxu0 0
      %629 = vmatpush1.bf16.msra.mxu0 0
      %630 = vmatprep.subr.bf16.mxu0 0
      %631 = vmatpush1.bf16.msra.mxu0 0
      %632 = vmatprep.mubr.bf16.mxu0 0
      %633 = vmatmul.mubr.bf16.gmra.mrb[0].mxu0 %v573
      %v634 = vpop.f32.mrb[0].mxu0
      %v635 = vadd.f32 0.0, %v634
      %v636 = vpop.f32.mrb[0].mxu0
      %v637 = vpop.f32.mrb[0].mxu0
      %v638 = vadd.f32 0.0, %v637
      %v639 = vpop.f32.mrb[0].mxu0
      %640 = vmatprep.mubr.bf16.mxu0 0
      %641 = vmatmul.mubr.bf16.gmra.mrb[0].mxu0 %v576
      %v642 = vpop.f32.mrb[0].mxu0
      %v643 = vadd.f32 0.0, %v642
      %v644 = vpop.f32.mrb[0].mxu0
      %v645 = vpop.f32.mrb[0].mxu0
      %v646 = vadd.f32 0.0, %v645
      %v647 = vpop.f32.mrb[0].mxu0
      %648 = vmatprep.mubr.bf16.mxu0 0
      %649 = vmatmul.mubr.bf16.gmra.mrb[0].mxu0 %v579
      %v650 = vpop.f32.mrb[0].mxu0
      %v651 = vadd.f32 0.0, %v650
      %v652 = vpop.f32.mrb[0].mxu0
      %v653 = vpop.f32.mrb[0].mxu0
      %v654 = vadd.f32 0.0, %v653
      %v655 = vpop.f32.mrb[0].mxu0
      %656 = vmatprep.mubr.bf16.mxu0 0
      %657 = vmatmul.mubr.bf16.gmra.mrb[0].mxu0 %v582
      %v658 = vpop.f32.mrb[0].mxu0
      %v659 = vadd.f32 0.0, %v658
      %v660 = vpop.f32.mrb[0].mxu0
      %v661 = vpop.f32.mrb[0].mxu0
      %v662 = vadd.f32 0.0, %v661
      %v663 = vpop.f32.mrb[0].mxu0
      %664 = vmatprep.mubr.bf16.mxu0 0
      %665 = vmatmul.mubr.bf16.gmra.mrb[0].mxu0 %v585
      %v666 = vpop.f32.mrb[0].mxu0
      %v667 = vadd.f32 0.0, %v666
      %v668 = vpop.f32.mrb[0].mxu0
      %v669 = vpop.f32.mrb[0].mxu0
      %v670 = vadd.f32 0.0, %v669
      %v671 = vpop.f32.mrb[0].mxu0
      %672 = vmatprep.mubr.bf16.mxu0 0
      %673 = vmatmul.mubr.bf16.gmra.mrb[0].mxu0 %v588
      %v674 = vpop.f32.mrb[0].mxu0
      %v675 = vadd.f32 0.0, %v674
      %v676 = vpop.f32.mrb[0].mxu0
      %v677 = vpop.f32.mrb[0].mxu0
      %v678 = vadd.f32 0.0, %v677
      %v679 = vpop.f32.mrb[0].mxu0
      %680 = vmatprep.mubr.bf16.mxu0 0
      %681 = vmatmul.mubr.bf16.gmra.mrb[0].mxu0 %v591
      %v682 = vpop.f32.mrb[0].mxu0
      %v683 = vadd.f32 0.0, %v682
      %v684 = vpop.f32.mrb[0].mxu0
      %v685 = vpop.f32.mrb[0].mxu0
      %v686 = vadd.f32 0.0, %v685
      %v687 = vpop.f32.mrb[0].mxu0
      %688 = vmatprep.mubr.bf16.mxu0 0
      %689 = vmatmul.mubr.bf16.gmra.mrb[0].mxu0 %v594
      %v690 = vpop.f32.mrb[0].mxu0
      %v691 = vadd.f32 0.0, %v690
      %v692 = vpop.f32.mrb[0].mxu0
      %v693 = vpop.f32.mrb[0].mxu0
      %v694 = vadd.f32 0.0, %v693
      %v695 = vpop.f32.mrb[0].mxu0
      %696 = vdwg.mxu0
      %v698 = vsel %vm517, %v560, 0
      %v701 = vsel %vm596, %v568, 0
      %703 = vmatprep.subr.bf16.mxu0 0
      %704 = vmatpush1.bf16.msra.mxu0 %v701
      %705 = vmatprep.subr.bf16.mxu0 0
      %706 = vmatpush1.bf16.msra.mxu0 0
      %707 = vmatprep.subr.bf16.mxu0 0
      %708 = vmatpush1.bf16.msra.mxu0 0
      %709 = vmatprep.subr.bf16.mxu0 0
      %710 = vmatpush1.bf16.msra.mxu0 0
      %711 = vmatprep.subr.bf16.mxu0 0
      %712 = vmatpush1.bf16.msra.mxu0 0
      %713 = vmatprep.subr.bf16.mxu0 0
      %714 = vmatpush1.bf16.msra.mxu0 0
      %715 = vmatprep.subr.bf16.mxu0 0
      %716 = vmatpush1.bf16.msra.mxu0 0
      %717 = vmatprep.subr.bf16.mxu0 0
      %718 = vmatpush1.bf16.msra.mxu0 0
      %719 = vmatprep.subr.bf16.mxu0 0
      %720 = vmatpush1.bf16.msra.mxu0 0
      %721 = vmatprep.subr.bf16.mxu0 0
      %722 = vmatpush1.bf16.msra.mxu0 0
      %723 = vmatprep.subr.bf16.mxu0 0
      %724 = vmatpush1.bf16.msra.mxu0 0
      %725 = vmatprep.subr.bf16.mxu0 0
      %726 = vmatpush1.bf16.msra.mxu0 0
      %727 = vmatprep.subr.bf16.mxu0 0
      %728 = vmatpush1.bf16.msra.mxu0 0
      %729 = vmatprep.subr.bf16.mxu0 0
      %730 = vmatpush1.bf16.msra.mxu0 0
      %731 = vmatprep.subr.bf16.mxu0 0
      %732 = vmatpush1.bf16.msra.mxu0 0
      %733 = vmatprep.subr.bf16.mxu0 0
      %734 = vmatpush1.bf16.msra.mxu0 0
      %735 = vmatprep.mubr.bf16.mxu0 0
      %736 = vmatmul.mubr.bf16.gmra.mrb[0].mxu0 %v698
      %v737 = vpop.f32.mrb[0].mxu0
      %v738 = vadd.f32 %v635, %v737
      %v739 = vpop.f32.mrb[0].mxu0
      %v740 = vpop.f32.mrb[0].mxu0
      %v741 = vadd.f32 %v638, %v740
      %v742 = vpop.f32.mrb[0].mxu0
      %743 = vmatprep.mubr.bf16.mxu0 0
      %744 = vmatmul.mubr.bf16.gmra.mrb[0].mxu0 %v573
      %v745 = vpop.f32.mrb[0].mxu0
      %v746 = vadd.f32 %v643, %v745
      %v747 = vpop.f32.mrb[0].mxu0
      %v748 = vpop.f32.mrb[0].mxu0
      %v749 = vadd.f32 %v646, %v748
      %v750 = vpop.f32.mrb[0].mxu0
      %751 = vmatprep.mubr.bf16.mxu0 0
      %752 = vmatmul.mubr.bf16.gmra.mrb[0].mxu0 %v576
      %v753 = vpop.f32.mrb[0].mxu0
      %v754 = vadd.f32 %v651, %v753
      %v755 = vpop.f32.mrb[0].mxu0
      %v756 = vpop.f32.mrb[0].mxu0
      %v757 = vadd.f32 %v654, %v756
      %v758 = vpop.f32.mrb[0].mxu0
      %759 = vmatprep.mubr.bf16.mxu0 0
      %760 = vmatmul.mubr.bf16.gmra.mrb[0].mxu0 %v579
      %v761 = vpop.f32.mrb[0].mxu0
      %v762 = vadd.f32 %v659, %v761
      %v763 = vpop.f32.mrb[0].mxu0
      %v764 = vpop.f32.mrb[0].mxu0
      %v765 = vadd.f32 %v662, %v764
      %v766 = vpop.f32.mrb[0].mxu0
      %767 = vmatprep.mubr.bf16.mxu0 0
      %768 = vmatmul.mubr.bf16.gmra.mrb[0].mxu0 %v582
      %v769 = vpop.f32.mrb[0].mxu0
      %v770 = vadd.f32 %v667, %v769
      %v771 = vpop.f32.mrb[0].mxu0
      %v772 = vpop.f32.mrb[0].mxu0
      %v773 = vadd.f32 %v670, %v772
      %v774 = vpop.f32.mrb[0].mxu0
      %775 = vmatprep.mubr.bf16.mxu0 0
      %776 = vmatmul.mubr.bf16.gmra.mrb[0].mxu0 %v585
      %v777 = vpop.f32.mrb[0].mxu0
      %v778 = vadd.f32 %v675, %v777
      %v779 = vpop.f32.mrb[0].mxu0
      %v780 = vpop.f32.mrb[0].mxu0
      %v781 = vadd.f32 %v678, %v780
      %v782 = vpop.f32.mrb[0].mxu0
      %783 = vmatprep.mubr.bf16.mxu0 0
      %784 = vmatmul.mubr.bf16.gmra.mrb[0].mxu0 %v588
      %v785 = vpop.f32.mrb[0].mxu0
      %v786 = vadd.f32 %v683, %v785
      %v787 = vpop.f32.mrb[0].mxu0
      %v788 = vpop.f32.mrb[0].mxu0
      %v789 = vadd.f32 %v686, %v788
      %v790 = vpop.f32.mrb[0].mxu0
      %791 = vmatprep.mubr.bf16.mxu0 0
      %792 = vmatmul.mubr.bf16.gmra.mrb[0].mxu0 %v591
      %v793 = vpop.f32.mrb[0].mxu0
      %v794 = vadd.f32 %v691, %v793
      %v795 = vpop.f32.mrb[0].mxu0
      %v796 = vpop.f32.mrb[0].mxu0
      %v797 = vadd.f32 %v694, %v796
      %v798 = vpop.f32.mrb[0].mxu0
      %799 = vdwg.mxu0
      %v800 = vpack.c.bf16 %v559, %v558
      %s801 = scalar_lea.vmem %s3, 12
      %v802 = vld [vmem:[%s801] sm:$0x3]
      %v804 = vsel %vm517, %v800, 0
      %v807 = vsel %vm596, %v802, 0
      %809 = vmatprep.subr.bf16.mxu0 0
      %810 = vmatpush1.bf16.msra.mxu0 %v807
      %811 = vmatprep.subr.bf16.mxu0 0
      %812 = vmatpush1.bf16.msra.mxu0 0
      %813 = vmatprep.subr.bf16.mxu0 0
      %814 = vmatpush1.bf16.msra.mxu0 0
      %815 = vmatprep.subr.bf16.mxu0 0
      %816 = vmatpush1.bf16.msra.mxu0 0
      %817 = vmatprep.subr.bf16.mxu0 0
      %818 = vmatpush1.bf16.msra.mxu0 0
      %819 = vmatprep.subr.bf16.mxu0 0
      %820 = vmatpush1.bf16.msra.mxu0 0
      %821 = vmatprep.subr.bf16.mxu0 0
      %822 = vmatpush1.bf16.msra.mxu0 0
      %823 = vmatprep.subr.bf16.mxu0 0
      %824 = vmatpush1.bf16.msra.mxu0 0
      %825 = vmatprep.subr.bf16.mxu0 0
      %826 = vmatpush1.bf16.msra.mxu0 0
      %827 = vmatprep.subr.bf16.mxu0 0
      %828 = vmatpush1.bf16.msra.mxu0 0
      %829 = vmatprep.subr.bf16.mxu0 0
      %830 = vmatpush1.bf16.msra.mxu0 0
      %831 = vmatprep.subr.bf16.mxu0 0
      %832 = vmatpush1.bf16.msra.mxu0 0
      %833 = vmatprep.subr.bf16.mxu0 0
      %834 = vmatpush1.bf16.msra.mxu0 0
      %835 = vmatprep.subr.bf16.mxu0 0
      %836 = vmatpush1.bf16.msra.mxu0 0
      %837 = vmatprep.subr.bf16.mxu0 0
      %838 = vmatpush1.bf16.msra.mxu0 0
      %839 = vmatprep.subr.bf16.mxu0 0
      %840 = vmatpush1.bf16.msra.mxu0 0
      %841 = vmatprep.mubr.bf16.mxu0 0
      %842 = vmatmul.mubr.bf16.gmra.mrb[0].mxu0 %v576
      %v843 = vpop.f32.mrb[0].mxu0
      %v844 = vadd.f32 0.0, %v843
      %v845 = vpop.f32.mrb[0].mxu0
      %v846 = vpop.f32.mrb[0].mxu0
      %v847 = vadd.f32 0.0, %v846
      %v848 = vpop.f32.mrb[0].mxu0
      %849 = vmatprep.mubr.bf16.mxu0 0
      %850 = vmatmul.mubr.bf16.gmra.mrb[0].mxu0 %v579
      %v851 = vpop.f32.mrb[0].mxu0
      %v852 = vadd.f32 0.0, %v851
      %v853 = vpop.f32.mrb[0].mxu0
      %v854 = vpop.f32.mrb[0].mxu0
      %v855 = vadd.f32 0.0, %v854
      %v856 = vpop.f32.mrb[0].mxu0
      %857 = vmatprep.mubr.bf16.mxu0 0
      %858 = vmatmul.mubr.bf16.gmra.mrb[0].mxu0 %v582
      %v859 = vpop.f32.mrb[0].mxu0
      %v860 = vadd.f32 0.0, %v859
      %v861 = vpop.f32.mrb[0].mxu0
      %v862 = vpop.f32.mrb[0].mxu0
      %v863 = vadd.f32 0.0, %v862
      %v864 = vpop.f32.mrb[0].mxu0
      %865 = vmatprep.mubr.bf16.mxu0 0
      %866 = vmatmul.mubr.bf16.gmra.mrb[0].mxu0 %v585
      %v867 = vpop.f32.mrb[0].mxu0
      %v868 = vadd.f32 0.0, %v867
      %v869 = vpop.f32.mrb[0].mxu0
      %v870 = vpop.f32.mrb[0].mxu0
      %v871 = vadd.f32 0.0, %v870
      %v872 = vpop.f32.mrb[0].mxu0
      %873 = vmatprep.mubr.bf16.mxu0 0
      %874 = vmatmul.mubr.bf16.gmra.mrb[0].mxu0 %v588
      %v875 = vpop.f32.mrb[0].mxu0
      %v876 = vadd.f32 0.0, %v875
      %v877 = vpop.f32.mrb[0].mxu0
      %v878 = vpop.f32.mrb[0].mxu0
      %v879 = vadd.f32 0.0, %v878
      %v880 = vpop.f32.mrb[0].mxu0
      %881 = vmatprep.mubr.bf16.mxu0 0
      %882 = vmatmul.mubr.bf16.gmra.mrb[0].mxu0 %v591
      %v883 = vpop.f32.mrb[0].mxu0
      %v884 = vadd.f32 0.0, %v883
      %v885 = vpop.f32.mrb[0].mxu0
      %v886 = vpop.f32.mrb[0].mxu0
      %v887 = vadd.f32 0.0, %v886
      %v888 = vpop.f32.mrb[0].mxu0
      %889 = vmatprep.mubr.bf16.mxu0 0
      %890 = vmatmul.mubr.bf16.gmra.mrb[0].mxu0 %v594
      %v891 = vpop.f32.mrb[0].mxu0
      %v892 = vadd.f32 0.0, %v891
      %v893 = vpop.f32.mrb[0].mxu0
      %v894 = vpop.f32.mrb[0].mxu0
      %v895 = vadd.f32 0.0, %v894
      %v896 = vpop.f32.mrb[0].mxu0
      %897 = vmatprep.mubr.bf16.mxu0 0
      %898 = vmatmul.mubr.bf16.gmra.mrb[0].mxu0 %v804
      %v899 = vpop.f32.mrb[0].mxu0
      %v900 = vadd.f32 0.0, %v899
      %v901 = vpop.f32.mrb[0].mxu0
      %v902 = vpop.f32.mrb[0].mxu0
      %v903 = vadd.f32 0.0, %v902
      %v904 = vpop.f32.mrb[0].mxu0
      %905 = vdwg.mxu0
      %v906 = vadd.f32 %v738, %v844
      %v907 = vadd.f32 %v741, %v847
      %v908 = vadd.f32 %v746, %v852
      %v909 = vadd.f32 %v749, %v855
      %v910 = vadd.f32 %v754, %v860
      %v911 = vadd.f32 %v757, %v863
      %v912 = vadd.f32 %v762, %v868
      %v913 = vadd.f32 %v765, %v871
      %v914 = vadd.f32 %v770, %v876
      %v915 = vadd.f32 %v773, %v879
      %v916 = vadd.f32 %v778, %v884
      %v917 = vadd.f32 %v781, %v887
      %v918 = vadd.f32 %v786, %v892
      %v919 = vadd.f32 %v789, %v895
      %v920 = vadd.f32 %v794, %v900
      %v921 = vadd.f32 %v797, %v903
      %v922 = vld [vmem:[#allocation2 + $0x8] sm:$0xff]
      %v923 = vld [vmem:[#allocation2 + $0x10] sm:$0xff]
      %v924 = vld [vmem:[#allocation2 + $0x28] sm:$0xff]
      %v925 = vld [vmem:[#allocation2 + $0x30] sm:$0xff]
      %v926 = vld [vmem:[#allocation2 + $0x48] sm:$0xff]
      %v927 = vld [vmem:[#allocation2 + $0x50] sm:$0xff]
      %v928 = vld [vmem:[#allocation2 + $0x68] sm:$0xff]
      %v929 = vld [vmem:[#allocation2 + $0x70] sm:$0xff]
      %v930 = vld [vmem:[#allocation2 + $0x88] sm:$0xff]
      %v931 = vld [vmem:[#allocation2 + $0x90] sm:$0xff]
      %v932 = vld [vmem:[#allocation2 + $0xa8] sm:$0xff]
      %v933 = vld [vmem:[#allocation2 + $0xb0] sm:$0xff]
      %v934 = vld [vmem:[#allocation2 + $0xc8] sm:$0xff]
      %v935 = vld [vmem:[#allocation2 + $0xd0] sm:$0xff]
      %v936 = vld [vmem:[#allocation2 + $0xe8] sm:$0xff]
      %v937 = vld [vmem:[#allocation2 + $0xf0] sm:$0xff]
      %v938 = vld [vmem:[#allocation2 + $0x108] sm:$0xff]
      %v939 = vld [vmem:[#allocation2 + $0x110] sm:$0xff]
      %v940 = vld [vmem:[#allocation2 + $0x128] sm:$0xff]
      %v941 = vld [vmem:[#allocation2 + $0x130] sm:$0xff]
      %v942 = vpack.c.bf16 %v923, %v922
      %v943 = vpack.c.bf16 %v925, %v924
      %v944 = vpack.c.bf16 %v927, %v926
      %v945 = vpack.c.bf16 %v929, %v928
      %v946 = vpack.c.bf16 %v931, %v930
      %v947 = vpack.c.bf16 %v933, %v932
      %v948 = vpack.c.bf16 %v935, %v934
      %v949 = vpack.c.bf16 %v937, %v936
      %s950 = scalar_lea.vmem %s3, 2
      %v951 = vld [vmem:[%s950] sm:$0x3]
      %v953 = vsel %vm517, %v942, 0
      %v956 = vsel %vm517, %v943, 0
      %v959 = vsel %vm517, %v944, 0
      %v962 = vsel %vm517, %v945, 0
      %v965 = vsel %vm517, %v946, 0
      %v968 = vsel %vm517, %v947, 0
      %v971 = vsel %vm517, %v948, 0
      %v974 = vsel %vm517, %v949, 0
      %v977 = vsel %vm596, %v951, 0
      %979 = vmatprep.subr.bf16.mxu0 0
      %980 = vmatpush1.bf16.msra.mxu0 %v977
      %981 = vmatprep.subr.bf16.mxu0 0
      %982 = vmatpush1.bf16.msra.mxu0 0
      %983 = vmatprep.subr.bf16.mxu0 0
      %984 = vmatpush1.bf16.msra.mxu0 0
      %985 = vmatprep.subr.bf16.mxu0 0
      %986 = vmatpush1.bf16.msra.mxu0 0
      %987 = vmatprep.subr.bf16.mxu0 0
      %988 = vmatpush1.bf16.msra.mxu0 0
      %989 = vmatprep.subr.bf16.mxu0 0
      %990 = vmatpush1.bf16.msra.mxu0 0
      %991 = vmatprep.subr.bf16.mxu0 0
      %992 = vmatpush1.bf16.msra.mxu0 0
      %993 = vmatprep.subr.bf16.mxu0 0
      %994 = vmatpush1.bf16.msra.mxu0 0
      %995 = vmatprep.subr.bf16.mxu0 0
      %996 = vmatpush1.bf16.msra.mxu0 0
      %997 = vmatprep.subr.bf16.mxu0 0
      %998 = vmatpush1.bf16.msra.mxu0 0
      %999 = vmatprep.subr.bf16.mxu0 0
      %1000 = vmatpush1.bf16.msra.mxu0 0
      %1001 = vmatprep.subr.bf16.mxu0 0
      %1002 = vmatpush1.bf16.msra.mxu0 0
      %1003 = vmatprep.subr.bf16.mxu0 0
      %1004 = vmatpush1.bf16.msra.mxu0 0
      %1005 = vmatprep.subr.bf16.mxu0 0
      %1006 = vmatpush1.bf16.msra.mxu0 0
      %1007 = vmatprep.subr.bf16.mxu0 0
      %1008 = vmatpush1.bf16.msra.mxu0 0
      %1009 = vmatprep.subr.bf16.mxu0 0
      %1010 = vmatpush1.bf16.msra.mxu0 0
      %1011 = vmatprep.mubr.bf16.mxu0 0
      %1012 = vmatmul.mubr.bf16.gmra.mrb[0].mxu0 %v953
      %v1013 = vpop.f32.mrb[0].mxu0
      %v1014 = vadd.f32 0.0, %v1013
      %v1015 = vpop.f32.mrb[0].mxu0
      %v1016 = vpop.f32.mrb[0].mxu0
      %v1017 = vadd.f32 0.0, %v1016
      %v1018 = vpop.f32.mrb[0].mxu0
      %1019 = vmatprep.mubr.bf16.mxu0 0
      %1020 = vmatmul.mubr.bf16.gmra.mrb[0].mxu0 %v956
      %v1021 = vpop.f32.mrb[0].mxu0
      %v1022 = vadd.f32 0.0, %v1021
      %v1023 = vpop.f32.mrb[0].mxu0
      %v1024 = vpop.f32.mrb[0].mxu0
      %v1025 = vadd.f32 0.0, %v1024
      %v1026 = vpop.f32.mrb[0].mxu0
      %1027 = vmatprep.mubr.bf16.mxu0 0
      %1028 = vmatmul.mubr.bf16.gmra.mrb[0].mxu0 %v959
      %v1029 = vpop.f32.mrb[0].mxu0
      %v1030 = vadd.f32 0.0, %v1029
      %v1031 = vpop.f32.mrb[0].mxu0
      %v1032 = vpop.f32.mrb[0].mxu0
      %v1033 = vadd.f32 0.0, %v1032
      %v1034 = vpop.f32.mrb[0].mxu0
      %1035 = vmatprep.mubr.bf16.mxu0 0
      %1036 = vmatmul.mubr.bf16.gmra.mrb[0].mxu0 %v962
      %v1037 = vpop.f32.mrb[0].mxu0
      %v1038 = vadd.f32 0.0, %v1037
      %v1039 = vpop.f32.mrb[0].mxu0
      %v1040 = vpop.f32.mrb[0].mxu0
      %v1041 = vadd.f32 0.0, %v1040
      %v1042 = vpop.f32.mrb[0].mxu0
      %1043 = vmatprep.mubr.bf16.mxu0 0
      %1044 = vmatmul.mubr.bf16.gmra.mrb[0].mxu0 %v965
      %v1045 = vpop.f32.mrb[0].mxu0
      %v1046 = vadd.f32 0.0, %v1045
      %v1047 = vpop.f32.mrb[0].mxu0
      %v1048 = vpop.f32.mrb[0].mxu0
      %v1049 = vadd.f32 0.0, %v1048
      %v1050 = vpop.f32.mrb[0].mxu0
      %1051 = vmatprep.mubr.bf16.mxu0 0
      %1052 = vmatmul.mubr.bf16.gmra.mrb[0].mxu0 %v968
      %v1053 = vpop.f32.mrb[0].mxu0
      %v1054 = vadd.f32 0.0, %v1053
      %v1055 = vpop.f32.mrb[0].mxu0
      %v1056 = vpop.f32.mrb[0].mxu0
      %v1057 = vadd.f32 0.0, %v1056
      %v1058 = vpop.f32.mrb[0].mxu0
      %1059 = vmatprep.mubr.bf16.mxu0 0
      %1060 = vmatmul.mubr.bf16.gmra.mrb[0].mxu0 %v971
      %v1061 = vpop.f32.mrb[0].mxu0
      %v1062 = vadd.f32 0.0, %v1061
      %v1063 = vpop.f32.mrb[0].mxu0
      %v1064 = vpop.f32.mrb[0].mxu0
      %v1065 = vadd.f32 0.0, %v1064
      %v1066 = vpop.f32.mrb[0].mxu0
      %1067 = vmatprep.mubr.bf16.mxu0 0
      %1068 = vmatmul.mubr.bf16.gmra.mrb[0].mxu0 %v974
      %v1069 = vpop.f32.mrb[0].mxu0
      %v1070 = vadd.f32 0.0, %v1069
      %v1071 = vpop.f32.mrb[0].mxu0
      %v1072 = vpop.f32.mrb[0].mxu0
      %v1073 = vadd.f32 0.0, %v1072
      %v1074 = vpop.f32.mrb[0].mxu0
      %1075 = vdwg.mxu0
      %v1076 = vadd.f32 %v906, %v1014
      %v1077 = vadd.f32 %v907, %v1017
      %v1078 = vadd.f32 %v908, %v1022
      %v1079 = vadd.f32 %v909, %v1025
      %v1080 = vadd.f32 %v910, %v1030
      %v1081 = vadd.f32 %v911, %v1033
      %v1082 = vadd.f32 %v912, %v1038
      %v1083 = vadd.f32 %v913, %v1041
      %v1084 = vadd.f32 %v914, %v1046
      %v1085 = vadd.f32 %v915, %v1049
      %v1086 = vadd.f32 %v916, %v1054
      %v1087 = vadd.f32 %v917, %v1057
      %v1088 = vadd.f32 %v918, %v1062
      %v1089 = vadd.f32 %v919, %v1065
      %v1090 = vadd.f32 %v920, %v1070
      %v1091 = vadd.f32 %v921, %v1073
      %v1092 = vpack.c.bf16 %v939, %v938
      %s1093 = scalar_lea.vmem %s3, 8
      %v1094 = vld [vmem:[%s1093] sm:$0x3]
      %v1096 = vsel %vm517, %v1092, 0
      %v1099 = vsel %vm596, %v1094, 0
      %1101 = vmatprep.subr.bf16.mxu0 0
      %1102 = vmatpush1.bf16.msra.mxu0 %v1099
      %1103 = vmatprep.subr.bf16.mxu0 0
      %1104 = vmatpush1.bf16.msra.mxu0 0
      %1105 = vmatprep.subr.bf16.mxu0 0
      %1106 = vmatpush1.bf16.msra.mxu0 0
      %1107 = vmatprep.subr.bf16.mxu0 0
      %1108 = vmatpush1.bf16.msra.mxu0 0
      %1109 = vmatprep.subr.bf16.mxu0 0
      %1110 = vmatpush1.bf16.msra.mxu0 0
      %1111 = vmatprep.subr.bf16.mxu0 0
      %1112 = vmatpush1.bf16.msra.mxu0 0
      %1113 = vmatprep.subr.bf16.mxu0 0
      %1114 = vmatpush1.bf16.msra.mxu0 0
      %1115 = vmatprep.subr.bf16.mxu0 0
      %1116 = vmatpush1.bf16.msra.mxu0 0
      %1117 = vmatprep.subr.bf16.mxu0 0
      %1118 = vmatpush1.bf16.msra.mxu0 0
      %1119 = vmatprep.subr.bf16.mxu0 0
      %1120 = vmatpush1.bf16.msra.mxu0 0
      %1121 = vmatprep.subr.bf16.mxu0 0
      %1122 = vmatpush1.bf16.msra.mxu0 0
      %1123 = vmatprep.subr.bf16.mxu0 0
      %1124 = vmatpush1.bf16.msra.mxu0 0
      %1125 = vmatprep.subr.bf16.mxu0 0
      %1126 = vmatpush1.bf16.msra.mxu0 0
      %1127 = vmatprep.subr.bf16.mxu0 0
      %1128 = vmatpush1.bf16.msra.mxu0 0
      %1129 = vmatprep.subr.bf16.mxu0 0
      %1130 = vmatpush1.bf16.msra.mxu0 0
      %1131 = vmatprep.subr.bf16.mxu0 0
      %1132 = vmatpush1.bf16.msra.mxu0 0
      %1133 = vmatprep.mubr.bf16.mxu0 0
      %1134 = vmatmul.mubr.bf16.gmra.mrb[0].mxu0 %v956
      %v1135 = vpop.f32.mrb[0].mxu0
      %v1136 = vadd.f32 0.0, %v1135
      %v1137 = vpop.f32.mrb[0].mxu0
      %v1138 = vpop.f32.mrb[0].mxu0
      %v1139 = vadd.f32 0.0, %v1138
      %v1140 = vpop.f32.mrb[0].mxu0
      %1141 = vmatprep.mubr.bf16.mxu0 0
      %1142 = vmatmul.mubr.bf16.gmra.mrb[0].mxu0 %v959
      %v1143 = vpop.f32.mrb[0].mxu0
      %v1144 = vadd.f32 0.0, %v1143
      %v1145 = vpop.f32.mrb[0].mxu0
      %v1146 = vpop.f32.mrb[0].mxu0
      %v1147 = vadd.f32 0.0, %v1146
      %v1148 = vpop.f32.mrb[0].mxu0
      %1149 = vmatprep.mubr.bf16.mxu0 0
      %1150 = vmatmul.mubr.bf16.gmra.mrb[0].mxu0 %v962
      %v1151 = vpop.f32.mrb[0].mxu0
      %v1152 = vadd.f32 0.0, %v1151
      %v1153 = vpop.f32.mrb[0].mxu0
      %v1154 = vpop.f32.mrb[0].mxu0
      %v1155 = vadd.f32 0.0, %v1154
      %v1156 = vpop.f32.mrb[0].mxu0
      %1157 = vmatprep.mubr.bf16.mxu0 0
      %1158 = vmatmul.mubr.bf16.gmra.mrb[0].mxu0 %v965
      %v1159 = vpop.f32.mrb[0].mxu0
      %v1160 = vadd.f32 0.0, %v1159
      %v1161 = vpop.f32.mrb[0].mxu0
      %v1162 = vpop.f32.mrb[0].mxu0
      %v1163 = vadd.f32 0.0, %v1162
      %v1164 = vpop.f32.mrb[0].mxu0
      %1165 = vmatprep.mubr.bf16.mxu0 0
      %1166 = vmatmul.mubr.bf16.gmra.mrb[0].mxu0 %v968
      %v1167 = vpop.f32.mrb[0].mxu0
      %v1168 = vadd.f32 0.0, %v1167
      %v1169 = vpop.f32.mrb[0].mxu0
      %v1170 = vpop.f32.mrb[0].mxu0
      %v1171 = vadd.f32 0.0, %v1170
      %v1172 = vpop.f32.mrb[0].mxu0
      %1173 = vmatprep.mubr.bf16.mxu0 0
      %1174 = vmatmul.mubr.bf16.gmra.mrb[0].mxu0 %v971
      %v1175 = vpop.f32.mrb[0].mxu0
      %v1176 = vadd.f32 0.0, %v1175
      %v1177 = vpop.f32.mrb[0].mxu0
      %v1178 = vpop.f32.mrb[0].mxu0
      %v1179 = vadd.f32 0.0, %v1178
      %v1180 = vpop.f32.mrb[0].mxu0
      %1181 = vmatprep.mubr.bf16.mxu0 0
      %1182 = vmatmul.mubr.bf16.gmra.mrb[0].mxu0 %v974
      %v1183 = vpop.f32.mrb[0].mxu0
      %v1184 = vadd.f32 0.0, %v1183
      %v1185 = vpop.f32.mrb[0].mxu0
      %v1186 = vpop.f32.mrb[0].mxu0
      %v1187 = vadd.f32 0.0, %v1186
      %v1188 = vpop.f32.mrb[0].mxu0
      %1189 = vmatprep.mubr.bf16.mxu0 0
      %1190 = vmatmul.mubr.bf16.gmra.mrb[0].mxu0 %v1096
      %v1191 = vpop.f32.mrb[0].mxu0
      %v1192 = vadd.f32 0.0, %v1191
      %v1193 = vpop.f32.mrb[0].mxu0
      %v1194 = vpop.f32.mrb[0].mxu0
      %v1195 = vadd.f32 0.0, %v1194
      %v1196 = vpop.f32.mrb[0].mxu0
      %1197 = vdwg.mxu0
      %v1198 = vadd.f32 %v1076, %v1136
      %v1199 = vadd.f32 %v1077, %v1139
      %v1200 = vadd.f32 %v1078, %v1144
      %v1201 = vadd.f32 %v1079, %v1147
      %v1202 = vadd.f32 %v1080, %v1152
      %v1203 = vadd.f32 %v1081, %v1155
      %v1204 = vadd.f32 %v1082, %v1160
      %v1205 = vadd.f32 %v1083, %v1163
      %v1206 = vadd.f32 %v1084, %v1168
      %v1207 = vadd.f32 %v1085, %v1171
      %v1208 = vadd.f32 %v1086, %v1176
      %v1209 = vadd.f32 %v1087, %v1179
      %v1210 = vadd.f32 %v1088, %v1184
      %v1211 = vadd.f32 %v1089, %v1187
      %v1212 = vadd.f32 %v1090, %v1192
      %v1213 = vadd.f32 %v1091, %v1195
      %v1214 = vpack.c.bf16 %v941, %v940
      %s1215 = scalar_lea.vmem %s3, 14
      %v1216 = vld [vmem:[%s1215] sm:$0x3]
      %v1218 = vsel %vm517, %v1214, 0
      %v1221 = vsel %vm596, %v1216, 0
      %1223 = vmatprep.subr.bf16.mxu0 0
      %1224 = vmatpush1.bf16.msra.mxu0 %v1221
      %1225 = vmatprep.subr.bf16.mxu0 0
      %1226 = vmatpush1.bf16.msra.mxu0 0
      %1227 = vmatprep.subr.bf16.mxu0 0
      %1228 = vmatpush1.bf16.msra.mxu0 0
      %1229 = vmatprep.subr.bf16.mxu0 0
      %1230 = vmatpush1.bf16.msra.mxu0 0
      %1231 = vmatprep.subr.bf16.mxu0 0
      %1232 = vmatpush1.bf16.msra.mxu0 0
      %1233 = vmatprep.subr.bf16.mxu0 0
      %1234 = vmatpush1.bf16.msra.mxu0 0
      %1235 = vmatprep.subr.bf16.mxu0 0
      %1236 = vmatpush1.bf16.msra.mxu0 0
      %1237 = vmatprep.subr.bf16.mxu0 0
      %1238 = vmatpush1.bf16.msra.mxu0 0
      %1239 = vmatprep.subr.bf16.mxu0 0
      %1240 = vmatpush1.bf16.msra.mxu0 0
      %1241 = vmatprep.subr.bf16.mxu0 0
      %1242 = vmatpush1.bf16.msra.mxu0 0
      %1243 = vmatprep.subr.bf16.mxu0 0
      %1244 = vmatpush1.bf16.msra.mxu0 0
      %1245 = vmatprep.subr.bf16.mxu0 0
      %1246 = vmatpush1.bf16.msra.mxu0 0
      %1247 = vmatprep.subr.bf16.mxu0 0
      %1248 = vmatpush1.bf16.msra.mxu0 0
      %1249 = vmatprep.subr.bf16.mxu0 0
      %1250 = vmatpush1.bf16.msra.mxu0 0
      %1251 = vmatprep.subr.bf16.mxu0 0
      %1252 = vmatpush1.bf16.msra.mxu0 0
      %1253 = vmatprep.subr.bf16.mxu0 0
      %1254 = vmatpush1.bf16.msra.mxu0 0
      %1255 = vmatprep.mubr.bf16.mxu0 0
      %1256 = vmatmul.mubr.bf16.gmra.mrb[0].mxu0 %v959
      %v1257 = vpop.f32.mrb[0].mxu0
      %v1258 = vadd.f32 0.0, %v1257
      %v1259 = vpop.f32.mrb[0].mxu0
      %v1260 = vpop.f32.mrb[0].mxu0
      %v1261 = vadd.f32 0.0, %v1260
      %v1262 = vpop.f32.mrb[0].mxu0
      %1263 = vmatprep.mubr.bf16.mxu0 0
      %1264 = vmatmul.mubr.bf16.gmra.mrb[0].mxu0 %v962
      %v1265 = vpop.f32.mrb[0].mxu0
      %v1266 = vadd.f32 0.0, %v1265
      %v1267 = vpop.f32.mrb[0].mxu0
      %v1268 = vpop.f32.mrb[0].mxu0
      %v1269 = vadd.f32 0.0, %v1268
      %v1270 = vpop.f32.mrb[0].mxu0
      %1271 = vmatprep.mubr.bf16.mxu0 0
      %1272 = vmatmul.mubr.bf16.gmra.mrb[0].mxu0 %v965
      %v1273 = vpop.f32.mrb[0].mxu0
      %v1274 = vadd.f32 0.0, %v1273
      %v1275 = vpop.f32.mrb[0].mxu0
      %v1276 = vpop.f32.mrb[0].mxu0
      %v1277 = vadd.f32 0.0, %v1276
      %v1278 = vpop.f32.mrb[0].mxu0
      %1279 = vmatprep.mubr.bf16.mxu0 0
      %1280 = vmatmul.mubr.bf16.gmra.mrb[0].mxu0 %v968
      %v1281 = vpop.f32.mrb[0].mxu0
      %v1282 = vadd.f32 0.0, %v1281
      %v1283 = vpop.f32.mrb[0].mxu0
      %v1284 = vpop.f32.mrb[0].mxu0
      %v1285 = vadd.f32 0.0, %v1284
      %v1286 = vpop.f32.mrb[0].mxu0
      %1287 = vmatprep.mubr.bf16.mxu0 0
      %1288 = vmatmul.mubr.bf16.gmra.mrb[0].mxu0 %v971
      %v1289 = vpop.f32.mrb[0].mxu0
      %v1290 = vadd.f32 0.0, %v1289
      %v1291 = vpop.f32.mrb[0].mxu0
      %v1292 = vpop.f32.mrb[0].mxu0
      %v1293 = vadd.f32 0.0, %v1292
      %v1294 = vpop.f32.mrb[0].mxu0
      %1295 = vmatprep.mubr.bf16.mxu0 0
      %1296 = vmatmul.mubr.bf16.gmra.mrb[0].mxu0 %v974
      %v1297 = vpop.f32.mrb[0].mxu0
      %v1298 = vadd.f32 0.0, %v1297
      %v1299 = vpop.f32.mrb[0].mxu0
      %v1300 = vpop.f32.mrb[0].mxu0
      %v1301 = vadd.f32 0.0, %v1300
      %v1302 = vpop.f32.mrb[0].mxu0
      %1303 = vmatprep.mubr.bf16.mxu0 0
      %1304 = vmatmul.mubr.bf16.gmra.mrb[0].mxu0 %v1096
      %v1305 = vpop.f32.mrb[0].mxu0
      %v1306 = vadd.f32 0.0, %v1305
      %v1307 = vpop.f32.mrb[0].mxu0
      %v1308 = vpop.f32.mrb[0].mxu0
      %v1309 = vadd.f32 0.0, %v1308
      %v1310 = vpop.f32.mrb[0].mxu0
      %1311 = vmatprep.mubr.bf16.mxu0 0
      %1312 = vmatmul.mubr.bf16.gmra.mrb[0].mxu0 %v1218
      %v1313 = vpop.f32.mrb[0].mxu0
      %v1314 = vadd.f32 0.0, %v1313
      %v1315 = vpop.f32.mrb[0].mxu0
      %v1316 = vpop.f32.mrb[0].mxu0
      %v1317 = vadd.f32 0.0, %v1316
      %v1318 = vpop.f32.mrb[0].mxu0
      %1319 = vdwg.mxu0
      %v1320 = vadd.f32 %v1198, %v1258
      %v1321 = vadd.f32 %v1199, %v1261
      %v1322 = vadd.f32 %v1200, %v1266
      %v1323 = vadd.f32 %v1201, %v1269
      %v1324 = vadd.f32 %v1202, %v1274
      %v1325 = vadd.f32 %v1203, %v1277
      %v1326 = vadd.f32 %v1204, %v1282
      %v1327 = vadd.f32 %v1205, %v1285
      %v1328 = vadd.f32 %v1206, %v1290
      %v1329 = vadd.f32 %v1207, %v1293
      %v1330 = vadd.f32 %v1208, %v1298
      %v1331 = vadd.f32 %v1209, %v1301
      %v1332 = vadd.f32 %v1210, %v1306
      %v1333 = vadd.f32 %v1211, %v1309
      %v1334 = vadd.f32 %v1212, %v1314
      %v1335 = vadd.f32 %v1213, %v1317
      %v1336 = vld [vmem:[#allocation2 + $0x9] sm:$0xff]
      %v1337 = vld [vmem:[#allocation2 + $0x11] sm:$0xff]
      %v1338 = vld [vmem:[#allocation2 + $0x29] sm:$0xff]
      %v1339 = vld [vmem:[#allocation2 + $0x31] sm:$0xff]
      %v1340 = vld [vmem:[#allocation2 + $0x49] sm:$0xff]
      %v1341 = vld [vmem:[#allocation2 + $0x51] sm:$0xff]
      %v1342 = vld [vmem:[#allocation2 + $0x69] sm:$0xff]
      %v1343 = vld [vmem:[#allocation2 + $0x71] sm:$0xff]
      %v1344 = vld [vmem:[#allocation2 + $0x89] sm:$0xff]
      %v1345 = vld [vmem:[#allocation2 + $0x91] sm:$0xff]
      %v1346 = vld [vmem:[#allocation2 + $0xa9] sm:$0xff]
      %v1347 = vld [vmem:[#allocation2 + $0xb1] sm:$0xff]
      %v1348 = vld [vmem:[#allocation2 + $0xc9] sm:$0xff]
      %v1349 = vld [vmem:[#allocation2 + $0xd1] sm:$0xff]
      %v1350 = vld [vmem:[#allocation2 + $0xe9] sm:$0xff]
      %v1351 = vld [vmem:[#allocation2 + $0xf1] sm:$0xff]
      %v1352 = vld [vmem:[#allocation2 + $0x109] sm:$0xff]
      %v1353 = vld [vmem:[#allocation2 + $0x111] sm:$0xff]
      %v1354 = vld [vmem:[#allocation2 + $0x129] sm:$0xff]
      %v1355 = vld [vmem:[#allocation2 + $0x131] sm:$0xff]
      %v1356 = vpack.c.bf16 %v1337, %v1336
      %v1357 = vpack.c.bf16 %v1339, %v1338
      %v1358 = vpack.c.bf16 %v1341, %v1340
      %v1359 = vpack.c.bf16 %v1343, %v1342
      %v1360 = vpack.c.bf16 %v1345, %v1344
      %v1361 = vpack.c.bf16 %v1347, %v1346
      %v1362 = vpack.c.bf16 %v1349, %v1348
      %v1363 = vpack.c.bf16 %v1351, %v1350
      %s1364 = scalar_lea.vmem %s3, 4
      %v1365 = vld [vmem:[%s1364] sm:$0x3]
      %v1367 = vsel %vm517, %v1356, 0
      %v1370 = vsel %vm517, %v1357, 0
      %v1373 = vsel %vm517, %v1358, 0
      %v1376 = vsel %vm517, %v1359, 0
      %v1379 = vsel %vm517, %v1360, 0
      %v1382 = vsel %vm517, %v1361, 0
      %v1385 = vsel %vm517, %v1362, 0
      %v1388 = vsel %vm517, %v1363, 0
      %v1391 = vsel %vm596, %v1365, 0
      %1393 = vmatprep.subr.bf16.mxu0 0
      %1394 = vmatpush1.bf16.msra.mxu0 %v1391
      %1395 = vmatprep.subr.bf16.mxu0 0
      %1396 = vmatpush1.bf16.msra.mxu0 0
      %1397 = vmatprep.subr.bf16.mxu0 0
      %1398 = vmatpush1.bf16.msra.mxu0 0
      %1399 = vmatprep.subr.bf16.mxu0 0
      %1400 = vmatpush1.bf16.msra.mxu0 0
      %1401 = vmatprep.subr.bf16.mxu0 0
      %1402 = vmatpush1.bf16.msra.mxu0 0
      %1403 = vmatprep.subr.bf16.mxu0 0
      %1404 = vmatpush1.bf16.msra.mxu0 0
      %1405 = vmatprep.subr.bf16.mxu0 0
      %1406 = vmatpush1.bf16.msra.mxu0 0
      %1407 = vmatprep.subr.bf16.mxu0 0
      %1408 = vmatpush1.bf16.msra.mxu0 0
      %1409 = vmatprep.subr.bf16.mxu0 0
      %1410 = vmatpush1.bf16.msra.mxu0 0
      %1411 = vmatprep.subr.bf16.mxu0 0
      %1412 = vmatpush1.bf16.msra.mxu0 0
      %1413 = vmatprep.subr.bf16.mxu0 0
      %1414 = vmatpush1.bf16.msra.mxu0 0
      %1415 = vmatprep.subr.bf16.mxu0 0
      %1416 = vmatpush1.bf16.msra.mxu0 0
      %1417 = vmatprep.subr.bf16.mxu0 0
      %1418 = vmatpush1.bf16.msra.mxu0 0
      %1419 = vmatprep.subr.bf16.mxu0 0
      %1420 = vmatpush1.bf16.msra.mxu0 0
      %1421 = vmatprep.subr.bf16.mxu0 0
      %1422 = vmatpush1.bf16.msra.mxu0 0
      %1423 = vmatprep.subr.bf16.mxu0 0
      %1424 = vmatpush1.bf16.msra.mxu0 0
      %1425 = vmatprep.mubr.bf16.mxu0 0
      %1426 = vmatmul.mubr.bf16.gmra.mrb[0].mxu0 %v1367
      %v1427 = vpop.f32.mrb[0].mxu0
      %v1428 = vadd.f32 0.0, %v1427
      %v1429 = vpop.f32.mrb[0].mxu0
      %v1430 = vpop.f32.mrb[0].mxu0
      %v1431 = vadd.f32 0.0, %v1430
      %v1432 = vpop.f32.mrb[0].mxu0
      %1433 = vmatprep.mubr.bf16.mxu0 0
      %1434 = vmatmul.mubr.bf16.gmra.mrb[0].mxu0 %v1370
      %v1435 = vpop.f32.mrb[0].mxu0
      %v1436 = vadd.f32 0.0, %v1435
      %v1437 = vpop.f32.mrb[0].mxu0
      %v1438 = vpop.f32.mrb[0].mxu0
      %v1439 = vadd.f32 0.0, %v1438
      %v1440 = vpop.f32.mrb[0].mxu0
      %1441 = vmatprep.mubr.bf16.mxu0 0
      %1442 = vmatmul.mubr.bf16.gmra.mrb[0].mxu0 %v1373
      %v1443 = vpop.f32.mrb[0].mxu0
      %v1444 = vadd.f32 0.0, %v1443
      %v1445 = vpop.f32.mrb[0].mxu0
      %v1446 = vpop.f32.mrb[0].mxu0
      %v1447 = vadd.f32 0.0, %v1446
      %v1448 = vpop.f32.mrb[0].mxu0
      %1449 = vmatprep.mubr.bf16.mxu0 0
      %1450 = vmatmul.mubr.bf16.gmra.mrb[0].mxu0 %v1376
      %v1451 = vpop.f32.mrb[0].mxu0
      %v1452 = vadd.f32 0.0, %v1451
      %v1453 = vpop.f32.mrb[0].mxu0
      %v1454 = vpop.f32.mrb[0].mxu0
      %v1455 = vadd.f32 0.0, %v1454
      %v1456 = vpop.f32.mrb[0].mxu0
      %1457 = vmatprep.mubr.bf16.mxu0 0
      %1458 = vmatmul.mubr.bf16.gmra.mrb[0].mxu0 %v1379
      %v1459 = vpop.f32.mrb[0].mxu0
      %v1460 = vadd.f32 0.0, %v1459
      %v1461 = vpop.f32.mrb[0].mxu0
      %v1462 = vpop.f32.mrb[0].mxu0
      %v1463 = vadd.f32 0.0, %v1462
      %v1464 = vpop.f32.mrb[0].mxu0
      %1465 = vmatprep.mubr.bf16.mxu0 0
      %1466 = vmatmul.mubr.bf16.gmra.mrb[0].mxu0 %v1382
      %v1467 = vpop.f32.mrb[0].mxu0
      %v1468 = vadd.f32 0.0, %v1467
      %v1469 = vpop.f32.mrb[0].mxu0
      %v1470 = vpop.f32.mrb[0].mxu0
      %v1471 = vadd.f32 0.0, %v1470
      %v1472 = vpop.f32.mrb[0].mxu0
      %1473 = vmatprep.mubr.bf16.mxu0 0
      %1474 = vmatmul.mubr.bf16.gmra.mrb[0].mxu0 %v1385
      %v1475 = vpop.f32.mrb[0].mxu0
      %v1476 = vadd.f32 0.0, %v1475
      %v1477 = vpop.f32.mrb[0].mxu0
      %v1478 = vpop.f32.mrb[0].mxu0
      %v1479 = vadd.f32 0.0, %v1478
      %v1480 = vpop.f32.mrb[0].mxu0
      %1481 = vmatprep.mubr.bf16.mxu0 0
      %1482 = vmatmul.mubr.bf16.gmra.mrb[0].mxu0 %v1388
      %v1483 = vpop.f32.mrb[0].mxu0
      %v1484 = vadd.f32 0.0, %v1483
      %v1485 = vpop.f32.mrb[0].mxu0
      %v1486 = vpop.f32.mrb[0].mxu0
      %v1487 = vadd.f32 0.0, %v1486
      %v1488 = vpop.f32.mrb[0].mxu0
      %1489 = vdwg.mxu0
      %v1490 = vadd.f32 %v1320, %v1428
      %v1491 = vadd.f32 %v1321, %v1431
      %v1492 = vadd.f32 %v1322, %v1436
      %v1493 = vadd.f32 %v1323, %v1439
      %v1494 = vadd.f32 %v1324, %v1444
      %v1495 = vadd.f32 %v1325, %v1447
      %v1496 = vadd.f32 %v1326, %v1452
      %v1497 = vadd.f32 %v1327, %v1455
      %v1498 = vadd.f32 %v1328, %v1460
      %v1499 = vadd.f32 %v1329, %v1463
      %v1500 = vadd.f32 %v1330, %v1468
      %v1501 = vadd.f32 %v1331, %v1471
      %v1502 = vadd.f32 %v1332, %v1476
      %v1503 = vadd.f32 %v1333, %v1479
      %v1504 = vadd.f32 %v1334, %v1484
      %v1505 = vadd.f32 %v1335, %v1487
      %v1506 = vpack.c.bf16 %v1353, %v1352
      %s1507 = scalar_lea.vmem %s3, 10
      %v1508 = vld [vmem:[%s1507] sm:$0x3]
      %v1510 = vsel %vm517, %v1506, 0
      %v1513 = vsel %vm596, %v1508, 0
      %1515 = vmatprep.subr.bf16.mxu0 0
      %1516 = vmatpush1.bf16.msra.mxu0 %v1513
      %1517 = vmatprep.subr.bf16.mxu0 0
      %1518 = vmatpush1.bf16.msra.mxu0 0
      %1519 = vmatprep.subr.bf16.mxu0 0
      %1520 = vmatpush1.bf16.msra.mxu0 0
      %1521 = vmatprep.subr.bf16.mxu0 0
      %1522 = vmatpush1.bf16.msra.mxu0 0
      %1523 = vmatprep.subr.bf16.mxu0 0
      %1524 = vmatpush1.bf16.msra.mxu0 0
      %1525 = vmatprep.subr.bf16.mxu0 0
      %1526 = vmatpush1.bf16.msra.mxu0 0
      %1527 = vmatprep.subr.bf16.mxu0 0
      %1528 = vmatpush1.bf16.msra.mxu0 0
      %1529 = vmatprep.subr.bf16.mxu0 0
      %1530 = vmatpush1.bf16.msra.mxu0 0
      %1531 = vmatprep.subr.bf16.mxu0 0
      %1532 = vmatpush1.bf16.msra.mxu0 0
      %1533 = vmatprep.subr.bf16.mxu0 0
      %1534 = vmatpush1.bf16.msra.mxu0 0
      %1535 = vmatprep.subr.bf16.mxu0 0
      %1536 = vmatpush1.bf16.msra.mxu0 0
      %1537 = vmatprep.subr.bf16.mxu0 0
      %1538 = vmatpush1.bf16.msra.mxu0 0
      %1539 = vmatprep.subr.bf16.mxu0 0
      %1540 = vmatpush1.bf16.msra.mxu0 0
      %1541 = vmatprep.subr.bf16.mxu0 0
      %1542 = vmatpush1.bf16.msra.mxu0 0
      %1543 = vmatprep.subr.bf16.mxu0 0
      %1544 = vmatpush1.bf16.msra.mxu0 0
      %1545 = vmatprep.subr.bf16.mxu0 0
      %1546 = vmatpush1.bf16.msra.mxu0 0
      %1547 = vmatprep.mubr.bf16.mxu0 0
      %1548 = vmatmul.mubr.bf16.gmra.mrb[0].mxu0 %v1370
      %v1549 = vpop.f32.mrb[0].mxu0
      %v1550 = vadd.f32 0.0, %v1549
      %v1551 = vpop.f32.mrb[0].mxu0
      %v1552 = vpop.f32.mrb[0].mxu0
      %v1553 = vadd.f32 0.0, %v1552
      %v1554 = vpop.f32.mrb[0].mxu0
      %1555 = vmatprep.mubr.bf16.mxu0 0
      %1556 = vmatmul.mubr.bf16.gmra.mrb[0].mxu0 %v1373
      %v1557 = vpop.f32.mrb[0].mxu0
      %v1558 = vadd.f32 0.0, %v1557
      %v1559 = vpop.f32.mrb[0].mxu0
      %v1560 = vpop.f32.mrb[0].mxu0
      %v1561 = vadd.f32 0.0, %v1560
      %v1562 = vpop.f32.mrb[0].mxu0
      %1563 = vmatprep.mubr.bf16.mxu0 0
      %1564 = vmatmul.mubr.bf16.gmra.mrb[0].mxu0 %v1376
      %v1565 = vpop.f32.mrb[0].mxu0
      %v1566 = vadd.f32 0.0, %v1565
      %v1567 = vpop.f32.mrb[0].mxu0
      %v1568 = vpop.f32.mrb[0].mxu0
      %v1569 = vadd.f32 0.0, %v1568
      %v1570 = vpop.f32.mrb[0].mxu0
      %1571 = vmatprep.mubr.bf16.mxu0 0
      %1572 = vmatmul.mubr.bf16.gmra.mrb[0].mxu0 %v1379
      %v1573 = vpop.f32.mrb[0].mxu0
      %v1574 = vadd.f32 0.0, %v1573
      %v1575 = vpop.f32.mrb[0].mxu0
      %v1576 = vpop.f32.mrb[0].mxu0
      %v1577 = vadd.f32 0.0, %v1576
      %v1578 = vpop.f32.mrb[0].mxu0
      %1579 = vmatprep.mubr.bf16.mxu0 0
      %1580 = vmatmul.mubr.bf16.gmra.mrb[0].mxu0 %v1382
      %v1581 = vpop.f32.mrb[0].mxu0
      %v1582 = vadd.f32 0.0, %v1581
      %v1583 = vpop.f32.mrb[0].mxu0
      %v1584 = vpop.f32.mrb[0].mxu0
      %v1585 = vadd.f32 0.0, %v1584
      %v1586 = vpop.f32.mrb[0].mxu0
      %1587 = vmatprep.mubr.bf16.mxu0 0
      %1588 = vmatmul.mubr.bf16.gmra.mrb[0].mxu0 %v1385
      %v1589 = vpop.f32.mrb[0].mxu0
      %v1590 = vadd.f32 0.0, %v1589
      %v1591 = vpop.f32.mrb[0].mxu0
      %v1592 = vpop.f32.mrb[0].mxu0
      %v1593 = vadd.f32 0.0, %v1592
      %v1594 = vpop.f32.mrb[0].mxu0
      %1595 = vmatprep.mubr.bf16.mxu0 0
      %1596 = vmatmul.mubr.bf16.gmra.mrb[0].mxu0 %v1388
      %v1597 = vpop.f32.mrb[0].mxu0
      %v1598 = vadd.f32 0.0, %v1597
      %v1599 = vpop.f32.mrb[0].mxu0
      %v1600 = vpop.f32.mrb[0].mxu0
      %v1601 = vadd.f32 0.0, %v1600
      %v1602 = vpop.f32.mrb[0].mxu0
      %1603 = vmatprep.mubr.bf16.mxu0 0
      %1604 = vmatmul.mubr.bf16.gmra.mrb[0].mxu0 %v1510
      %v1605 = vpop.f32.mrb[0].mxu0
      %v1606 = vadd.f32 0.0, %v1605
      %v1607 = vpop.f32.mrb[0].mxu0
      %v1608 = vpop.f32.mrb[0].mxu0
      %v1609 = vadd.f32 0.0, %v1608
      %v1610 = vpop.f32.mrb[0].mxu0
      %1611 = vdwg.mxu0
      %v1612 = vadd.f32 %v1490, %v1550
      %v1613 = vadd.f32 %v1491, %v1553
      %v1614 = vadd.f32 %v1492, %v1558
      %v1615 = vadd.f32 %v1493, %v1561
      %v1616 = vadd.f32 %v1494, %v1566
      %v1617 = vadd.f32 %v1495, %v1569
      %v1618 = vadd.f32 %v1496, %v1574
      %v1619 = vadd.f32 %v1497, %v1577
      %v1620 = vadd.f32 %v1498, %v1582
      %v1621 = vadd.f32 %v1499, %v1585
      %v1622 = vadd.f32 %v1500, %v1590
      %v1623 = vadd.f32 %v1501, %v1593
      %v1624 = vadd.f32 %v1502, %v1598
      %v1625 = vadd.f32 %v1503, %v1601
      %v1626 = vadd.f32 %v1504, %v1606
      %v1627 = vadd.f32 %v1505, %v1609
      %v1628 = vpack.c.bf16 %v1355, %v1354
      %s1629 = scalar_lea.vmem %s3, 16
      %v1630 = vld [vmem:[%s1629] sm:$0x3]
      %v1632 = vsel %vm517, %v1628, 0
      %v1635 = vsel %vm596, %v1630, 0
      %1637 = vmatprep.subr.bf16.mxu0 0
      %1638 = vmatpush1.bf16.msra.mxu0 %v1635
      %1639 = vmatprep.subr.bf16.mxu0 0
      %1640 = vmatpush1.bf16.msra.mxu0 0
      %1641 = vmatprep.subr.bf16.mxu0 0
      %1642 = vmatpush1.bf16.msra.mxu0 0
      %1643 = vmatprep.subr.bf16.mxu0 0
      %1644 = vmatpush1.bf16.msra.mxu0 0
      %1645 = vmatprep.subr.bf16.mxu0 0
      %1646 = vmatpush1.bf16.msra.mxu0 0
      %1647 = vmatprep.subr.bf16.mxu0 0
      %1648 = vmatpush1.bf16.msra.mxu0 0
      %1649 = vmatprep.subr.bf16.mxu0 0
      %1650 = vmatpush1.bf16.msra.mxu0 0
      %1651 = vmatprep.subr.bf16.mxu0 0
      %1652 = vmatpush1.bf16.msra.mxu0 0
      %1653 = vmatprep.subr.bf16.mxu0 0
      %1654 = vmatpush1.bf16.msra.mxu0 0
      %1655 = vmatprep.subr.bf16.mxu0 0
      %1656 = vmatpush1.bf16.msra.mxu0 0
      %1657 = vmatprep.subr.bf16.mxu0 0
      %1658 = vmatpush1.bf16.msra.mxu0 0
      %1659 = vmatprep.subr.bf16.mxu0 0
      %1660 = vmatpush1.bf16.msra.mxu0 0
      %1661 = vmatprep.subr.bf16.mxu0 0
      %1662 = vmatpush1.bf16.msra.mxu0 0
      %1663 = vmatprep.subr.bf16.mxu0 0
      %1664 = vmatpush1.bf16.msra.mxu0 0
      %1665 = vmatprep.subr.bf16.mxu0 0
      %1666 = vmatpush1.bf16.msra.mxu0 0
      %1667 = vmatprep.subr.bf16.mxu0 0
      %1668 = vmatpush1.bf16.msra.mxu0 0
      %1669 = vmatprep.mubr.bf16.mxu0 0
      %1670 = vmatmul.mubr.bf16.gmra.mrb[0].mxu0 %v1373
      %v1671 = vpop.f32.mrb[0].mxu0
      %v1672 = vadd.f32 0.0, %v1671
      %v1673 = vpop.f32.mrb[0].mxu0
      %v1674 = vpop.f32.mrb[0].mxu0
      %v1675 = vadd.f32 0.0, %v1674
      %v1676 = vpop.f32.mrb[0].mxu0
      %1677 = vmatprep.mubr.bf16.mxu0 0
      %1678 = vmatmul.mubr.bf16.gmra.mrb[0].mxu0 %v1376
      %v1679 = vpop.f32.mrb[0].mxu0
      %v1680 = vadd.f32 0.0, %v1679
      %v1681 = vpop.f32.mrb[0].mxu0
      %v1682 = vpop.f32.mrb[0].mxu0
      %v1683 = vadd.f32 0.0, %v1682
      %v1684 = vpop.f32.mrb[0].mxu0
      %1685 = vmatprep.mubr.bf16.mxu0 0
      %1686 = vmatmul.mubr.bf16.gmra.mrb[0].mxu0 %v1379
      %v1687 = vpop.f32.mrb[0].mxu0
      %v1688 = vadd.f32 0.0, %v1687
      %v1689 = vpop.f32.mrb[0].mxu0
      %v1690 = vpop.f32.mrb[0].mxu0
      %v1691 = vadd.f32 0.0, %v1690
      %v1692 = vpop.f32.mrb[0].mxu0
      %1693 = vmatprep.mubr.bf16.mxu0 0
      %1694 = vmatmul.mubr.bf16.gmra.mrb[0].mxu0 %v1382
      %v1695 = vpop.f32.mrb[0].mxu0
      %v1696 = vadd.f32 0.0, %v1695
      %v1697 = vpop.f32.mrb[0].mxu0
      %v1698 = vpop.f32.mrb[0].mxu0
      %v1699 = vadd.f32 0.0, %v1698
      %v1700 = vpop.f32.mrb[0].mxu0
      %1701 = vmatprep.mubr.bf16.mxu0 0
      %1702 = vmatmul.mubr.bf16.gmra.mrb[0].mxu0 %v1385
      %v1703 = vpop.f32.mrb[0].mxu0
      %v1704 = vadd.f32 0.0, %v1703
      %v1705 = vpop.f32.mrb[0].mxu0
      %v1706 = vpop.f32.mrb[0].mxu0
      %v1707 = vadd.f32 0.0, %v1706
      %v1708 = vpop.f32.mrb[0].mxu0
      %1709 = vmatprep.mubr.bf16.mxu0 0
      %1710 = vmatmul.mubr.bf16.gmra.mrb[0].mxu0 %v1388
      %v1711 = vpop.f32.mrb[0].mxu0
      %v1712 = vadd.f32 0.0, %v1711
      %v1713 = vpop.f32.mrb[0].mxu0
      %v1714 = vpop.f32.mrb[0].mxu0
      %v1715 = vadd.f32 0.0, %v1714
      %v1716 = vpop.f32.mrb[0].mxu0
      %1717 = vmatprep.mubr.bf16.mxu0 0
      %1718 = vmatmul.mubr.bf16.gmra.mrb[0].mxu0 %v1510
      %v1719 = vpop.f32.mrb[0].mxu0
      %v1720 = vadd.f32 0.0, %v1719
      %v1721 = vpop.f32.mrb[0].mxu0
      %v1722 = vpop.f32.mrb[0].mxu0
      %v1723 = vadd.f32 0.0, %v1722
      %v1724 = vpop.f32.mrb[0].mxu0
      %1725 = vmatprep.mubr.bf16.mxu0 0
      %1726 = vmatmul.mubr.bf16.gmra.mrb[0].mxu0 %v1632
      %v1727 = vpop.f32.mrb[0].mxu0
      %v1728 = vadd.f32 0.0, %v1727
      %v1729 = vpop.f32.mrb[0].mxu0
      %v1730 = vpop.f32.mrb[0].mxu0
      %v1731 = vadd.f32 0.0, %v1730
      %v1732 = vpop.f32.mrb[0].mxu0
      %1733 = vdwg.mxu0
      %v1734 = vadd.f32 %v1612, %v1672
      %v1735 = vadd.f32 %v1613, %v1675
      %v1736 = vadd.f32 %v1614, %v1680
      %v1737 = vadd.f32 %v1615, %v1683
      %v1738 = vadd.f32 %v1616, %v1688
      %v1739 = vadd.f32 %v1617, %v1691
      %v1740 = vadd.f32 %v1618, %v1696
      %v1741 = vadd.f32 %v1619, %v1699
      %v1742 = vadd.f32 %v1620, %v1704
      %v1743 = vadd.f32 %v1621, %v1707
      %v1744 = vadd.f32 %v1622, %v1712
      %v1745 = vadd.f32 %v1623, %v1715
      %v1746 = vadd.f32 %v1624, %v1720
      %v1747 = vadd.f32 %v1625, %v1723
      %v1748 = vadd.f32 %v1626, %v1728
      %v1749 = vadd.f32 %v1627, %v1731
      %v1750 = vpack.c.bf16 %v1735, %v1734
      %v1751 = vpack.c.bf16 %v1737, %v1736
      %v1752 = vpack.c.bf16 %v1739, %v1738
      %v1753 = vpack.c.bf16 %v1741, %v1740
      %v1754 = vpack.c.bf16 %v1743, %v1742
      %v1755 = vpack.c.bf16 %v1745, %v1744
      %v1756 = vpack.c.bf16 %v1747, %v1746
      %v1757 = vpack.c.bf16 %v1749, %v1748
      %v1766 = vunpack.c.l.b16 %v1750
      %v1767 = vunpack.c.h.b16 %v1750
      %v1768 = vunpack.c.l.b16 %v1751
      %v1769 = vunpack.c.h.b16 %v1751
      %v1770 = vunpack.c.l.b16 %v1752
      %v1771 = vunpack.c.h.b16 %v1752
      %v1772 = vunpack.c.l.b16 %v1753
      %v1773 = vunpack.c.h.b16 %v1753
      %v1774 = vunpack.c.l.b16 %v1754
      %v1775 = vunpack.c.h.b16 %v1754
      %v1776 = vunpack.c.l.b16 %v1755
      %v1777 = vunpack.c.h.b16 %v1755
      %v1778 = vunpack.c.l.b16 %v1756
      %v1779 = vunpack.c.h.b16 %v1756
      %v1780 = vunpack.c.l.b16 %v1757
      %v1781 = vunpack.c.h.b16 %v1757
      %v1782 = vpack.c.b16 %v1766, %v1766
      %v1783 = vpack.c.b16 %v1767, %v1767
      %v1784 = vpack.c.b16 %v1768, %v1768
      %v1785 = vpack.c.b16 %v1769, %v1769
      %v1786 = vpack.c.b16 %v1770, %v1770
      %v1787 = vpack.c.b16 %v1771, %v1771
      %v1788 = vpack.c.b16 %v1772, %v1772
      %v1789 = vpack.c.b16 %v1773, %v1773
      %v1790 = vpack.c.b16 %v1774, %v1774
      %v1791 = vpack.c.b16 %v1775, %v1775
      %v1792 = vpack.c.b16 %v1776, %v1776
      %v1793 = vpack.c.b16 %v1777, %v1777
      %v1794 = vpack.c.b16 %v1778, %v1778
      %v1795 = vpack.c.b16 %v1779, %v1779
      %v1796 = vpack.c.b16 %v1780, %v1780
      %v1797 = vpack.c.b16 %v1781, %v1781
      %1814 = vst [vmem:[%s439] sm:$0xf] %v1782
      %1815 = vst [vmem:[%s439 + $0x4] sm:$0xf] %v1783
      %1816 = vst [vmem:[%s439 + $0x8] sm:$0xf] %v1784
      %1817 = vst [vmem:[%s439 + $0xc] sm:$0xf] %v1785
      %1818 = vst [vmem:[%s439 + $0x10] sm:$0xf] %v1786
      %1819 = vst [vmem:[%s439 + $0x14] sm:$0xf] %v1787
      %1820 = vst [vmem:[%s439 + $0x18] sm:$0xf] %v1788
      %1821 = vst [vmem:[%s439 + $0x1c] sm:$0xf] %v1789
      %1822 = vst [vmem:[%s439 + $0x20] sm:$0xf] %v1790
      %1823 = vst [vmem:[%s439 + $0x24] sm:$0xf] %v1791
      %1824 = vst [vmem:[%s439 + $0x28] sm:$0xf] %v1792
      %1825 = vst [vmem:[%s439 + $0x2c] sm:$0xf] %v1793
      %1826 = vst [vmem:[%s439 + $0x30] sm:$0xf] %v1794
      %1827 = vst [vmem:[%s439 + $0x34] sm:$0xf] %v1795
      %1828 = vst [vmem:[%s439 + $0x38] sm:$0xf] %v1796
      %1829 = vst [vmem:[%s439 + $0x3c] sm:$0xf] %v1797
      %v1830 = vadd.f32 %v1734, %v1735
      %v1831 = vadd.f32 %v1830, %v1736
      %v1832 = vadd.f32 %v1831, %v1737
      %v1833 = vadd.f32 %v1832, %v1738
      %v1834 = vadd.f32 %v1833, %v1739
      %v1835 = vadd.f32 %v1834, %v1740
      %v1836 = vadd.f32 %v1835, %v1741
      %v1837 = vadd.f32 %v1836, %v1742
      %v1838 = vadd.f32 %v1837, %v1743
      %v1839 = vadd.f32 %v1838, %v1744
      %v1840 = vadd.f32 %v1839, %v1745
      %v1841 = vadd.f32 %v1840, %v1746
      %v1842 = vadd.f32 %v1841, %v1747
      %v1843 = vadd.f32 %v1842, %v1748
      %v1844 = vadd.f32 %v1843, %v1749
      %v1845 = vrot.slane %v1844, 4
      %v1846 = vadd.f32 %v1844, %v1845
      %v1847 = vrot.slane %v1846, 2
      %v1848 = vadd.f32 %v1846, %v1847
      %v1849 = vrot.slane %v1848, 1
      %v1850 = vadd.f32 %v1848, %v1849
      %1851 = vst [vmem:[%s447] sm:$0x1] %v1850
      %v1852 = vmul.f32 %v1734, %v1734
      %v1853 = vmul.f32 %v1735, %v1735
      %v1854 = vmul.f32 %v1736, %v1736
      %v1855 = vmul.f32 %v1737, %v1737
      %v1856 = vmul.f32 %v1738, %v1738
      %v1857 = vmul.f32 %v1739, %v1739
      %v1858 = vmul.f32 %v1740, %v1740
      %v1859 = vmul.f32 %v1741, %v1741
      %v1860 = vmul.f32 %v1742, %v1742
      %v1861 = vmul.f32 %v1743, %v1743
      %v1862 = vmul.f32 %v1744, %v1744
      %v1863 = vmul.f32 %v1745, %v1745
      %v1864 = vmul.f32 %v1746, %v1746
      %v1865 = vmul.f32 %v1747, %v1747
      %v1866 = vmul.f32 %v1748, %v1748
      %v1867 = vmul.f32 %v1749, %v1749
      %v1868 = vadd.f32 %v1852, %v1853
      %v1869 = vadd.f32 %v1868, %v1854
      %v1870 = vadd.f32 %v1869, %v1855
      %v1871 = vadd.f32 %v1870, %v1856
      %v1872 = vadd.f32 %v1871, %v1857
      %v1873 = vadd.f32 %v1872, %v1858
      %v1874 = vadd.f32 %v1873, %v1859
      %v1875 = vadd.f32 %v1874, %v1860
      %v1876 = vadd.f32 %v1875, %v1861
      %v1877 = vadd.f32 %v1876, %v1862
      %v1878 = vadd.f32 %v1877, %v1863
      %v1879 = vadd.f32 %v1878, %v1864
      %v1880 = vadd.f32 %v1879, %v1865
      %v1881 = vadd.f32 %v1880, %v1866
      %v1882 = vadd.f32 %v1881, %v1867
      %v1883 = vrot.slane %v1882, 4
      %v1884 = vadd.f32 %v1882, %v1883
      %v1885 = vrot.slane %v1884, 2
      %v1886 = vadd.f32 %v1884, %v1885
      %v1887 = vrot.slane %v1886, 1
      %v1888 = vadd.f32 %v1886, %v1887
      %1889 = vst [vmem:[%s454] sm:$0x1] %v1888
      %s1890 = smul.u32 8, %s25
      %p1891 = scmp.lt.s32.totalorder %s24, 1
      %s1892 = scalar_select %p1891, %s24, 1
      %p1893 = scmp.lt.s32.totalorder %s1890, 15
      %s1894 = scalar_select %p1893, %s1890, 15
      %s1895 = smul.addr %s1894, 2
      %s1896 = smul.addr %s1892, 32
      %s1897 = sadd.s32 %s1895, %s1896
      %s1898 = smul.addr %s1897, 4
      %s1899 = scalar_lea.vmem %s6, %s1898
      %p1900 = scmp.lt.s32.totalorder %s24, 1
      %s1901 = scalar_select %p1900, %s24, 1
      %p1902 = scmp.lt.s32.totalorder %s25, 1
      %s1903 = scalar_select %p1902, %s25, 1
      %s1904 = smul.addr %s1901, 2
      %s1905 = sadd.s32 %s1903, %s1904
      %s1906 = scalar_lea.vmem %s7, %s1905
      %p1907 = scmp.lt.s32.totalorder %s24, 1
      %s1908 = scalar_select %p1907, %s24, 1
      %p1909 = scmp.lt.s32.totalorder %s25, 1
      %s1910 = scalar_select %p1909, %s25, 1
      %s1911 = smul.addr %s1908, 2
      %s1912 = sadd.s32 %s1910, %s1911
      %s1913 = scalar_lea.vmem %s8, %s1912
      // Predicated region
      $region45: #{double_conv_forward.3} parent=43 // pred_check
        %p1914 = pneg %p199
      $region46: #{double_conv_forward.3} parent=43 // pred_check_branch
        %1916 = sbr.rel (%p1914) target = $region48
      $region47: #{double_conv_forward.3} parent=43 // pred_region
        %s1917 = smul.u32 8, %s25
      $region48: #{double_conv_forward.3} parent=43 // pred_fallthru
        _
      // Predicated region
      $region49: #{double_conv_forward.3} parent=43 // pred_check
        %p1918 = pneg %p227
      $region50: #{double_conv_forward.3} parent=43 // pred_check_branch
        %1920 = sbr.rel (%p1918) target = $region52
      $region51: #{double_conv_forward.3} parent=43 // pred_region
        _
      $region52: #{double_conv_forward.3} parent=43 // pred_fallthru
        _
      // Predicated region
      $region53: #{double_conv_forward.3} parent=43 // pred_check
        %p1921 = pneg %p255
      $region54: #{double_conv_forward.3} parent=43 // pred_check_branch
        %1923 = sbr.rel (%p1921) target = $region56
      $region55: #{double_conv_forward.3} parent=43 // pred_region
        _
      $region56: #{double_conv_forward.3} parent=43 // pred_fallthru
        _
    $region44: #{double_conv_forward.3} parent=5 // pred_fallthru
      _
    %p1924 = scmp.le.s32.totalorder 2, %s15
    // Predicated region
    $region57: #{double_conv_forward.3} parent=5 // pred_check
      %p1925 = pneg %p1924
    $region58: #{double_conv_forward.3} parent=5 // pred_check_branch
      %1927 = sbr.rel (%p1925) target = $region60
    $region59: #{double_conv_forward.3} parent=5 // pred_region
      %s1928 = ssub.s32 %s15, 2
      // Predicated region
      $region61: #{double_conv_forward.3} parent=59 // pred_check
        %p1929 = pneg %p205
      $region62: #{double_conv_forward.3} parent=59 // pred_check_branch
        %1931 = sbr.rel (%p1929) target = $region64
      $region63: #{double_conv_forward.3} parent=59 // pred_region
        %s1932 = smul.u32 8, %s27
        %p1933 = scmp.lt.s32.totalorder %s26, 1
        %s1934 = scalar_select %p1933, %s26, 1
        %p1935 = scmp.lt.s32.totalorder %s1932, 15
        %s1936 = scalar_select %p1935, %s1932, 15
        %s1937 = smul.addr %s1936, 2
        %s1938 = smul.addr %s1934, 32
        %s1939 = sadd.s32 %s1937, %s1938
        %s1940 = smul.addr %s1939, 4
        %s1941 = scalar_lea.vmem %s6, %s1940
      $region64: #{double_conv_forward.3} parent=59 // pred_fallthru
        _
      // Predicated region
      $region65: #{double_conv_forward.3} parent=59 // pred_check
        %p1942 = pneg %p233
      $region66: #{double_conv_forward.3} parent=59 // pred_check_branch
        %1944 = sbr.rel (%p1942) target = $region68
      $region67: #{double_conv_forward.3} parent=59 // pred_region
        %p1945 = scmp.lt.s32.totalorder %s26, 1
        %s1946 = scalar_select %p1945, %s26, 1
        %p1947 = scmp.lt.s32.totalorder %s27, 1
        %s1948 = scalar_select %p1947, %s27, 1
        %s1949 = smul.addr %s1946, 2
        %s1950 = sadd.s32 %s1948, %s1949
        %s1951 = scalar_lea.vmem %s7, %s1950
      $region68: #{double_conv_forward.3} parent=59 // pred_fallthru
        _
      // Predicated region
      $region69: #{double_conv_forward.3} parent=59 // pred_check
        %p1952 = pneg %p261
      $region70: #{double_conv_forward.3} parent=59 // pred_check_branch
        %1954 = sbr.rel (%p1952) target = $region72
      $region71: #{double_conv_forward.3} parent=59 // pred_region
        %p1955 = scmp.lt.s32.totalorder %s26, 1
        %s1956 = scalar_select %p1955, %s26, 1
        %p1957 = scmp.lt.s32.totalorder %s27, 1
        %s1958 = scalar_select %p1957, %s27, 1
        %s1959 = smul.addr %s1956, 2
        %s1960 = sadd.s32 %s1958, %s1959
        %s1961 = scalar_lea.vmem %s8, %s1960
      $region72: #{double_conv_forward.3} parent=59 // pred_fallthru
        _
    $region60: #{double_conv_forward.3} parent=5 // pred_fallthru
      _
  $region6: #{double_conv_forward.3} parent=0 // loop_footer
    %s19 = sadd.s32 1, %s15
  $region7: #{double_conv_forward.3} parent=0 // loop_footer_branch
    %14 = sbr.rel target = $region3
  $region8: #{double_conv_forward.3} parent=0 // loop_exit
    _

// kernel: double_conv_forward.4
$region0: #{double_conv_forward.4}
  #allocation0 [shape = 'u32[]', space=smem, size = 0x4, offset = 0x4, fixed_abs, tag = 'smem constant byte address 0x4 - core index']
  #allocation1 [shape = 'u32[144,128]{1,0:T(1,128)}', space=vmem, size = 0x12000, scoped, tag = 'internal scratch']
  #allocation2 [shape = 'f32[10,32,128]{2,1,0:T(8,128)}', space=vmem, size = 0x28000, scoped, tag = 'scratch operand']
  %s0 = inlined_call_operand.vmem [shape: bf16[2,16,16,128], index: 0, kind: input, shape index: {}]
  %s1 = inlined_call_operand.vmem [shape: bf16[2,2,16,128], index: 1, kind: input, shape index: {}]
  %s2 = inlined_call_operand.vmem [shape: bf16[2,2,16,128], index: 2, kind: input, shape index: {}]
  %s3 = inlined_call_operand.vmem [shape: bf16[9,128,128], index: 3, kind: input, shape index: {}]
  %s4 = inlined_call_operand.vmem [shape: f32[1,128], index: 4, kind: input, shape index: {}]
  %s5 = inlined_call_operand.vmem [shape: f32[1,128], index: 5, kind: input, shape index: {}]
  %s6 = inlined_call_operand.vmem [shape: bf16[2,16,16,128], index: 6, kind: output, shape index: {0}]
  %s7 = inlined_call_operand.vmem [shape: f32[2,2,1,128], index: 7, kind: output, shape index: {1}]
  %s8 = inlined_call_operand.vmem [shape: f32[2,2,1,128], index: 8, kind: output, shape index: {2}]
  %9 = xla_tuple %s6, %s7, %s8
  %s10 = sld [smem:[#allocation0]]
  $region73: #{double_conv_forward.4} parent=0
    _
  %s12 = ssub.s32 1, %s10
  %s13 = scalar_select 0, %s12, %s10
  loop: start=0, step=1, limit=6
  $region2: #{double_conv_forward.4} parent=0 // loop_pre_header
    _
  $region3: #{double_conv_forward.4} parent=0 // loop_header
    %s15 = sphi 0, %s19
    %p16 = scmp.ge.s32.totalorder %s15, 6
    %s22 = sphi 0, %s34
    %s23 = sphi 0, %s30
    %s24 = sphi 0, %s22
    %s25 = sphi 0, %s23
    %s26 = sphi 0, %s24
    %s27 = sphi 0, %s25
    %s39 = sphi 0, %s41
    %s42 = sphi 0, %s39
    %s43 = sphi 0, %s42
    %s59 = sphi 0, %s43
    %s67 = sphi 0, %s69
    %s70 = sphi 0, %s67
    %s71 = sphi 0, %s70
    %s87 = sphi 0, %s71
    %s95 = sphi 0, %s97
    %s98 = sphi 0, %s95
    %s99 = sphi 0, %s98
    %s115 = sphi 0, %s99
    %s119 = sphi 0, %s119
    %s121 = sphi 0, %s119
    %s122 = sphi 0, %s121
    %s136 = sphi 0, %s122
    %s140 = sphi 0, %s140
    %s142 = sphi 0, %s140
    %s143 = sphi 0, %s142
    %s157 = sphi 0, %s143
    %s161 = sphi 0, %s161
    %s163 = sphi 0, %s161
    %s164 = sphi 0, %s163
    %s178 = sphi 0, %s164
    %s186 = sphi 0, %s188
    %s189 = sphi 0, %s186
    %s190 = sphi 0, %s189
    %s206 = sphi 0, %s190
    %s214 = sphi 0, %s216
    %s217 = sphi 0, %s214
    %s218 = sphi 0, %s217
    %s234 = sphi 0, %s218
    %s242 = sphi 0, %s244
    %s245 = sphi 0, %s242
    %s246 = sphi 0, %s245
    %s262 = sphi 0, %s246
  $region4: #{double_conv_forward.4} parent=0 // loop_header_branch
    %18 = sbr.rel (%p16) target = $region8
  $region5: #{double_conv_forward.4} parent=0 // loop_body
    %s20 = ssub.s32 %s15, 1
    %s21 = ssub.s32 %s15, 2
    %s28 = sadd.s32 1, %s23
    %p29 = scmp.ge.s32.totalorder %s28, 2
    %s30 = scalar_select %p29, 0, %s28
    %s31 = sadd.s32 1, %s22
    %s32 = scalar_select %p29, %s31, %s22
    %p33 = scmp.ge.s32.totalorder %s32, 2
    %s34 = scalar_select %p33, 0, %s32
    %s35 = ssub.s32 %s22, %s34
    %s36 = ssub.s32 %s23, %s30
    %s37 = sor.u32 %s35, %s36
    %p38 = scmp.eq.s32.totalorder %s37, 0
    %s40 = sadd.s32 %s39, 1
    %s41 = scalar_select %p38, %s39, %s40
    %p44 = pneg %p38
    %p45 = scmp.eq.s32.totalorder %s15, 3
    %p46 = por %p44, %p45
    %p47 = scmp.ne.s32.totalorder %s39, %s42
    %p48 = scmp.eq.s32.totalorder %s15, 0
    %p49 = por %p47, %p48
    %p50 = scmp.ne.s32.totalorder %s39, %s42
    %p51 = scmp.eq.s32.totalorder %s20, 3
    %p52 = por %p50, %p51
    %p53 = scmp.ne.s32.totalorder %s42, %s43
    %p54 = scmp.eq.s32.totalorder %s20, 0
    %p55 = por %p53, %p54
    %p56 = scmp.ne.s32.totalorder %s42, %s43
    %p57 = scmp.eq.s32.totalorder %s21, 3
    %p58 = por %p56, %p57
    %p60 = scmp.ne.s32.totalorder %s43, %s59
    %p61 = scmp.eq.s32.totalorder %s21, 0
    %p62 = por %p60, %p61
    %s63 = ssub.s32 %s22, %s34
    %s64 = ssub.s32 %s23, %s30
    %s65 = sor.u32 %s63, %s64
    %p66 = scmp.eq.s32.totalorder %s65, 0
    %s68 = sadd.s32 %s67, 1
    %s69 = scalar_select %p66, %s67, %s68
    %p72 = pneg %p66
    %p73 = scmp.eq.s32.totalorder %s15, 3
    %p74 = por %p72, %p73
    %p75 = scmp.ne.s32.totalorder %s67, %s70
    %p76 = scmp.eq.s32.totalorder %s15, 0
    %p77 = por %p75, %p76
    %p78 = scmp.ne.s32.totalorder %s67, %s70
    %p79 = scmp.eq.s32.totalorder %s20, 3
    %p80 = por %p78, %p79
    %p81 = scmp.ne.s32.totalorder %s70, %s71
    %p82 = scmp.eq.s32.totalorder %s20, 0
    %p83 = por %p81, %p82
    %p84 = scmp.ne.s32.totalorder %s70, %s71
    %p85 = scmp.eq.s32.totalorder %s21, 3
    %p86 = por %p84, %p85
    %p88 = scmp.ne.s32.totalorder %s71, %s87
    %p89 = scmp.eq.s32.totalorder %s21, 0
    %p90 = por %p88, %p89
    %s91 = ssub.s32 %s22, %s34
    %s92 = ssub.s32 %s23, %s30
    %s93 = sor.u32 %s91, %s92
    %p94 = scmp.eq.s32.totalorder %s93, 0
    %s96 = sadd.s32 %s95, 1
    %s97 = scalar_select %p94, %s95, %s96
    %p100 = pneg %p94
    %p101 = scmp.eq.s32.totalorder %s15, 3
    %p102 = por %p100, %p101
    %p103 = scmp.ne.s32.totalorder %s95, %s98
    %p104 = scmp.eq.s32.totalorder %s15, 0
    %p105 = por %p103, %p104
    %p106 = scmp.ne.s32.totalorder %s95, %s98
    %p107 = scmp.eq.s32.totalorder %s20, 3
    %p108 = por %p106, %p107
    %p109 = scmp.ne.s32.totalorder %s98, %s99
    %p110 = scmp.eq.s32.totalorder %s20, 0
    %p111 = por %p109, %p110
    %p112 = scmp.ne.s32.totalorder %s98, %s99
    %p113 = scmp.eq.s32.totalorder %s21, 3
    %p114 = por %p112, %p113
    %p116 = scmp.ne.s32.totalorder %s99, %s115
    %p117 = scmp.eq.s32.totalorder %s21, 0
    %p118 = por %p116, %p117
    %s120 = sadd.s32 %s119, 1
    %p123 = scmp.eq.s32.totalorder %s15, 3
    %p124 = scmp.ne.s32.totalorder %s119, %s121
    %p125 = scmp.eq.s32.totalorder %s15, 0
    %p126 = por %p124, %p125
    %p127 = scmp.ne.s32.totalorder %s119, %s121
    %p128 = scmp.eq.s32.totalorder %s20, 3
    %p129 = por %p127, %p128
    %p130 = scmp.ne.s32.totalorder %s121, %s122
    %p131 = scmp.eq.s32.totalorder %s20, 0
    %p132 = por %p130, %p131
    %p133 = scmp.ne.s32.totalorder %s121, %s122
    %p134 = scmp.eq.s32.totalorder %s21, 3
    %p135 = por %p133, %p134
    %p137 = scmp.ne.s32.totalorder %s122, %s136
    %p138 = scmp.eq.s32.totalorder %s21, 0
    %p139 = por %p137, %p138
    %s141 = sadd.s32 %s140, 1
    %p144 = scmp.eq.s32.totalorder %s15, 3
    %p145 = scmp.ne.s32.totalorder %s140, %s142
    %p146 = scmp.eq.s32.totalorder %s15, 0
    %p147 = por %p145, %p146
    %p148 = scmp.ne.s32.totalorder %s140, %s142
    %p149 = scmp.eq.s32.totalorder %s20, 3
    %p150 = por %p148, %p149
    %p151 = scmp.ne.s32.totalorder %s142, %s143
    %p152 = scmp.eq.s32.totalorder %s20, 0
    %p153 = por %p151, %p152
    %p154 = scmp.ne.s32.totalorder %s142, %s143
    %p155 = scmp.eq.s32.totalorder %s21, 3
    %p156 = por %p154, %p155
    %p158 = scmp.ne.s32.totalorder %s143, %s157
    %p159 = scmp.eq.s32.totalorder %s21, 0
    %p160 = por %p158, %p159
    %s162 = sadd.s32 %s161, 1
    %p165 = scmp.eq.s32.totalorder %s15, 3
    %p166 = scmp.ne.s32.totalorder %s161, %s163
    %p167 = scmp.eq.s32.totalorder %s15, 0
    %p168 = por %p166, %p167
    %p169 = scmp.ne.s32.totalorder %s161, %s163
    %p170 = scmp.eq.s32.totalorder %s20, 3
    %p171 = por %p169, %p170
    %p172 = scmp.ne.s32.totalorder %s163, %s164
    %p173 = scmp.eq.s32.totalorder %s20, 0
    %p174 = por %p172, %p173
    %p175 = scmp.ne.s32.totalorder %s163, %s164
    %p176 = scmp.eq.s32.totalorder %s21, 3
    %p177 = por %p175, %p176
    %p179 = scmp.ne.s32.totalorder %s164, %s178
    %p180 = scmp.eq.s32.totalorder %s21, 0
    %p181 = por %p179, %p180
    %s182 = ssub.s32 %s22, %s34
    %s183 = ssub.s32 %s23, %s30
    %s184 = sor.u32 %s182, %s183
    %p185 = scmp.eq.s32.totalorder %s184, 0
    %s187 = sadd.s32 %s186, 1
    %s188 = scalar_select %p185, %s186, %s187
    %p191 = pneg %p185
    %p192 = scmp.eq.s32.totalorder %s15, 3
    %p193 = por %p191, %p192
    %p194 = scmp.ne.s32.totalorder %s186, %s189
    %p195 = scmp.eq.s32.totalorder %s15, 0
    %p196 = por %p194, %p195
    %p197 = scmp.ne.s32.totalorder %s186, %s189
    %p198 = scmp.eq.s32.totalorder %s20, 3
    %p199 = por %p197, %p198
    %p200 = scmp.ne.s32.totalorder %s189, %s190
    %p201 = scmp.eq.s32.totalorder %s20, 0
    %p202 = por %p200, %p201
    %p203 = scmp.ne.s32.totalorder %s189, %s190
    %p204 = scmp.eq.s32.totalorder %s21, 3
    %p205 = por %p203, %p204
    %p207 = scmp.ne.s32.totalorder %s190, %s206
    %p208 = scmp.eq.s32.totalorder %s21, 0
    %p209 = por %p207, %p208
    %s210 = ssub.s32 %s22, %s34
    %s211 = ssub.s32 %s23, %s30
    %s212 = sor.u32 %s210, %s211
    %p213 = scmp.eq.s32.totalorder %s212, 0
    %s215 = sadd.s32 %s214, 1
    %s216 = scalar_select %p213, %s214, %s215
    %p219 = pneg %p213
    %p220 = scmp.eq.s32.totalorder %s15, 3
    %p221 = por %p219, %p220
    %p222 = scmp.ne.s32.totalorder %s214, %s217
    %p223 = scmp.eq.s32.totalorder %s15, 0
    %p224 = por %p222, %p223
    %p225 = scmp.ne.s32.totalorder %s214, %s217
    %p226 = scmp.eq.s32.totalorder %s20, 3
    %p227 = por %p225, %p226
    %p228 = scmp.ne.s32.totalorder %s217, %s218
    %p229 = scmp.eq.s32.totalorder %s20, 0
    %p230 = por %p228, %p229
    %p231 = scmp.ne.s32.totalorder %s217, %s218
    %p232 = scmp.eq.s32.totalorder %s21, 3
    %p233 = por %p231, %p232
    %p235 = scmp.ne.s32.totalorder %s218, %s234
    %p236 = scmp.eq.s32.totalorder %s21, 0
    %p237 = por %p235, %p236
    %s238 = ssub.s32 %s22, %s34
    %s239 = ssub.s32 %s23, %s30
    %s240 = sor.u32 %s238, %s239
    %p241 = scmp.eq.s32.totalorder %s240, 0
    %s243 = sadd.s32 %s242, 1
    %s244 = scalar_select %p241, %s242, %s243
    %p247 = pneg %p241
    %p248 = scmp.eq.s32.totalorder %s15, 3
    %p249 = por %p247, %p248
    %p250 = scmp.ne.s32.totalorder %s242, %s245
    %p251 = scmp.eq.s32.totalorder %s15, 0
    %p252 = por %p250, %p251
    %p253 = scmp.ne.s32.totalorder %s242, %s245
    %p254 = scmp.eq.s32.totalorder %s20, 3
    %p255 = por %p253, %p254
    %p256 = scmp.ne.s32.totalorder %s245, %s246
    %p257 = scmp.eq.s32.totalorder %s20, 0
    %p258 = por %p256, %p257
    %p259 = scmp.ne.s32.totalorder %s245, %s246
    %p260 = scmp.eq.s32.totalorder %s21, 3
    %p261 = por %p259, %p260
    %p263 = scmp.ne.s32.totalorder %s246, %s262
    %p264 = scmp.eq.s32.totalorder %s21, 0
    %p265 = por %p263, %p264
    %p266 = scmp.le.s32.totalorder 1, %s15
    %p267 = scmp.lt.s32.totalorder %s15, 5
    %p268 = pnand %p266, %p267
    %p269 = pneg %p268
    // Predicated region
    $region9: #{double_conv_forward.4} parent=5 // pred_check
      _
    $region10: #{double_conv_forward.4} parent=5 // pred_check_branch
      %271 = sbr.rel (%p268) target = $region12
    $region11: #{double_conv_forward.4} parent=5 // pred_region
      %s272 = ssub.s32 %s15, 1
      // Predicated region
      $region13: #{double_conv_forward.4} parent=11 // pred_check
        %p273 = pneg %p132
      $region14: #{double_conv_forward.4} parent=11 // pred_check_branch
        %275 = sbr.rel (%p273) target = $region16
      $region15: #{double_conv_forward.4} parent=11 // pred_region
        _
      $region16: #{double_conv_forward.4} parent=11 // pred_fallthru
        _
      // Predicated region
      $region17: #{double_conv_forward.4} parent=11 // pred_check
        %p276 = pneg %p153
      $region18: #{double_conv_forward.4} parent=11 // pred_check_branch
        %278 = sbr.rel (%p276) target = $region20
      $region19: #{double_conv_forward.4} parent=11 // pred_region
        _
      $region20: #{double_conv_forward.4} parent=11 // pred_fallthru
        _
      // Predicated region
      $region21: #{double_conv_forward.4} parent=11 // pred_check
        %p279 = pneg %p174
      $region22: #{double_conv_forward.4} parent=11 // pred_check_branch
        %281 = sbr.rel (%p279) target = $region24
      $region23: #{double_conv_forward.4} parent=11 // pred_region
        _
      $region24: #{double_conv_forward.4} parent=11 // pred_fallthru
        _
    $region12: #{double_conv_forward.4} parent=5 // pred_fallthru
      _
    %p282 = scmp.lt.s32.totalorder %s15, 4
    // Predicated region
    $region25: #{double_conv_forward.4} parent=5 // pred_check
      %p283 = pneg %p282
    $region26: #{double_conv_forward.4} parent=5 // pred_check_branch
      %285 = sbr.rel (%p283) target = $region28
    $region27: #{double_conv_forward.4} parent=5 // pred_region
      // Predicated region
      $region29: #{double_conv_forward.4} parent=27 // pred_check
        %p286 = pneg %p49
      $region30: #{double_conv_forward.4} parent=27 // pred_check_branch
        %288 = sbr.rel (%p286) target = $region32
      $region31: #{double_conv_forward.4} parent=27 // pred_region
        %s289 = smul.u32 8, %s23
        %p290 = scmp.lt.s32.totalorder %s22, 1
        %s291 = scalar_select %p290, %s22, 1
        %p292 = scmp.lt.s32.totalorder %s289, 15
        %s293 = scalar_select %p292, %s289, 15
        %s294 = smul.addr %s293, 2
        %s295 = smul.addr %s291, 32
        %s296 = sadd.s32 %s294, %s295
        %s297 = smul.addr %s296, 4
        %s298 = scalar_lea.vmem %s0, %s297
        %s299 = smul.u32 8, %s23
      $region32: #{double_conv_forward.4} parent=27 // pred_fallthru
        _
      // Predicated region
      $region33: #{double_conv_forward.4} parent=27 // pred_check
        %p300 = pneg %p77
      $region34: #{double_conv_forward.4} parent=27 // pred_check_branch
        %302 = sbr.rel (%p300) target = $region36
      $region35: #{double_conv_forward.4} parent=27 // pred_region
        %p303 = scmp.lt.s32.totalorder %s22, 1
        %s304 = scalar_select %p303, %s22, 1
        %p305 = scmp.lt.s32.totalorder %s23, 1
        %s306 = scalar_select %p305, %s23, 1
        %s307 = smul.addr %s306, 2
        %s308 = smul.addr %s304, 4
        %s309 = sadd.s32 %s307, %s308
        %s310 = smul.addr %s309, 4
        %s311 = scalar_lea.vmem %s1, %s310
      $region36: #{double_conv_forward.4} parent=27 // pred_fallthru
        _
      // Predicated region
      $region37: #{double_conv_forward.4} parent=27 // pred_check
        %p312 = pneg %p105
      $region38: #{double_conv_forward.4} parent=27 // pred_check_branch
        %314 = sbr.rel (%p312) target = $region40
      $region39: #{double_conv_forward.4} parent=27 // pred_region
        %p315 = scmp.lt.s32.totalorder %s22, 1
        %s316 = scalar_select %p315, %s22, 1
        %p317 = scmp.lt.s32.totalorder %s23, 1
        %s318 = scalar_select %p317, %s23, 1
        %s319 = smul.addr %s318, 2
        %s320 = smul.addr %s316, 4
        %s321 = sadd.s32 %s319, %s320
        %s322 = smul.addr %s321, 4
        %s323 = scalar_lea.vmem %s2, %s322
      $region40: #{double_conv_forward.4} parent=27 // pred_fallthru
        _
    $region28: #{double_conv_forward.4} parent=5 // pred_fallthru
      _
    %p324 = scmp.le.s32.totalorder 1, %s15
    %p325 = scmp.lt.s32.totalorder %s15, 5
    %p326 = pnand %p324, %p325
    %p327 = pneg %p326
    // Predicated region
    $region41: #{double_conv_forward.4} parent=5 // pred_check
      _
    $region42: #{double_conv_forward.4} parent=5 // pred_check_branch
      %329 = sbr.rel (%p326) target = $region44
    $region43: #{double_conv_forward.4} parent=5 // pred_region
      %s330 = ssub.s32 %s15, 1
      %s331 = smul.u32 8, %s25
      %p332 = scmp.lt.s32.totalorder %s24, 1
      %s333 = scalar_select %p332, %s24, 1
      %p334 = scmp.lt.s32.totalorder %s331, 15
      %s335 = scalar_select %p334, %s331, 15
      %s336 = smul.addr %s335, 2
      %s337 = smul.addr %s333, 32
      %s338 = sadd.s32 %s336, %s337
      %s339 = smul.addr %s338, 4
      %s340 = scalar_lea.vmem %s0, %s339
      %p341 = pneg %p55
      %p342 = pneg %p52
      %p343 = scmp.lt.s32.totalorder %s24, 1
      %s344 = scalar_select %p343, %s24, 1
      %p345 = scmp.lt.s32.totalorder %s25, 1
      %s346 = scalar_select %p345, %s25, 1
      %s347 = smul.addr %s346, 2
      %s348 = smul.addr %s344, 4
      %s349 = sadd.s32 %s347, %s348
      %s350 = smul.addr %s349, 4
      %s351 = scalar_lea.vmem %s1, %s350
      %p352 = pneg %p83
      %p353 = pneg %p80
      %p354 = scmp.lt.s32.totalorder %s24, 1
      %s355 = scalar_select %p354, %s24, 1
      %p356 = scmp.lt.s32.totalorder %s25, 1
      %s357 = scalar_select %p356, %s25, 1
      %s358 = smul.addr %s357, 2
      %s359 = smul.addr %s355, 4
      %s360 = sadd.s32 %s358, %s359
      %s361 = smul.addr %s360, 4
      %s362 = scalar_lea.vmem %s2, %s361
      %p363 = pneg %p111
      %p364 = pneg %p108
      %p365 = pneg %p132
      %p366 = pneg %p129
      %p367 = pneg %p153
      %p368 = pneg %p150
      %p369 = pneg %p174
      %p370 = pneg %p171
      %p371 = pneg %p202
      %p372 = pneg %p199
      %s373 = smul.u32 8, %s25
      %p374 = scmp.lt.s32.totalorder %s24, 1
      %s375 = scalar_select %p374, %s24, 1
      %p376 = scmp.lt.s32.totalorder %s373, 15
      %s377 = scalar_select %p376, %s373, 15
      %s378 = smul.addr %s377, 2
      %s379 = smul.addr %s375, 32
      %s380 = sadd.s32 %s378, %s379
      %s381 = smul.addr %s380, 4
      %s382 = scalar_lea.vmem %s6, %s381
      %p383 = pneg %p230
      %p384 = pneg %p227
      %p385 = scmp.lt.s32.totalorder %s24, 1
      %s386 = scalar_select %p385, %s24, 1
      %p387 = scmp.lt.s32.totalorder %s25, 1
      %s388 = scalar_select %p387, %s25, 1
      %s389 = smul.addr %s386, 2
      %s390 = sadd.s32 %s388, %s389
      %s391 = scalar_lea.vmem %s7, %s390
      %p392 = pneg %p258
      %p393 = pneg %p255
      %p394 = scmp.lt.s32.totalorder %s24, 1
      %s395 = scalar_select %p394, %s24, 1
      %p396 = scmp.lt.s32.totalorder %s25, 1
      %s397 = scalar_select %p396, %s25, 1
      %s398 = smul.addr %s395, 2
      %s399 = sadd.s32 %s397, %s398
      %s400 = scalar_lea.vmem %s8, %s399
      %s401 = smul.u32 8, %s25
      %p402 = scmp.lt.s32.totalorder %s24, 1
      %s403 = scalar_select %p402, %s24, 1
      %p404 = scmp.lt.s32.totalorder %s401, 15
      %s405 = scalar_select %p404, %s401, 15
      %s406 = smul.addr %s405, 2
      %s407 = smul.addr %s403, 32
      %s408 = sadd.s32 %s406, %s407
      %s409 = smul.addr %s408, 4
      %s410 = scalar_lea.vmem %s0, %s409
      %s411 = smul.u32 8, %s25
      %p412 = scmp.lt.s32.totalorder %s24, 1
      %s413 = scalar_select %p412, %s24, 1
      %p414 = scmp.lt.s32.totalorder %s25, 1
      %s415 = scalar_select %p414, %s25, 1
      %s416 = smul.addr %s415, 2
      %s417 = smul.addr %s413, 4
      %s418 = sadd.s32 %s416, %s417
      %s419 = smul.addr %s418, 4
      %s420 = scalar_lea.vmem %s1, %s419
      %p421 = scmp.lt.s32.totalorder %s24, 1
      %s422 = scalar_select %p421, %s24, 1
      %p423 = scmp.lt.s32.totalorder %s25, 1
      %s424 = scalar_select %p423, %s25, 1
      %s425 = smul.addr %s424, 2
      %s426 = smul.addr %s422, 4
      %s427 = sadd.s32 %s425, %s426
      %s428 = smul.addr %s427, 4
      %s429 = scalar_lea.vmem %s2, %s428
      %s430 = smul.u32 8, %s25
      %p431 = scmp.lt.s32.totalorder %s24, 1
      %s432 = scalar_select %p431, %s24, 1
      %p433 = scmp.lt.s32.totalorder %s430, 15
      %s434 = scalar_select %p433, %s430, 15
      %s435 = smul.addr %s434, 2
      %s436 = smul.addr %s432, 32
      %s437 = sadd.s32 %s435, %s436
      %s438 = smul.addr %s437, 4
      %s439 = scalar_lea.vmem %s6, %s438
      %s440 = smul.u32 8, %s25
      %p441 = scmp.lt.s32.totalorder %s24, 1
      %s442 = scalar_select %p441, %s24, 1
      %p443 = scmp.lt.s32.totalorder %s25, 1
      %s444 = scalar_select %p443, %s25, 1
      %s445 = smul.addr %s442, 2
      %s446 = sadd.s32 %s444, %s445
      %s447 = scalar_lea.vmem %s7, %s446
      %p448 = scmp.lt.s32.totalorder %s24, 1
      %s449 = scalar_select %p448, %s24, 1
      %p450 = scmp.lt.s32.totalorder %s25, 1
      %s451 = scalar_select %p450, %s25, 1
      %s452 = smul.addr %s449, 2
      %s453 = sadd.s32 %s451, %s452
      %s454 = scalar_lea.vmem %s8, %s453
      %v456 = vld [vmem:[%s420] sm:$0xf]
      %v457 = vld [vmem:[%s420 + $0x4] sm:$0xf]
      %v458 = vunpack.c.l.bf16 %v456
      %v459 = vunpack.c.l.bf16 %v457
      %v460 = vld [vmem:[%s410] sm:$0xf]
      %v461 = vld [vmem:[%s410 + $0x4] sm:$0xf]
      %v462 = vld [vmem:[%s410 + $0x8] sm:$0xf]
      %v463 = vld [vmem:[%s410 + $0xc] sm:$0xf]
      %v464 = vld [vmem:[%s410 + $0x10] sm:$0xf]
      %v465 = vld [vmem:[%s410 + $0x14] sm:$0xf]
      %v466 = vld [vmem:[%s410 + $0x18] sm:$0xf]
      %v467 = vld [vmem:[%s410 + $0x1c] sm:$0xf]
      %v468 = vld [vmem:[%s410 + $0x20] sm:$0xf]
      %v469 = vld [vmem:[%s410 + $0x24] sm:$0xf]
      %v470 = vld [vmem:[%s410 + $0x28] sm:$0xf]
      %v471 = vld [vmem:[%s410 + $0x2c] sm:$0xf]
      %v472 = vld [vmem:[%s410 + $0x30] sm:$0xf]
      %v473 = vld [vmem:[%s410 + $0x34] sm:$0xf]
      %v474 = vld [vmem:[%s410 + $0x38] sm:$0xf]
      %v475 = vld [vmem:[%s410 + $0x3c] sm:$0xf]
      %v476 = vunpack.c.l.bf16 %v460
      %v477 = vunpack.c.l.bf16 %v461
      %v478 = vunpack.c.l.bf16 %v462
      %v479 = vunpack.c.l.bf16 %v463
      %v480 = vunpack.c.l.bf16 %v464
      %v481 = vunpack.c.l.bf16 %v465
      %v482 = vunpack.c.l.bf16 %v466
      %v483 = vunpack.c.l.bf16 %v467
      %v484 = vunpack.c.l.bf16 %v468
      %v485 = vunpack.c.l.bf16 %v469
      %v486 = vunpack.c.l.bf16 %v470
      %v487 = vunpack.c.l.bf16 %v471
      %v488 = vunpack.c.l.bf16 %v472
      %v489 = vunpack.c.l.bf16 %v473
      %v490 = vunpack.c.l.bf16 %v474
      %v491 = vunpack.c.l.bf16 %v475
      %v492 = vld [vmem:[%s429] sm:$0xf]
      %v493 = vld [vmem:[%s429 + $0x4] sm:$0xf]
      %v494 = vunpack.c.l.bf16 %v492
      %v495 = vunpack.c.l.bf16 %v493
      %v496 = vld [vmem:[%s4] sm:$0x1]
      %v497 = vld [vmem:[%s5] sm:$0x1]
      %v499 = vlaneseq
      %v500 = vshrl.u32 %v499, 7
      %v501 = vsub.s32 0, %v500
      %v502 = vrot.slane %v496, %v501
      %v504 = vmul.f32 %v476, %v502
      %v505 = vmul.f32 %v477, %v502
      %v506 = vmul.f32 %v478, %v502
      %v507 = vmul.f32 %v479, %v502
      %v508 = vmul.f32 %v480, %v502
      %v509 = vmul.f32 %v481, %v502
      %v510 = vmul.f32 %v482, %v502
      %v511 = vmul.f32 %v483, %v502
      %v512 = vmul.f32 %v484, %v502
      %v513 = vmul.f32 %v485, %v502
      %v514 = vmul.f32 %v486, %v502
      %v515 = vmul.f32 %v487, %v502
      %v516 = vmul.f32 %v488, %v502
      %v517 = vmul.f32 %v489, %v502
      %v518 = vmul.f32 %v490, %v502
      %v519 = vmul.f32 %v491, %v502
      %v521 = vlaneseq
      %v522 = vshrl.u32 %v521, 7
      %v523 = vsub.s32 0, %v522
      %v524 = vrot.slane %v497, %v523
      %v526 = vadd.f32 %v504, %v524
      %v527 = vadd.f32 %v505, %v524
      %v528 = vadd.f32 %v506, %v524
      %v529 = vadd.f32 %v507, %v524
      %v530 = vadd.f32 %v508, %v524
      %v531 = vadd.f32 %v509, %v524
      %v532 = vadd.f32 %v510, %v524
      %v533 = vadd.f32 %v511, %v524
      %v534 = vadd.f32 %v512, %v524
      %v535 = vadd.f32 %v513, %v524
      %v536 = vadd.f32 %v514, %v524
      %v537 = vadd.f32 %v515, %v524
      %v538 = vadd.f32 %v516, %v524
      %v539 = vadd.f32 %v517, %v524
      %v540 = vadd.f32 %v518, %v524
      %v541 = vadd.f32 %v519, %v524
      %vm542 = vcmp.ge.f32.partialorder %v526, 0.0
      %vm543 = vcmp.ge.f32.partialorder %v527, 0.0
      %vm544 = vcmp.ge.f32.partialorder %v528, 0.0
      %vm545 = vcmp.ge.f32.partialorder %v529, 0.0
      %vm546 = vcmp.ge.f32.partialorder %v530, 0.0
      %vm547 = vcmp.ge.f32.partialorder %v531, 0.0
      %vm548 = vcmp.ge.f32.partialorder %v532, 0.0
      %vm549 = vcmp.ge.f32.partialorder %v533, 0.0
      %vm550 = vcmp.ge.f32.partialorder %v534, 0.0
      %vm551 = vcmp.ge.f32.partialorder %v535, 0.0
      %vm552 = vcmp.ge.f32.partialorder %v536, 0.0
      %vm553 = vcmp.ge.f32.partialorder %v537, 0.0
      %vm554 = vcmp.ge.f32.partialorder %v538, 0.0
      %vm555 = vcmp.ge.f32.partialorder %v539, 0.0
      %vm556 = vcmp.ge.f32.partialorder %v540, 0.0
      %vm557 = vcmp.ge.f32.partialorder %v541, 0.0
      %v558 = vmul.f32 %v526, 0.2
      %v559 = vmul.f32 %v527, 0.2
      %v560 = vmul.f32 %v528, 0.2
      %v561 = vmul.f32 %v529, 0.2
      %v562 = vmul.f32 %v530, 0.2
      %v563 = vmul.f32 %v531, 0.2
      %v564 = vmul.f32 %v532, 0.2
      %v565 = vmul.f32 %v533, 0.2
      %v566 = vmul.f32 %v534, 0.2
      %v567 = vmul.f32 %v535, 0.2
      %v568 = vmul.f32 %v536, 0.2
      %v569 = vmul.f32 %v537, 0.2
      %v570 = vmul.f32 %v538, 0.2
      %v571 = vmul.f32 %v539, 0.2
      %v572 = vmul.f32 %v540, 0.2
      %v573 = vmul.f32 %v541, 0.2
      %v574 = vsel %vm542, %v526, %v558
      %v575 = vsel %vm543, %v527, %v559
      %v576 = vsel %vm544, %v528, %v560
      %v577 = vsel %vm545, %v529, %v561
      %v578 = vsel %vm546, %v530, %v562
      %v579 = vsel %vm547, %v531, %v563
      %v580 = vsel %vm548, %v532, %v564
      %v581 = vsel %vm549, %v533, %v565
      %v582 = vsel %vm550, %v534, %v566
      %v583 = vsel %vm551, %v535, %v567
      %v584 = vsel %vm552, %v536, %v568
      %v585 = vsel %vm553, %v537, %v569
      %v586 = vsel %vm554, %v538, %v570
      %v587 = vsel %vm555, %v539, %v571
      %v588 = vsel %vm556, %v540, %v572
      %v589 = vsel %vm557, %v541, %v573
      %v590 = vmul.f32 %v458, %v502
      %v591 = vmul.f32 %v459, %v502
      %v592 = vadd.f32 %v590, %v524
      %v593 = vadd.f32 %v591, %v524
      %vm594 = vcmp.ge.f32.partialorder %v592, 0.0
      %vm595 = vcmp.ge.f32.partialorder %v593, 0.0
      %v596 = vmul.f32 %v592, 0.2
      %v597 = vmul.f32 %v593, 0.2
      %v598 = vsel %vm594, %v592, %v596
      %v599 = vsel %vm595, %v593, %v597
      %p600 = scmp.gt.s32.totalorder %s25, 0
      %s601 = scalar_select %p600, 1, 0
      %s602 = scvt.s32.f32 %s601
      %v603 = vstv %s602
      %v604 = vmul.f32 %v598, %v603
      %v605 = vmul.f32 %v599, %v603
      %v606 = vmul.f32 %v494, %v502
      %v607 = vmul.f32 %v495, %v502
      %v608 = vadd.f32 %v606, %v524
      %v609 = vadd.f32 %v607, %v524
      %vm610 = vcmp.ge.f32.partialorder %v608, 0.0
      %vm611 = vcmp.ge.f32.partialorder %v609, 0.0
      %v612 = vmul.f32 %v608, 0.2
      %v613 = vmul.f32 %v609, 0.2
      %v614 = vsel %vm610, %v608, %v612
      %v615 = vsel %vm611, %v609, %v613
      %p616 = scmp.lt.s32.totalorder %s25, 1
      %s617 = scalar_select %p616, 1, 0
      %s618 = scvt.s32.f32 %s617
      %v619 = vstv %s618
      %v620 = vmul.f32 %v614, %v619
      %v621 = vmul.f32 %v615, %v619
      %622 = vst [vmem:[#allocation2 + $0x7] sm:$0x1] 0.0
      %623 = vst [vmem:[#allocation2 + $0x27] sm:$0x1] 0.0
      %624 = vst [vmem:[#allocation2 + $0x47] sm:$0x1] 0.0
      %625 = vst [vmem:[#allocation2 + $0x67] sm:$0x1] 0.0
      %626 = vst [vmem:[#allocation2 + $0x87] sm:$0x1] 0.0
      %627 = vst [vmem:[#allocation2 + $0xa7] sm:$0x1] 0.0
      %628 = vst [vmem:[#allocation2 + $0xc7] sm:$0x1] 0.0
      %629 = vst [vmem:[#allocation2 + $0xe7] sm:$0x1] 0.0
      %630 = vst [vmem:[#allocation2 + $0x107] sm:$0x1] 0.0
      %631 = vst [vmem:[#allocation2 + $0x127] sm:$0x1] 0.0
      %632 = vst [vmem:[#allocation2 + $0x18] sm:$0x1] 0.0
      %633 = vst [vmem:[#allocation2 + $0x38] sm:$0x1] 0.0
      %634 = vst [vmem:[#allocation2 + $0x58] sm:$0x1] 0.0
      %635 = vst [vmem:[#allocation2 + $0x78] sm:$0x1] 0.0
      %636 = vst [vmem:[#allocation2 + $0x98] sm:$0x1] 0.0
      %637 = vst [vmem:[#allocation2 + $0xb8] sm:$0x1] 0.0
      %638 = vst [vmem:[#allocation2 + $0xd8] sm:$0x1] 0.0
      %639 = vst [vmem:[#allocation2 + $0xf8] sm:$0x1] 0.0
      %640 = vst [vmem:[#allocation2 + $0x118] sm:$0x1] 0.0
      %641 = vst [vmem:[#allocation2 + $0x138] sm:$0x1] 0.0
      %642 = vst [vmem:[#allocation2 + $0x8] sm:$0xff] %v604
      %643 = vst [vmem:[#allocation2 + $0x10] sm:$0xff] %v605
      %s644 = scalar_lea.vmem [#allocation2], 32
      %645 = vst [vmem:[%s644 + $0x8] sm:$0xff] %v574
      %646 = vst [vmem:[%s644 + $0x10] sm:$0xff] %v575
      %647 = vst [vmem:[%s644 + $0x28] sm:$0xff] %v576
      %648 = vst [vmem:[%s644 + $0x30] sm:$0xff] %v577
      %649 = vst [vmem:[%s644 + $0x48] sm:$0xff] %v578
      %650 = vst [vmem:[%s644 + $0x50] sm:$0xff] %v579
      %651 = vst [vmem:[%s644 + $0x68] sm:$0xff] %v580
      %652 = vst [vmem:[%s644 + $0x70] sm:$0xff] %v581
      %653 = vst [vmem:[%s644 + $0x88] sm:$0xff] %v582
      %654 = vst [vmem:[%s644 + $0x90] sm:$0xff] %v583
      %655 = vst [vmem:[%s644 + $0xa8] sm:$0xff] %v584
      %656 = vst [vmem:[%s644 + $0xb0] sm:$0xff] %v585
      %657 = vst [vmem:[%s644 + $0xc8] sm:$0xff] %v586
      %658 = vst [vmem:[%s644 + $0xd0] sm:$0xff] %v587
      %659 = vst [vmem:[%s644 + $0xe8] sm:$0xff] %v588
      %660 = vst [vmem:[%s644 + $0xf0] sm:$0xff] %v589
      %s661 = scalar_lea.vmem [#allocation2], 288
      %662 = vst [vmem:[%s661 + $0x8] sm:$0xff] %v620
      %663 = vst [vmem:[%s661 + $0x10] sm:$0xff] %v621
      %v664 = vld [vmem:[#allocation2 + $0x7] sm:$0xff]
      %v665 = vld [vmem:[#allocation2 + $0xf] sm:$0xff]
      %v666 = vld [vmem:[#allocation2 + $0x27] sm:$0xff]
      %v667 = vld [vmem:[#allocation2 + $0x2f] sm:$0xff]
      %v668 = vld [vmem:[#allocation2 + $0x47] sm:$0xff]
      %v669 = vld [vmem:[#allocation2 + $0x4f] sm:$0xff]
      %v670 = vld [vmem:[#allocation2 + $0x67] sm:$0xff]
      %v671 = vld [vmem:[#allocation2 + $0x6f] sm:$0xff]
      %v672 = vld [vmem:[#allocation2 + $0x87] sm:$0xff]
      %v673 = vld [vmem:[#allocation2 + $0x8f] sm:$0xff]
      %v674 = vld [vmem:[#allocation2 + $0xa7] sm:$0xff]
      %v675 = vld [vmem:[#allocation2 + $0xaf] sm:$0xff]
      %v676 = vld [vmem:[#allocation2 + $0xc7] sm:$0xff]
      %v677 = vld [vmem:[#allocation2 + $0xcf] sm:$0xff]
      %v678 = vld [vmem:[#allocation2 + $0xe7] sm:$0xff]
      %v679 = vld [vmem:[#allocation2 + $0xef] sm:$0xff]
      %v680 = vld [vmem:[#allocation2 + $0x107] sm:$0xff]
      %v681 = vld [vmem:[#allocation2 + $0x10f] sm:$0xff]
      %v682 = vld [vmem:[#allocation2 + $0x127] sm:$0xff]
      %v683 = vld [vmem:[#allocation2 + $0x12f] sm:$0xff]
      %v684 = vpack.c.bf16 %v665, %v664
      %v685 = vpack.c.bf16 %v667, %v666
      %v686 = vpack.c.bf16 %v669, %v668
      %v687 = vpack.c.bf16 %v671, %v670
      %v688 = vpack.c.bf16 %v673, %v672
      %v689 = vpack.c.bf16 %v675, %v674
      %v690 = vpack.c.bf16 %v677, %v676
      %v691 = vpack.c.bf16 %v679, %v678
      %v692 = vld [vmem:[%s3] sm:$0xf]
      %v693 = vld [vmem:[%s3 + $0x4] sm:$0xf]
      %v694 = vld [vmem:[%s3 + $0x8] sm:$0xf]
      %v695 = vld [vmem:[%s3 + $0xc] sm:$0xf]
      %v696 = vld [vmem:[%s3 + $0x10] sm:$0xf]
      %v697 = vld [vmem:[%s3 + $0x14] sm:$0xf]
      %v698 = vld [vmem:[%s3 + $0x18] sm:$0xf]
      %v699 = vld [vmem:[%s3 + $0x1c] sm:$0xf]
      %v700 = vld [vmem:[%s3 + $0x20] sm:$0xf]
      %v701 = vld [vmem:[%s3 + $0x24] sm:$0xf]
      %v702 = vld [vmem:[%s3 + $0x28] sm:$0xf]
      %v703 = vld [vmem:[%s3 + $0x2c] sm:$0xf]
      %v704 = vld [vmem:[%s3 + $0x30] sm:$0xf]
      %v705 = vld [vmem:[%s3 + $0x34] sm:$0xf]
      %v706 = vld [vmem:[%s3 + $0x38] sm:$0xf]
      %v707 = vld [vmem:[%s3 + $0x3c] sm:$0xf]
      %v708 = vpack.c.bf16 %v681, %v680
      %s709 = scalar_lea.vmem %s3, 192
      %v710 = vld [vmem:[%s709] sm:$0xf]
      %v711 = vld [vmem:[%s709 + $0x4] sm:$0xf]
      %v712 = vld [vmem:[%s709 + $0x8] sm:$0xf]
      %v713 = vld [vmem:[%s709 + $0xc] sm:$0xf]
      %v714 = vld [vmem:[%s709 + $0x10] sm:$0xf]
      %v715 = vld [vmem:[%s709 + $0x14] sm:$0xf]
      %v716 = vld [vmem:[%s709 + $0x18] sm:$0xf]
      %v717 = vld [vmem:[%s709 + $0x1c] sm:$0xf]
      %v718 = vld [vmem:[%s709 + $0x20] sm:$0xf]
      %v719 = vld [vmem:[%s709 + $0x24] sm:$0xf]
      %v720 = vld [vmem:[%s709 + $0x28] sm:$0xf]
      %v721 = vld [vmem:[%s709 + $0x2c] sm:$0xf]
      %v722 = vld [vmem:[%s709 + $0x30] sm:$0xf]
      %v723 = vld [vmem:[%s709 + $0x34] sm:$0xf]
      %v724 = vld [vmem:[%s709 + $0x38] sm:$0xf]
      %v725 = vld [vmem:[%s709 + $0x3c] sm:$0xf]
      %v742 = vunpack.c.l.b16 %v710
      %v743 = vunpack.c.l.b16 %v711
      %v744 = vunpack.c.l.b16 %v712
      %v745 = vunpack.c.l.b16 %v713
      %v746 = vunpack.c.l.b16 %v714
      %v747 = vunpack.c.l.b16 %v715
      %v748 = vunpack.c.l.b16 %v716
      %v749 = vunpack.c.l.b16 %v717
      %v750 = vunpack.c.l.b16 %v718
      %v751 = vunpack.c.l.b16 %v719
      %v752 = vunpack.c.l.b16 %v720
      %v753 = vunpack.c.l.b16 %v721
      %v754 = vunpack.c.l.b16 %v722
      %v755 = vunpack.c.l.b16 %v723
      %v756 = vunpack.c.l.b16 %v724
      %v757 = vunpack.c.l.b16 %v725
      %v758 = vpack.c.b16 %v743, %v742
      %v759 = vpack.c.b16 %v745, %v744
      %v760 = vpack.c.b16 %v747, %v746
      %v761 = vpack.c.b16 %v749, %v748
      %v762 = vpack.c.b16 %v751, %v750
      %v763 = vpack.c.b16 %v753, %v752
      %v764 = vpack.c.b16 %v755, %v754
      %v765 = vpack.c.b16 %v757, %v756
      %774 = vmatprep.subr.bf16.mxu0 0
      %775 = vmatpush1.bf16.msra.mxu0 %v758
      %776 = vmatprep.subr.bf16.mxu0 0
      %777 = vmatpush1.bf16.msra.mxu0 %v759
      %778 = vmatprep.subr.bf16.mxu0 0
      %779 = vmatpush1.bf16.msra.mxu0 %v760
      %780 = vmatprep.subr.bf16.mxu0 0
      %781 = vmatpush1.bf16.msra.mxu0 %v761
      %782 = vmatprep.subr.bf16.mxu0 0
      %783 = vmatpush1.bf16.msra.mxu0 %v762
      %784 = vmatprep.subr.bf16.mxu0 0
      %785 = vmatpush1.bf16.msra.mxu0 %v763
      %786 = vmatprep.subr.bf16.mxu0 0
      %787 = vmatpush1.bf16.msra.mxu0 %v764
      %788 = vmatprep.subr.bf16.mxu0 0
      %789 = vmatpush1.bf16.msra.mxu0 %v765
      %790 = vmatprep.subr.bf16.mxu0 0
      %791 = vmatpush1.bf16.msra.mxu0 0
      %792 = vmatprep.subr.bf16.mxu0 0
      %793 = vmatpush1.bf16.msra.mxu0 0
      %794 = vmatprep.subr.bf16.mxu0 0
      %795 = vmatpush1.bf16.msra.mxu0 0
      %796 = vmatprep.subr.bf16.mxu0 0
      %797 = vmatpush1.bf16.msra.mxu0 0
      %798 = vmatprep.subr.bf16.mxu0 0
      %799 = vmatpush1.bf16.msra.mxu0 0
      %800 = vmatprep.subr.bf16.mxu0 0
      %801 = vmatpush1.bf16.msra.mxu0 0
      %802 = vmatprep.subr.bf16.mxu0 0
      %803 = vmatpush1.bf16.msra.mxu0 0
      %804 = vmatprep.subr.bf16.mxu0 0
      %805 = vmatpush1.bf16.msra.mxu0 0
      %806 = vmatprep.mubr.bf16.mxu0 0
      %807 = vmatmul.mubr.bf16.gmra.mrb[0].mxu0 %v685
      %v808 = vpop.f32.mrb[0].mxu0
      %v809 = vadd.f32 0.0, %v808
      %v810 = vpop.f32.mrb[0].mxu0
      %v811 = vpop.f32.mrb[0].mxu0
      %v812 = vadd.f32 0.0, %v811
      %v813 = vpop.f32.mrb[0].mxu0
      %814 = vmatprep.mubr.bf16.mxu0 0
      %815 = vmatmul.mubr.bf16.gmra.mrb[0].mxu0 %v686
      %v816 = vpop.f32.mrb[0].mxu0
      %v817 = vadd.f32 0.0, %v816
      %v818 = vpop.f32.mrb[0].mxu0
      %v819 = vpop.f32.mrb[0].mxu0
      %v820 = vadd.f32 0.0, %v819
      %v821 = vpop.f32.mrb[0].mxu0
      %822 = vmatprep.mubr.bf16.mxu0 0
      %823 = vmatmul.mubr.bf16.gmra.mrb[0].mxu0 %v687
      %v824 = vpop.f32.mrb[0].mxu0
      %v825 = vadd.f32 0.0, %v824
      %v826 = vpop.f32.mrb[0].mxu0
      %v827 = vpop.f32.mrb[0].mxu0
      %v828 = vadd.f32 0.0, %v827
      %v829 = vpop.f32.mrb[0].mxu0
      %830 = vmatprep.mubr.bf16.mxu0 0
      %831 = vmatmul.mubr.bf16.gmra.mrb[0].mxu0 %v688
      %v832 = vpop.f32.mrb[0].mxu0
      %v833 = vadd.f32 0.0, %v832
      %v834 = vpop.f32.mrb[0].mxu0
      %v835 = vpop.f32.mrb[0].mxu0
      %v836 = vadd.f32 0.0, %v835
      %v837 = vpop.f32.mrb[0].mxu0
      %838 = vmatprep.mubr.bf16.mxu0 0
      %839 = vmatmul.mubr.bf16.gmra.mrb[0].mxu0 %v689
      %v840 = vpop.f32.mrb[0].mxu0
      %v841 = vadd.f32 0.0, %v840
      %v842 = vpop.f32.mrb[0].mxu0
      %v843 = vpop.f32.mrb[0].mxu0
      %v844 = vadd.f32 0.0, %v843
      %v845 = vpop.f32.mrb[0].mxu0
      %846 = vmatprep.mubr.bf16.mxu0 0
      %847 = vmatmul.mubr.bf16.gmra.mrb[0].mxu0 %v690
      %v848 = vpop.f32.mrb[0].mxu0
      %v849 = vadd.f32 0.0, %v848
      %v850 = vpop.f32.mrb[0].mxu0
      %v851 = vpop.f32.mrb[0].mxu0
      %v852 = vadd.f32 0.0, %v851
      %v853 = vpop.f32.mrb[0].mxu0
      %854 = vmatprep.mubr.bf16.mxu0 0
      %855 = vmatmul.mubr.bf16.gmra.mrb[0].mxu0 %v691
      %v856 = vpop.f32.mrb[0].mxu0
      %v857 = vadd.f32 0.0, %v856
      %v858 = vpop.f32.mrb[0].mxu0
      %v859 = vpop.f32.mrb[0].mxu0
      %v860 = vadd.f32 0.0, %v859
      %v861 = vpop.f32.mrb[0].mxu0
      %862 = vmatprep.mubr.bf16.mxu0 0
      %863 = vmatmul.mubr.bf16.gmra.mrb[0].mxu0 %v708
      %v864 = vpop.f32.mrb[0].mxu0
      %v865 = vadd.f32 0.0, %v864
      %v866 = vpop.f32.mrb[0].mxu0
      %v867 = vpop.f32.mrb[0].mxu0
      %v868 = vadd.f32 0.0, %v867
      %v869 = vpop.f32.mrb[0].mxu0
      %870 = vdwg.mxu0
      %v887 = vunpack.c.l.b16 %v692
      %v888 = vunpack.c.l.b16 %v693
      %v889 = vunpack.c.l.b16 %v694
      %v890 = vunpack.c.l.b16 %v695
      %v891 = vunpack.c.l.b16 %v696
      %v892 = vunpack.c.l.b16 %v697
      %v893 = vunpack.c.l.b16 %v698
      %v894 = vunpack.c.l.b16 %v699
      %v895 = vunpack.c.l.b16 %v700
      %v896 = vunpack.c.l.b16 %v701
      %v897 = vunpack.c.l.b16 %v702
      %v898 = vunpack.c.l.b16 %v703
      %v899 = vunpack.c.l.b16 %v704
      %v900 = vunpack.c.l.b16 %v705
      %v901 = vunpack.c.l.b16 %v706
      %v902 = vunpack.c.l.b16 %v707
      %v903 = vpack.c.b16 %v888, %v887
      %v904 = vpack.c.b16 %v890, %v889
      %v905 = vpack.c.b16 %v892, %v891
      %v906 = vpack.c.b16 %v894, %v893
      %v907 = vpack.c.b16 %v896, %v895
      %v908 = vpack.c.b16 %v898, %v897
      %v909 = vpack.c.b16 %v900, %v899
      %v910 = vpack.c.b16 %v902, %v901
      %919 = vmatprep.subr.bf16.mxu0 0
      %920 = vmatpush1.bf16.msra.mxu0 %v903
      %921 = vmatprep.subr.bf16.mxu0 0
      %922 = vmatpush1.bf16.msra.mxu0 %v904
      %923 = vmatprep.subr.bf16.mxu0 0
      %924 = vmatpush1.bf16.msra.mxu0 %v905
      %925 = vmatprep.subr.bf16.mxu0 0
      %926 = vmatpush1.bf16.msra.mxu0 %v906
      %927 = vmatprep.subr.bf16.mxu0 0
      %928 = vmatpush1.bf16.msra.mxu0 %v907
      %929 = vmatprep.subr.bf16.mxu0 0
      %930 = vmatpush1.bf16.msra.mxu0 %v908
      %931 = vmatprep.subr.bf16.mxu0 0
      %932 = vmatpush1.bf16.msra.mxu0 %v909
      %933 = vmatprep.subr.bf16.mxu0 0
      %934 = vmatpush1.bf16.msra.mxu0 %v910
      %935 = vmatprep.subr.bf16.mxu0 0
      %936 = vmatpush1.bf16.msra.mxu0 0
      %937 = vmatprep.subr.bf16.mxu0 0
      %938 = vmatpush1.bf16.msra.mxu0 0
      %939 = vmatprep.subr.bf16.mxu0 0
      %940 = vmatpush1.bf16.msra.mxu0 0
      %941 = vmatprep.subr.bf16.mxu0 0
      %942 = vmatpush1.bf16.msra.mxu0 0
      %943 = vmatprep.subr.bf16.mxu0 0
      %944 = vmatpush1.bf16.msra.mxu0 0
      %945 = vmatprep.subr.bf16.mxu0 0
      %946 = vmatpush1.bf16.msra.mxu0 0
      %947 = vmatprep.subr.bf16.mxu0 0
      %948 = vmatpush1.bf16.msra.mxu0 0
      %949 = vmatprep.subr.bf16.mxu0 0
      %950 = vmatpush1.bf16.msra.mxu0 0
      %951 = vmatprep.mubr.bf16.mxu0 0
      %952 = vmatmul.mubr.bf16.gmra.mrb[0].mxu0 %v684
      %v953 = vpop.f32.mrb[0].mxu0
      %v954 = vadd.f32 %v809, %v953
      %v955 = vpop.f32.mrb[0].mxu0
      %v956 = vpop.f32.mrb[0].mxu0
      %v957 = vadd.f32 %v812, %v956
      %v958 = vpop.f32.mrb[0].mxu0
      %959 = vmatprep.mubr.bf16.mxu0 0
      %960 = vmatmul.mubr.bf16.gmra.mrb[0].mxu0 %v685
      %v961 = vpop.f32.mrb[0].mxu0
      %v962 = vadd.f32 %v817, %v961
      %v963 = vpop.f32.mrb[0].mxu0
      %v964 = vpop.f32.mrb[0].mxu0
      %v965 = vadd.f32 %v820, %v964
      %v966 = vpop.f32.mrb[0].mxu0
      %967 = vmatprep.mubr.bf16.mxu0 0
      %968 = vmatmul.mubr.bf16.gmra.mrb[0].mxu0 %v686
      %v969 = vpop.f32.mrb[0].mxu0
      %v970 = vadd.f32 %v825, %v969
      %v971 = vpop.f32.mrb[0].mxu0
      %v972 = vpop.f32.mrb[0].mxu0
      %v973 = vadd.f32 %v828, %v972
      %v974 = vpop.f32.mrb[0].mxu0
      %975 = vmatprep.mubr.bf16.mxu0 0
      %976 = vmatmul.mubr.bf16.gmra.mrb[0].mxu0 %v687
      %v977 = vpop.f32.mrb[0].mxu0
      %v978 = vadd.f32 %v833, %v977
      %v979 = vpop.f32.mrb[0].mxu0
      %v980 = vpop.f32.mrb[0].mxu0
      %v981 = vadd.f32 %v836, %v980
      %v982 = vpop.f32.mrb[0].mxu0
      %983 = vmatprep.mubr.bf16.mxu0 0
      %984 = vmatmul.mubr.bf16.gmra.mrb[0].mxu0 %v688
      %v985 = vpop.f32.mrb[0].mxu0
      %v986 = vadd.f32 %v841, %v985
      %v987 = vpop.f32.mrb[0].mxu0
      %v988 = vpop.f32.mrb[0].mxu0
      %v989 = vadd.f32 %v844, %v988
      %v990 = vpop.f32.mrb[0].mxu0
      %991 = vmatprep.mubr.bf16.mxu0 0
      %992 = vmatmul.mubr.bf16.gmra.mrb[0].mxu0 %v689
      %v993 = vpop.f32.mrb[0].mxu0
      %v994 = vadd.f32 %v849, %v993
      %v995 = vpop.f32.mrb[0].mxu0
      %v996 = vpop.f32.mrb[0].mxu0
      %v997 = vadd.f32 %v852, %v996
      %v998 = vpop.f32.mrb[0].mxu0
      %999 = vmatprep.mubr.bf16.mxu0 0
      %1000 = vmatmul.mubr.bf16.gmra.mrb[0].mxu0 %v690
      %v1001 = vpop.f32.mrb[0].mxu0
      %v1002 = vadd.f32 %v857, %v1001
      %v1003 = vpop.f32.mrb[0].mxu0
      %v1004 = vpop.f32.mrb[0].mxu0
      %v1005 = vadd.f32 %v860, %v1004
      %v1006 = vpop.f32.mrb[0].mxu0
      %1007 = vmatprep.mubr.bf16.mxu0 0
      %1008 = vmatmul.mubr.bf16.gmra.mrb[0].mxu0 %v691
      %v1009 = vpop.f32.mrb[0].mxu0
      %v1010 = vadd.f32 %v865, %v1009
      %v1011 = vpop.f32.mrb[0].mxu0
      %v1012 = vpop.f32.mrb[0].mxu0
      %v1013 = vadd.f32 %v868, %v1012
      %v1014 = vpop.f32.mrb[0].mxu0
      %1015 = vdwg.mxu0
      %v1016 = vpack.c.bf16 %v683, %v682
      %s1017 = scalar_lea.vmem %s3, 384
      %v1018 = vld [vmem:[%s1017] sm:$0xf]
      %v1019 = vld [vmem:[%s1017 + $0x4] sm:$0xf]
      %v1020 = vld [vmem:[%s1017 + $0x8] sm:$0xf]
      %v1021 = vld [vmem:[%s1017 + $0xc] sm:$0xf]
      %v1022 = vld [vmem:[%s1017 + $0x10] sm:$0xf]
      %v1023 = vld [vmem:[%s1017 + $0x14] sm:$0xf]
      %v1024 = vld [vmem:[%s1017 + $0x18] sm:$0xf]
      %v1025 = vld [vmem:[%s1017 + $0x1c] sm:$0xf]
      %v1026 = vld [vmem:[%s1017 + $0x20] sm:$0xf]
      %v1027 = vld [vmem:[%s1017 + $0x24] sm:$0xf]
      %v1028 = vld [vmem:[%s1017 + $0x28] sm:$0xf]
      %v1029 = vld [vmem:[%s1017 + $0x2c] sm:$0xf]
      %v1030 = vld [vmem:[%s1017 + $0x30] sm:$0xf]
      %v1031 = vld [vmem:[%s1017 + $0x34] sm:$0xf]
      %v1032 = vld [vmem:[%s1017 + $0x38] sm:$0xf]
      %v1033 = vld [vmem:[%s1017 + $0x3c] sm:$0xf]
      %v1050 = vunpack.c.l.b16 %v1018
      %v1051 = vunpack.c.l.b16 %v1019
      %v1052 = vunpack.c.l.b16 %v1020
      %v1053 = vunpack.c.l.b16 %v1021
      %v1054 = vunpack.c.l.b16 %v1022
      %v1055 = vunpack.c.l.b16 %v1023
      %v1056 = vunpack.c.l.b16 %v1024
      %v1057 = vunpack.c.l.b16 %v1025
      %v1058 = vunpack.c.l.b16 %v1026
      %v1059 = vunpack.c.l.b16 %v1027
      %v1060 = vunpack.c.l.b16 %v1028
      %v1061 = vunpack.c.l.b16 %v1029
      %v1062 = vunpack.c.l.b16 %v1030
      %v1063 = vunpack.c.l.b16 %v1031
      %v1064 = vunpack.c.l.b16 %v1032
      %v1065 = vunpack.c.l.b16 %v1033
      %v1066 = vpack.c.b16 %v1051, %v1050
      %v1067 = vpack.c.b16 %v1053, %v1052
      %v1068 = vpack.c.b16 %v1055, %v1054
      %v1069 = vpack.c.b16 %v1057, %v1056
      %v1070 = vpack.c.b16 %v1059, %v1058
      %v1071 = vpack.c.b16 %v1061, %v1060
      %v1072 = vpack.c.b16 %v1063, %v1062
      %v1073 = vpack.c.b16 %v1065, %v1064
      %1082 = vmatprep.subr.bf16.mxu0 0
      %1083 = vmatpush1.bf16.msra.mxu0 %v1066
      %1084 = vmatprep.subr.bf16.mxu0 0
      %1085 = vmatpush1.bf16.msra.mxu0 %v1067
      %1086 = vmatprep.subr.bf16.mxu0 0
      %1087 = vmatpush1.bf16.msra.mxu0 %v1068
      %1088 = vmatprep.subr.bf16.mxu0 0
      %1089 = vmatpush1.bf16.msra.mxu0 %v1069
      %1090 = vmatprep.subr.bf16.mxu0 0
      %1091 = vmatpush1.bf16.msra.mxu0 %v1070
      %1092 = vmatprep.subr.bf16.mxu0 0
      %1093 = vmatpush1.bf16.msra.mxu0 %v1071
      %1094 = vmatprep.subr.bf16.mxu0 0
      %1095 = vmatpush1.bf16.msra.mxu0 %v1072
      %1096 = vmatprep.subr.bf16.mxu0 0
      %1097 = vmatpush1.bf16.msra.mxu0 %v1073
      %1098 = vmatprep.subr.bf16.mxu0 0
      %1099 = vmatpush1.bf16.msra.mxu0 0
      %1100 = vmatprep.subr.bf16.mxu0 0
      %1101 = vmatpush1.bf16.msra.mxu0 0
      %1102 = vmatprep.subr.bf16.mxu0 0
      %1103 = vmatpush1.bf16.msra.mxu0 0
      %1104 = vmatprep.subr.bf16.mxu0 0
      %1105 = vmatpush1.bf16.msra.mxu0 0
      %1106 = vmatprep.subr.bf16.mxu0 0
      %1107 = vmatpush1.bf16.msra.mxu0 0
      %1108 = vmatprep.subr.bf16.mxu0 0
      %1109 = vmatpush1.bf16.msra.mxu0 0
      %1110 = vmatprep.subr.bf16.mxu0 0
      %1111 = vmatpush1.bf16.msra.mxu0 0
      %1112 = vmatprep.subr.bf16.mxu0 0
      %1113 = vmatpush1.bf16.msra.mxu0 0
      %1114 = vmatprep.mubr.bf16.mxu0 0
      %1115 = vmatmul.mubr.bf16.gmra.mrb[0].mxu0 %v686
      %v1116 = vpop.f32.mrb[0].mxu0
      %v1117 = vadd.f32 0.0, %v1116
      %v1118 = vpop.f32.mrb[0].mxu0
      %v1119 = vpop.f32.mrb[0].mxu0
      %v1120 = vadd.f32 0.0, %v1119
      %v1121 = vpop.f32.mrb[0].mxu0
      %1122 = vmatprep.mubr.bf16.mxu0 0
      %1123 = vmatmul.mubr.bf16.gmra.mrb[0].mxu0 %v687
      %v1124 = vpop.f32.mrb[0].mxu0
      %v1125 = vadd.f32 0.0, %v1124
      %v1126 = vpop.f32.mrb[0].mxu0
      %v1127 = vpop.f32.mrb[0].mxu0
      %v1128 = vadd.f32 0.0, %v1127
      %v1129 = vpop.f32.mrb[0].mxu0
      %1130 = vmatprep.mubr.bf16.mxu0 0
      %1131 = vmatmul.mubr.bf16.gmra.mrb[0].mxu0 %v688
      %v1132 = vpop.f32.mrb[0].mxu0
      %v1133 = vadd.f32 0.0, %v1132
      %v1134 = vpop.f32.mrb[0].mxu0
      %v1135 = vpop.f32.mrb[0].mxu0
      %v1136 = vadd.f32 0.0, %v1135
      %v1137 = vpop.f32.mrb[0].mxu0
      %1138 = vmatprep.mubr.bf16.mxu0 0
      %1139 = vmatmul.mubr.bf16.gmra.mrb[0].mxu0 %v689
      %v1140 = vpop.f32.mrb[0].mxu0
      %v1141 = vadd.f32 0.0, %v1140
      %v1142 = vpop.f32.mrb[0].mxu0
      %v1143 = vpop.f32.mrb[0].mxu0
      %v1144 = vadd.f32 0.0, %v1143
      %v1145 = vpop.f32.mrb[0].mxu0
      %1146 = vmatprep.mubr.bf16.mxu0 0
      %1147 = vmatmul.mubr.bf16.gmra.mrb[0].mxu0 %v690
      %v1148 = vpop.f32.mrb[0].mxu0
      %v1149 = vadd.f32 0.0, %v1148
      %v1150 = vpop.f32.mrb[0].mxu0
      %v1151 = vpop.f32.mrb[0].mxu0
      %v1152 = vadd.f32 0.0, %v1151
      %v1153 = vpop.f32.mrb[0].mxu0
      %1154 = vmatprep.mubr.bf16.mxu0 0
      %1155 = vmatmul.mubr.bf16.gmra.mrb[0].mxu0 %v691
      %v1156 = vpop.f32.mrb[0].mxu0
      %v1157 = vadd.f32 0.0, %v1156
      %v1158 = vpop.f32.mrb[0].mxu0
      %v1159 = vpop.f32.mrb[0].mxu0
      %v1160 = vadd.f32 0.0, %v1159
      %v1161 = vpop.f32.mrb[0].mxu0
      %1162 = vmatprep.mubr.bf16.mxu0 0
      %1163 = vmatmul.mubr.bf16.gmra.mrb[0].mxu0 %v708
      %v1164 = vpop.f32.mrb[0].mxu0
      %v1165 = vadd.f32 0.0, %v1164
      %v1166 = vpop.f32.mrb[0].mxu0
      %v1167 = vpop.f32.mrb[0].mxu0
      %v1168 = vadd.f32 0.0, %v1167
      %v1169 = vpop.f32.mrb[0].mxu0
      %1170 = vmatprep.mubr.bf16.mxu0 0
      %1171 = vmatmul.mubr.bf16.gmra.mrb[0].mxu0 %v1016
      %v1172 = vpop.f32.mrb[0].mxu0
      %v1173 = vadd.f32 0.0, %v1172
      %v1174 = vpop.f32.mrb[0].mxu0
      %v1175 = vpop.f32.mrb[0].mxu0
      %v1176 = vadd.f32 0.0, %v1175
      %v1177 = vpop.f32.mrb[0].mxu0
      %1178 = vdwg.mxu0
      %v1179 = vadd.f32 %v954, %v1117
      %v1180 = vadd.f32 %v957, %v1120
      %v1181 = vadd.f32 %v962, %v1125
      %v1182 = vadd.f32 %v965, %v1128
      %v1183 = vadd.f32 %v970, %v1133
      %v1184 = vadd.f32 %v973, %v1136
      %v1185 = vadd.f32 %v978, %v1141
      %v1186 = vadd.f32 %v981, %v1144
      %v1187 = vadd.f32 %v986, %v1149
      %v1188 = vadd.f32 %v989, %v1152
      %v1189 = vadd.f32 %v994, %v1157
      %v1190 = vadd.f32 %v997, %v1160
      %v1191 = vadd.f32 %v1002, %v1165
      %v1192 = vadd.f32 %v1005, %v1168
      %v1193 = vadd.f32 %v1010, %v1173
      %v1194 = vadd.f32 %v1013, %v1176
      %v1195 = vld [vmem:[#allocation2 + $0x8] sm:$0xff]
      %v1196 = vld [vmem:[#allocation2 + $0x10] sm:$0xff]
      %v1197 = vld [vmem:[#allocation2 + $0x28] sm:$0xff]
      %v1198 = vld [vmem:[#allocation2 + $0x30] sm:$0xff]
      %v1199 = vld [vmem:[#allocation2 + $0x48] sm:$0xff]
      %v1200 = vld [vmem:[#allocation2 + $0x50] sm:$0xff]
      %v1201 = vld [vmem:[#allocation2 + $0x68] sm:$0xff]
      %v1202 = vld [vmem:[#allocation2 + $0x70] sm:$0xff]
      %v1203 = vld [vmem:[#allocation2 + $0x88] sm:$0xff]
      %v1204 = vld [vmem:[#allocation2 + $0x90] sm:$0xff]
      %v1205 = vld [vmem:[#allocation2 + $0xa8] sm:$0xff]
      %v1206 = vld [vmem:[#allocation2 + $0xb0] sm:$0xff]
      %v1207 = vld [vmem:[#allocation2 + $0xc8] sm:$0xff]
      %v1208 = vld [vmem:[#allocation2 + $0xd0] sm:$0xff]
      %v1209 = vld [vmem:[#allocation2 + $0xe8] sm:$0xff]
      %v1210 = vld [vmem:[#allocation2 + $0xf0] sm:$0xff]
      %v1211 = vld [vmem:[#allocation2 + $0x108] sm:$0xff]
      %v1212 = vld [vmem:[#allocation2 + $0x110] sm:$0xff]
      %v1213 = vld [vmem:[#allocation2 + $0x128] sm:$0xff]
      %v1214 = vld [vmem:[#allocation2 + $0x130] sm:$0xff]
      %v1215 = vpack.c.bf16 %v1196, %v1195
      %v1216 = vpack.c.bf16 %v1198, %v1197
      %v1217 = vpack.c.bf16 %v1200, %v1199
      %v1218 = vpack.c.bf16 %v1202, %v1201
      %v1219 = vpack.c.bf16 %v1204, %v1203
      %v1220 = vpack.c.bf16 %v1206, %v1205
      %v1221 = vpack.c.bf16 %v1208, %v1207
      %v1222 = vpack.c.bf16 %v1210, %v1209
      %s1223 = scalar_lea.vmem %s3, 64
      %v1224 = vld [vmem:[%s1223] sm:$0xf]
      %v1225 = vld [vmem:[%s1223 + $0x4] sm:$0xf]
      %v1226 = vld [vmem:[%s1223 + $0x8] sm:$0xf]
      %v1227 = vld [vmem:[%s1223 + $0xc] sm:$0xf]
      %v1228 = vld [vmem:[%s1223 + $0x10] sm:$0xf]
      %v1229 = vld [vmem:[%s1223 + $0x14] sm:$0xf]
      %v1230 = vld [vmem:[%s1223 + $0x18] sm:$0xf]
      %v1231 = vld [vmem:[%s1223 + $0x1c] sm:$0xf]
      %v1232 = vld [vmem:[%s1223 + $0x20] sm:$0xf]
      %v1233 = vld [vmem:[%s1223 + $0x24] sm:$0xf]
      %v1234 = vld [vmem:[%s1223 + $0x28] sm:$0xf]
      %v1235 = vld [vmem:[%s1223 + $0x2c] sm:$0xf]
      %v1236 = vld [vmem:[%s1223 + $0x30] sm:$0xf]
      %v1237 = vld [vmem:[%s1223 + $0x34] sm:$0xf]
      %v1238 = vld [vmem:[%s1223 + $0x38] sm:$0xf]
      %v1239 = vld [vmem:[%s1223 + $0x3c] sm:$0xf]
      %v1256 = vunpack.c.l.b16 %v1224
      %v1257 = vunpack.c.l.b16 %v1225
      %v1258 = vunpack.c.l.b16 %v1226
      %v1259 = vunpack.c.l.b16 %v1227
      %v1260 = vunpack.c.l.b16 %v1228
      %v1261 = vunpack.c.l.b16 %v1229
      %v1262 = vunpack.c.l.b16 %v1230
      %v1263 = vunpack.c.l.b16 %v1231
      %v1264 = vunpack.c.l.b16 %v1232
      %v1265 = vunpack.c.l.b16 %v1233
      %v1266 = vunpack.c.l.b16 %v1234
      %v1267 = vunpack.c.l.b16 %v1235
      %v1268 = vunpack.c.l.b16 %v1236
      %v1269 = vunpack.c.l.b16 %v1237
      %v1270 = vunpack.c.l.b16 %v1238
      %v1271 = vunpack.c.l.b16 %v1239
      %v1272 = vpack.c.b16 %v1257, %v1256
      %v1273 = vpack.c.b16 %v1259, %v1258
      %v1274 = vpack.c.b16 %v1261, %v1260
      %v1275 = vpack.c.b16 %v1263, %v1262
      %v1276 = vpack.c.b16 %v1265, %v1264
      %v1277 = vpack.c.b16 %v1267, %v1266
      %v1278 = vpack.c.b16 %v1269, %v1268
      %v1279 = vpack.c.b16 %v1271, %v1270
      %1288 = vmatprep.subr.bf16.mxu0 0
      %1289 = vmatpush1.bf16.msra.mxu0 %v1272
      %1290 = vmatprep.subr.bf16.mxu0 0
      %1291 = vmatpush1.bf16.msra.mxu0 %v1273
      %1292 = vmatprep.subr.bf16.mxu0 0
      %1293 = vmatpush1.bf16.msra.mxu0 %v1274
      %1294 = vmatprep.subr.bf16.mxu0 0
      %1295 = vmatpush1.bf16.msra.mxu0 %v1275
      %1296 = vmatprep.subr.bf16.mxu0 0
      %1297 = vmatpush1.bf16.msra.mxu0 %v1276
      %1298 = vmatprep.subr.bf16.mxu0 0
      %1299 = vmatpush1.bf16.msra.mxu0 %v1277
      %1300 = vmatprep.subr.bf16.mxu0 0
      %1301 = vmatpush1.bf16.msra.mxu0 %v1278
      %1302 = vmatprep.subr.bf16.mxu0 0
      %1303 = vmatpush1.bf16.msra.mxu0 %v1279
      %1304 = vmatprep.subr.bf16.mxu0 0
      %1305 = vmatpush1.bf16.msra.mxu0 0
      %1306 = vmatprep.subr.bf16.mxu0 0
      %1307 = vmatpush1.bf16.msra.mxu0 0
      %1308 = vmatprep.subr.bf16.mxu0 0
      %1309 = vmatpush1.bf16.msra.mxu0 0
      %1310 = vmatprep.subr.bf16.mxu0 0
      %1311 = vmatpush1.bf16.msra.mxu0 0
      %1312 = vmatprep.subr.bf16.mxu0 0
      %1313 = vmatpush1.bf16.msra.mxu0 0
      %1314 = vmatprep.subr.bf16.mxu0 0
      %1315 = vmatpush1.bf16.msra.mxu0 0
      %1316 = vmatprep.subr.bf16.mxu0 0
      %1317 = vmatpush1.bf16.msra.mxu0 0
      %1318 = vmatprep.subr.bf16.mxu0 0
      %1319 = vmatpush1.bf16.msra.mxu0 0
      %1320 = vmatprep.mubr.bf16.mxu0 0
      %1321 = vmatmul.mubr.bf16.gmra.mrb[0].mxu0 %v1215
      %v1322 = vpop.f32.mrb[0].mxu0
      %v1323 = vadd.f32 0.0, %v1322
      %v1324 = vpop.f32.mrb[0].mxu0
      %v1325 = vpop.f32.mrb[0].mxu0
      %v1326 = vadd.f32 0.0, %v1325
      %v1327 = vpop.f32.mrb[0].mxu0
      %1328 = vmatprep.mubr.bf16.mxu0 0
      %1329 = vmatmul.mubr.bf16.gmra.mrb[0].mxu0 %v1216
      %v1330 = vpop.f32.mrb[0].mxu0
      %v1331 = vadd.f32 0.0, %v1330
      %v1332 = vpop.f32.mrb[0].mxu0
      %v1333 = vpop.f32.mrb[0].mxu0
      %v1334 = vadd.f32 0.0, %v1333
      %v1335 = vpop.f32.mrb[0].mxu0
      %1336 = vmatprep.mubr.bf16.mxu0 0
      %1337 = vmatmul.mubr.bf16.gmra.mrb[0].mxu0 %v1217
      %v1338 = vpop.f32.mrb[0].mxu0
      %v1339 = vadd.f32 0.0, %v1338
      %v1340 = vpop.f32.mrb[0].mxu0
      %v1341 = vpop.f32.mrb[0].mxu0
      %v1342 = vadd.f32 0.0, %v1341
      %v1343 = vpop.f32.mrb[0].mxu0
      %1344 = vmatprep.mubr.bf16.mxu0 0
      %1345 = vmatmul.mubr.bf16.gmra.mrb[0].mxu0 %v1218
      %v1346 = vpop.f32.mrb[0].mxu0
      %v1347 = vadd.f32 0.0, %v1346
      %v1348 = vpop.f32.mrb[0].mxu0
      %v1349 = vpop.f32.mrb[0].mxu0
      %v1350 = vadd.f32 0.0, %v1349
      %v1351 = vpop.f32.mrb[0].mxu0
      %1352 = vmatprep.mubr.bf16.mxu0 0
      %1353 = vmatmul.mubr.bf16.gmra.mrb[0].mxu0 %v1219
      %v1354 = vpop.f32.mrb[0].mxu0
      %v1355 = vadd.f32 0.0, %v1354
      %v1356 = vpop.f32.mrb[0].mxu0
      %v1357 = vpop.f32.mrb[0].mxu0
      %v1358 = vadd.f32 0.0, %v1357
      %v1359 = vpop.f32.mrb[0].mxu0
      %1360 = vmatprep.mubr.bf16.mxu0 0
      %1361 = vmatmul.mubr.bf16.gmra.mrb[0].mxu0 %v1220
      %v1362 = vpop.f32.mrb[0].mxu0
      %v1363 = vadd.f32 0.0, %v1362
      %v1364 = vpop.f32.mrb[0].mxu0
      %v1365 = vpop.f32.mrb[0].mxu0
      %v1366 = vadd.f32 0.0, %v1365
      %v1367 = vpop.f32.mrb[0].mxu0
      %1368 = vmatprep.mubr.bf16.mxu0 0
      %1369 = vmatmul.mubr.bf16.gmra.mrb[0].mxu0 %v1221
      %v1370 = vpop.f32.mrb[0].mxu0
      %v1371 = vadd.f32 0.0, %v1370
      %v1372 = vpop.f32.mrb[0].mxu0
      %v1373 = vpop.f32.mrb[0].mxu0
      %v1374 = vadd.f32 0.0, %v1373
      %v1375 = vpop.f32.mrb[0].mxu0
      %1376 = vmatprep.mubr.bf16.mxu0 0
      %1377 = vmatmul.mubr.bf16.gmra.mrb[0].mxu0 %v1222
      %v1378 = vpop.f32.mrb[0].mxu0
      %v1379 = vadd.f32 0.0, %v1378
      %v1380 = vpop.f32.mrb[0].mxu0
      %v1381 = vpop.f32.mrb[0].mxu0
      %v1382 = vadd.f32 0.0, %v1381
      %v1383 = vpop.f32.mrb[0].mxu0
      %1384 = vdwg.mxu0
      %v1385 = vadd.f32 %v1179, %v1323
      %v1386 = vadd.f32 %v1180, %v1326
      %v1387 = vadd.f32 %v1181, %v1331
      %v1388 = vadd.f32 %v1182, %v1334
      %v1389 = vadd.f32 %v1183, %v1339
      %v1390 = vadd.f32 %v1184, %v1342
      %v1391 = vadd.f32 %v1185, %v1347
      %v1392 = vadd.f32 %v1186, %v1350
      %v1393 = vadd.f32 %v1187, %v1355
      %v1394 = vadd.f32 %v1188, %v1358
      %v1395 = vadd.f32 %v1189, %v1363
      %v1396 = vadd.f32 %v1190, %v1366
      %v1397 = vadd.f32 %v1191, %v1371
      %v1398 = vadd.f32 %v1192, %v1374
      %v1399 = vadd.f32 %v1193, %v1379
      %v1400 = vadd.f32 %v1194, %v1382
      %v1401 = vpack.c.bf16 %v1212, %v1211
      %s1402 = scalar_lea.vmem %s3, 256
      %v1403 = vld [vmem:[%s1402] sm:$0xf]
      %v1404 = vld [vmem:[%s1402 + $0x4] sm:$0xf]
      %v1405 = vld [vmem:[%s1402 + $0x8] sm:$0xf]
      %v1406 = vld [vmem:[%s1402 + $0xc] sm:$0xf]
      %v1407 = vld [vmem:[%s1402 + $0x10] sm:$0xf]
      %v1408 = vld [vmem:[%s1402 + $0x14] sm:$0xf]
      %v1409 = vld [vmem:[%s1402 + $0x18] sm:$0xf]
      %v1410 = vld [vmem:[%s1402 + $0x1c] sm:$0xf]
      %v1411 = vld [vmem:[%s1402 + $0x20] sm:$0xf]
      %v1412 = vld [vmem:[%s1402 + $0x24] sm:$0xf]
      %v1413 = vld [vmem:[%s1402 + $0x28] sm:$0xf]
      %v1414 = vld [vmem:[%s1402 + $0x2c] sm:$0xf]
      %v1415 = vld [vmem:[%s1402 + $0x30] sm:$0xf]
      %v1416 = vld [vmem:[%s1402 + $0x34] sm:$0xf]
      %v1417 = vld [vmem:[%s1402 + $0x38] sm:$0xf]
      %v1418 = vld [vmem:[%s1402 + $0x3c] sm:$0xf]
      %v1435 = vunpack.c.l.b16 %v1403
      %v1436 = vunpack.c.l.b16 %v1404
      %v1437 = vunpack.c.l.b16 %v1405
      %v1438 = vunpack.c.l.b16 %v1406
      %v1439 = vunpack.c.l.b16 %v1407
      %v1440 = vunpack.c.l.b16 %v1408
      %v1441 = vunpack.c.l.b16 %v1409
      %v1442 = vunpack.c.l.b16 %v1410
      %v1443 = vunpack.c.l.b16 %v1411
      %v1444 = vunpack.c.l.b16 %v1412
      %v1445 = vunpack.c.l.b16 %v1413
      %v1446 = vunpack.c.l.b16 %v1414
      %v1447 = vunpack.c.l.b16 %v1415
      %v1448 = vunpack.c.l.b16 %v1416
      %v1449 = vunpack.c.l.b16 %v1417
      %v1450 = vunpack.c.l.b16 %v1418
      %v1451 = vpack.c.b16 %v1436, %v1435
      %v1452 = vpack.c.b16 %v1438, %v1437
      %v1453 = vpack.c.b16 %v1440, %v1439
      %v1454 = vpack.c.b16 %v1442, %v1441
      %v1455 = vpack.c.b16 %v1444, %v1443
      %v1456 = vpack.c.b16 %v1446, %v1445
      %v1457 = vpack.c.b16 %v1448, %v1447
      %v1458 = vpack.c.b16 %v1450, %v1449
      %1467 = vmatprep.subr.bf16.mxu0 0
      %1468 = vmatpush1.bf16.msra.mxu0 %v1451
      %1469 = vmatprep.subr.bf16.mxu0 0
      %1470 = vmatpush1.bf16.msra.mxu0 %v1452
      %1471 = vmatprep.subr.bf16.mxu0 0
      %1472 = vmatpush1.bf16.msra.mxu0 %v1453
      %1473 = vmatprep.subr.bf16.mxu0 0
      %1474 = vmatpush1.bf16.msra.mxu0 %v1454
      %1475 = vmatprep.subr.bf16.mxu0 0
      %1476 = vmatpush1.bf16.msra.mxu0 %v1455
      %1477 = vmatprep.subr.bf16.mxu0 0
      %1478 = vmatpush1.bf16.msra.mxu0 %v1456
      %1479 = vmatprep.subr.bf16.mxu0 0
      %1480 = vmatpush1.bf16.msra.mxu0 %v1457
      %1481 = vmatprep.subr.bf16.mxu0 0
      %1482 = vmatpush1.bf16.msra.mxu0 %v1458
      %1483 = vmatprep.subr.bf16.mxu0 0
      %1484 = vmatpush1.bf16.msra.mxu0 0
      %1485 = vmatprep.subr.bf16.mxu0 0
      %1486 = vmatpush1.bf16.msra.mxu0 0
      %1487 = vmatprep.subr.bf16.mxu0 0
      %1488 = vmatpush1.bf16.msra.mxu0 0
      %1489 = vmatprep.subr.bf16.mxu0 0
      %1490 = vmatpush1.bf16.msra.mxu0 0
      %1491 = vmatprep.subr.bf16.mxu0 0
      %1492 = vmatpush1.bf16.msra.mxu0 0
      %1493 = vmatprep.subr.bf16.mxu0 0
      %1494 = vmatpush1.bf16.msra.mxu0 0
      %1495 = vmatprep.subr.bf16.mxu0 0
      %1496 = vmatpush1.bf16.msra.mxu0 0
      %1497 = vmatprep.subr.bf16.mxu0 0
      %1498 = vmatpush1.bf16.msra.mxu0 0
      %1499 = vmatprep.mubr.bf16.mxu0 0
      %1500 = vmatmul.mubr.bf16.gmra.mrb[0].mxu0 %v1216
      %v1501 = vpop.f32.mrb[0].mxu0
      %v1502 = vadd.f32 0.0, %v1501
      %v1503 = vpop.f32.mrb[0].mxu0
      %v1504 = vpop.f32.mrb[0].mxu0
      %v1505 = vadd.f32 0.0, %v1504
      %v1506 = vpop.f32.mrb[0].mxu0
      %1507 = vmatprep.mubr.bf16.mxu0 0
      %1508 = vmatmul.mubr.bf16.gmra.mrb[0].mxu0 %v1217
      %v1509 = vpop.f32.mrb[0].mxu0
      %v1510 = vadd.f32 0.0, %v1509
      %v1511 = vpop.f32.mrb[0].mxu0
      %v1512 = vpop.f32.mrb[0].mxu0
      %v1513 = vadd.f32 0.0, %v1512
      %v1514 = vpop.f32.mrb[0].mxu0
      %1515 = vmatprep.mubr.bf16.mxu0 0
      %1516 = vmatmul.mubr.bf16.gmra.mrb[0].mxu0 %v1218
      %v1517 = vpop.f32.mrb[0].mxu0
      %v1518 = vadd.f32 0.0, %v1517
      %v1519 = vpop.f32.mrb[0].mxu0
      %v1520 = vpop.f32.mrb[0].mxu0
      %v1521 = vadd.f32 0.0, %v1520
      %v1522 = vpop.f32.mrb[0].mxu0
      %1523 = vmatprep.mubr.bf16.mxu0 0
      %1524 = vmatmul.mubr.bf16.gmra.mrb[0].mxu0 %v1219
      %v1525 = vpop.f32.mrb[0].mxu0
      %v1526 = vadd.f32 0.0, %v1525
      %v1527 = vpop.f32.mrb[0].mxu0
      %v1528 = vpop.f32.mrb[0].mxu0
      %v1529 = vadd.f32 0.0, %v1528
      %v1530 = vpop.f32.mrb[0].mxu0
      %1531 = vmatprep.mubr.bf16.mxu0 0
      %1532 = vmatmul.mubr.bf16.gmra.mrb[0].mxu0 %v1220
      %v1533 = vpop.f32.mrb[0].mxu0
      %v1534 = vadd.f32 0.0, %v1533
      %v1535 = vpop.f32.mrb[0].mxu0
      %v1536 = vpop.f32.mrb[0].mxu0
      %v1537 = vadd.f32 0.0, %v1536
      %v1538 = vpop.f32.mrb[0].mxu0
      %1539 = vmatprep.mubr.bf16.mxu0 0
      %1540 = vmatmul.mubr.bf16.gmra.mrb[0].mxu0 %v1221
      %v1541 = vpop.f32.mrb[0].mxu0
      %v1542 = vadd.f32 0.0, %v1541
      %v1543 = vpop.f32.mrb[0].mxu0
      %v1544 = vpop.f32.mrb[0].mxu0
      %v1545 = vadd.f32 0.0, %v1544
      %v1546 = vpop.f32.mrb[0].mxu0
      %1547 = vmatprep.mubr.bf16.mxu0 0
      %1548 = vmatmul.mubr.bf16.gmra.mrb[0].mxu0 %v1222
      %v1549 = vpop.f32.mrb[0].mxu0
      %v1550 = vadd.f32 0.0, %v1549
      %v1551 = vpop.f32.mrb[0].mxu0
      %v1552 = vpop.f32.mrb[0].mxu0
      %v1553 = vadd.f32 0.0, %v1552
      %v1554 = vpop.f32.mrb[0].mxu0
      %1555 = vmatprep.mubr.bf16.mxu0 0
      %1556 = vmatmul.mubr.bf16.gmra.mrb[0].mxu0 %v1401
      %v1557 = vpop.f32.mrb[0].mxu0
      %v1558 = vadd.f32 0.0, %v1557
      %v1559 = vpop.f32.mrb[0].mxu0
      %v1560 = vpop.f32.mrb[0].mxu0
      %v1561 = vadd.f32 0.0, %v1560
      %v1562 = vpop.f32.mrb[0].mxu0
      %1563 = vdwg.mxu0
      %v1564 = vadd.f32 %v1385, %v1502
      %v1565 = vadd.f32 %v1386, %v1505
      %v1566 = vadd.f32 %v1387, %v1510
      %v1567 = vadd.f32 %v1388, %v1513
      %v1568 = vadd.f32 %v1389, %v1518
      %v1569 = vadd.f32 %v1390, %v1521
      %v1570 = vadd.f32 %v1391, %v1526
      %v1571 = vadd.f32 %v1392, %v1529
      %v1572 = vadd.f32 %v1393, %v1534
      %v1573 = vadd.f32 %v1394, %v1537
      %v1574 = vadd.f32 %v1395, %v1542
      %v1575 = vadd.f32 %v1396, %v1545
      %v1576 = vadd.f32 %v1397, %v1550
      %v1577 = vadd.f32 %v1398, %v1553
      %v1578 = vadd.f32 %v1399, %v1558
      %v1579 = vadd.f32 %v1400, %v1561
      %v1580 = vpack.c.bf16 %v1214, %v1213
      %s1581 = scalar_lea.vmem %s3, 448
      %v1582 = vld [vmem:[%s1581] sm:$0xf]
      %v1583 = vld [vmem:[%s1581 + $0x4] sm:$0xf]
      %v1584 = vld [vmem:[%s1581 + $0x8] sm:$0xf]
      %v1585 = vld [vmem:[%s1581 + $0xc] sm:$0xf]
      %v1586 = vld [vmem:[%s1581 + $0x10] sm:$0xf]
      %v1587 = vld [vmem:[%s1581 + $0x14] sm:$0xf]
      %v1588 = vld [vmem:[%s1581 + $0x18] sm:$0xf]
      %v1589 = vld [vmem:[%s1581 + $0x1c] sm:$0xf]
      %v1590 = vld [vmem:[%s1581 + $0x20] sm:$0xf]
      %v1591 = vld [vmem:[%s1581 + $0x24] sm:$0xf]
      %v1592 = vld [vmem:[%s1581 + $0x28] sm:$0xf]
      %v1593 = vld [vmem:[%s1581 + $0x2c] sm:$0xf]
      %v1594 = vld [vmem:[%s1581 + $0x30] sm:$0xf]
      %v1595 = vld [vmem:[%s1581 + $0x34] sm:$0xf]
      %v1596 = vld [vmem:[%s1581 + $0x38] sm:$0xf]
      %v1597 = vld [vmem:[%s1581 + $0x3c] sm:$0xf]
      %v1614 = vunpack.c.l.b16 %v1582
      %v1615 = vunpack.c.l.b16 %v1583
      %v1616 = vunpack.c.l.b16 %v1584
      %v1617 = vunpack.c.l.b16 %v1585
      %v1618 = vunpack.c.l.b16 %v1586
      %v1619 = vunpack.c.l.b16 %v1587
      %v1620 = vunpack.c.l.b16 %v1588
      %v1621 = vunpack.c.l.b16 %v1589
      %v1622 = vunpack.c.l.b16 %v1590
      %v1623 = vunpack.c.l.b16 %v1591
      %v1624 = vunpack.c.l.b16 %v1592
      %v1625 = vunpack.c.l.b16 %v1593
      %v1626 = vunpack.c.l.b16 %v1594
      %v1627 = vunpack.c.l.b16 %v1595
      %v1628 = vunpack.c.l.b16 %v1596
      %v1629 = vunpack.c.l.b16 %v1597
      %v1630 = vpack.c.b16 %v1615, %v1614
      %v1631 = vpack.c.b16 %v1617, %v1616
      %v1632 = vpack.c.b16 %v1619, %v1618
      %v1633 = vpack.c.b16 %v1621, %v1620
      %v1634 = vpack.c.b16 %v1623, %v1622
      %v1635 = vpack.c.b16 %v1625, %v1624
      %v1636 = vpack.c.b16 %v1627, %v1626
      %v1637 = vpack.c.b16 %v1629, %v1628
      %1646 = vmatprep.subr.bf16.mxu0 0
      %1647 = vmatpush1.bf16.msra.mxu0 %v1630
      %1648 = vmatprep.subr.bf16.mxu0 0
      %1649 = vmatpush1.bf16.msra.mxu0 %v1631
      %1650 = vmatprep.subr.bf16.mxu0 0
      %1651 = vmatpush1.bf16.msra.mxu0 %v1632
      %1652 = vmatprep.subr.bf16.mxu0 0
      %1653 = vmatpush1.bf16.msra.mxu0 %v1633
      %1654 = vmatprep.subr.bf16.mxu0 0
      %1655 = vmatpush1.bf16.msra.mxu0 %v1634
      %1656 = vmatprep.subr.bf16.mxu0 0
      %1657 = vmatpush1.bf16.msra.mxu0 %v1635
      %1658 = vmatprep.subr.bf16.mxu0 0
      %1659 = vmatpush1.bf16.msra.mxu0 %v1636
      %1660 = vmatprep.subr.bf16.mxu0 0
      %1661 = vmatpush1.bf16.msra.mxu0 %v1637
      %1662 = vmatprep.subr.bf16.mxu0 0
      %1663 = vmatpush1.bf16.msra.mxu0 0
      %1664 = vmatprep.subr.bf16.mxu0 0
      %1665 = vmatpush1.bf16.msra.mxu0 0
      %1666 = vmatprep.subr.bf16.mxu0 0
      %1667 = vmatpush1.bf16.msra.mxu0 0
      %1668 = vmatprep.subr.bf16.mxu0 0
      %1669 = vmatpush1.bf16.msra.mxu0 0
      %1670 = vmatprep.subr.bf16.mxu0 0
      %1671 = vmatpush1.bf16.msra.mxu0 0
      %1672 = vmatprep.subr.bf16.mxu0 0
      %1673 = vmatpush1.bf16.msra.mxu0 0
      %1674 = vmatprep.subr.bf16.mxu0 0
      %1675 = vmatpush1.bf16.msra.mxu0 0
      %1676 = vmatprep.subr.bf16.mxu0 0
      %1677 = vmatpush1.bf16.msra.mxu0 0
      %1678 = vmatprep.mubr.bf16.mxu0 0
      %1679 = vmatmul.mubr.bf16.gmra.mrb[0].mxu0 %v1217
      %v1680 = vpop.f32.mrb[0].mxu0
      %v1681 = vadd.f32 0.0, %v1680
      %v1682 = vpop.f32.mrb[0].mxu0
      %v1683 = vpop.f32.mrb[0].mxu0
      %v1684 = vadd.f32 0.0, %v1683
      %v1685 = vpop.f32.mrb[0].mxu0
      %1686 = vmatprep.mubr.bf16.mxu0 0
      %1687 = vmatmul.mubr.bf16.gmra.mrb[0].mxu0 %v1218
      %v1688 = vpop.f32.mrb[0].mxu0
      %v1689 = vadd.f32 0.0, %v1688
      %v1690 = vpop.f32.mrb[0].mxu0
      %v1691 = vpop.f32.mrb[0].mxu0
      %v1692 = vadd.f32 0.0, %v1691
      %v1693 = vpop.f32.mrb[0].mxu0
      %1694 = vmatprep.mubr.bf16.mxu0 0
      %1695 = vmatmul.mubr.bf16.gmra.mrb[0].mxu0 %v1219
      %v1696 = vpop.f32.mrb[0].mxu0
      %v1697 = vadd.f32 0.0, %v1696
      %v1698 = vpop.f32.mrb[0].mxu0
      %v1699 = vpop.f32.mrb[0].mxu0
      %v1700 = vadd.f32 0.0, %v1699
      %v1701 = vpop.f32.mrb[0].mxu0
      %1702 = vmatprep.mubr.bf16.mxu0 0
      %1703 = vmatmul.mubr.bf16.gmra.mrb[0].mxu0 %v1220
      %v1704 = vpop.f32.mrb[0].mxu0
      %v1705 = vadd.f32 0.0, %v1704
      %v1706 = vpop.f32.mrb[0].mxu0
      %v1707 = vpop.f32.mrb[0].mxu0
      %v1708 = vadd.f32 0.0, %v1707
      %v1709 = vpop.f32.mrb[0].mxu0
      %1710 = vmatprep.mubr.bf16.mxu0 0
      %1711 = vmatmul.mubr.bf16.gmra.mrb[0].mxu0 %v1221
      %v1712 = vpop.f32.mrb[0].mxu0
      %v1713 = vadd.f32 0.0, %v1712
      %v1714 = vpop.f32.mrb[0].mxu0
      %v1715 = vpop.f32.mrb[0].mxu0
      %v1716 = vadd.f32 0.0, %v1715
      %v1717 = vpop.f32.mrb[0].mxu0
      %1718 = vmatprep.mubr.bf16.mxu0 0
      %1719 = vmatmul.mubr.bf16.gmra.mrb[0].mxu0 %v1222
      %v1720 = vpop.f32.mrb[0].mxu0
      %v1721 = vadd.f32 0.0, %v1720
      %v1722 = vpop.f32.mrb[0].mxu0
      %v1723 = vpop.f32.mrb[0].mxu0
      %v1724 = vadd.f32 0.0, %v1723
      %v1725 = vpop.f32.mrb[0].mxu0
      %1726 = vmatprep.mubr.bf16.mxu0 0
      %1727 = vmatmul.mubr.bf16.gmra.mrb[0].mxu0 %v1401
      %v1728 = vpop.f32.mrb[0].mxu0
      %v1729 = vadd.f32 0.0, %v1728
      %v1730 = vpop.f32.mrb[0].mxu0
      %v1731 = vpop.f32.mrb[0].mxu0
      %v1732 = vadd.f32 0.0, %v1731
      %v1733 = vpop.f32.mrb[0].mxu0
      %1734 = vmatprep.mubr.bf16.mxu0 0
      %1735 = vmatmul.mubr.bf16.gmra.mrb[0].mxu0 %v1580
      %v1736 = vpop.f32.mrb[0].mxu0
      %v1737 = vadd.f32 0.0, %v1736
      %v1738 = vpop.f32.mrb[0].mxu0
      %v1739 = vpop.f32.mrb[0].mxu0
      %v1740 = vadd.f32 0.0, %v1739
      %v1741 = vpop.f32.mrb[0].mxu0
      %1742 = vdwg.mxu0
      %v1743 = vadd.f32 %v1564, %v1681
      %v1744 = vadd.f32 %v1565, %v1684
      %v1745 = vadd.f32 %v1566, %v1689
      %v1746 = vadd.f32 %v1567, %v1692
      %v1747 = vadd.f32 %v1568, %v1697
      %v1748 = vadd.f32 %v1569, %v1700
      %v1749 = vadd.f32 %v1570, %v1705
      %v1750 = vadd.f32 %v1571, %v1708
      %v1751 = vadd.f32 %v1572, %v1713
      %v1752 = vadd.f32 %v1573, %v1716
      %v1753 = vadd.f32 %v1574, %v1721
      %v1754 = vadd.f32 %v1575, %v1724
      %v1755 = vadd.f32 %v1576, %v1729
      %v1756 = vadd.f32 %v1577, %v1732
      %v1757 = vadd.f32 %v1578, %v1737
      %v1758 = vadd.f32 %v1579, %v1740
      %v1759 = vld [vmem:[#allocation2 + $0x9] sm:$0xff]
      %v1760 = vld [vmem:[#allocation2 + $0x11] sm:$0xff]
      %v1761 = vld [vmem:[#allocation2 + $0x29] sm:$0xff]
      %v1762 = vld [vmem:[#allocation2 + $0x31] sm:$0xff]
      %v1763 = vld [vmem:[#allocation2 + $0x49] sm:$0xff]
      %v1764 = vld [vmem:[#allocation2 + $0x51] sm:$0xff]
      %v1765 = vld [vmem:[#allocation2 + $0x69] sm:$0xff]
      %v1766 = vld [vmem:[#allocation2 + $0x71] sm:$0xff]
      %v1767 = vld [vmem:[#allocation2 + $0x89] sm:$0xff]
      %v1768 = vld [vmem:[#allocation2 + $0x91] sm:$0xff]
      %v1769 = vld [vmem:[#allocation2 + $0xa9] sm:$0xff]
      %v1770 = vld [vmem:[#allocation2 + $0xb1] sm:$0xff]
      %v1771 = vld [vmem:[#allocation2 + $0xc9] sm:$0xff]
      %v1772 = vld [vmem:[#allocation2 + $0xd1] sm:$0xff]
      %v1773 = vld [vmem:[#allocation2 + $0xe9] sm:$0xff]
      %v1774 = vld [vmem:[#allocation2 + $0xf1] sm:$0xff]
      %v1775 = vld [vmem:[#allocation2 + $0x109] sm:$0xff]
      %v1776 = vld [vmem:[#allocation2 + $0x111] sm:$0xff]
      %v1777 = vld [vmem:[#allocation2 + $0x129] sm:$0xff]
      %v1778 = vld [vmem:[#allocation2 + $0x131] sm:$0xff]
      %v1779 = vpack.c.bf16 %v1760, %v1759
      %v1780 = vpack.c.bf16 %v1762, %v1761
      %v1781 = vpack.c.bf16 %v1764, %v1763
      %v1782 = vpack.c.bf16 %v1766, %v1765
      %v1783 = vpack.c.bf16 %v1768, %v1767
      %v1784 = vpack.c.bf16 %v1770, %v1769
      %v1785 = vpack.c.bf16 %v1772, %v1771
      %v1786 = vpack.c.bf16 %v1774, %v1773
      %s1787 = scalar_lea.vmem %s3, 128
      %v1788 = vld [vmem:[%s1787] sm:$0xf]
      %v1789 = vld [vmem:[%s1787 + $0x4] sm:$0xf]
      %v1790 = vld [vmem:[%s1787 + $0x8] sm:$0xf]
      %v1791 = vld [vmem:[%s1787 + $0xc] sm:$0xf]
      %v1792 = vld [vmem:[%s1787 + $0x10] sm:$0xf]
      %v1793 = vld [vmem:[%s1787 + $0x14] sm:$0xf]
      %v1794 = vld [vmem:[%s1787 + $0x18] sm:$0xf]
      %v1795 = vld [vmem:[%s1787 + $0x1c] sm:$0xf]
      %v1796 = vld [vmem:[%s1787 + $0x20] sm:$0xf]
      %v1797 = vld [vmem:[%s1787 + $0x24] sm:$0xf]
      %v1798 = vld [vmem:[%s1787 + $0x28] sm:$0xf]
      %v1799 = vld [vmem:[%s1787 + $0x2c] sm:$0xf]
      %v1800 = vld [vmem:[%s1787 + $0x30] sm:$0xf]
      %v1801 = vld [vmem:[%s1787 + $0x34] sm:$0xf]
      %v1802 = vld [vmem:[%s1787 + $0x38] sm:$0xf]
      %v1803 = vld [vmem:[%s1787 + $0x3c] sm:$0xf]
      %v1820 = vunpack.c.l.b16 %v1788
      %v1821 = vunpack.c.l.b16 %v1789
      %v1822 = vunpack.c.l.b16 %v1790
      %v1823 = vunpack.c.l.b16 %v1791
      %v1824 = vunpack.c.l.b16 %v1792
      %v1825 = vunpack.c.l.b16 %v1793
      %v1826 = vunpack.c.l.b16 %v1794
      %v1827 = vunpack.c.l.b16 %v1795
      %v1828 = vunpack.c.l.b16 %v1796
      %v1829 = vunpack.c.l.b16 %v1797
      %v1830 = vunpack.c.l.b16 %v1798
      %v1831 = vunpack.c.l.b16 %v1799
      %v1832 = vunpack.c.l.b16 %v1800
      %v1833 = vunpack.c.l.b16 %v1801
      %v1834 = vunpack.c.l.b16 %v1802
      %v1835 = vunpack.c.l.b16 %v1803
      %v1836 = vpack.c.b16 %v1821, %v1820
      %v1837 = vpack.c.b16 %v1823, %v1822
      %v1838 = vpack.c.b16 %v1825, %v1824
      %v1839 = vpack.c.b16 %v1827, %v1826
      %v1840 = vpack.c.b16 %v1829, %v1828
      %v1841 = vpack.c.b16 %v1831, %v1830
      %v1842 = vpack.c.b16 %v1833, %v1832
      %v1843 = vpack.c.b16 %v1835, %v1834
      %1852 = vmatprep.subr.bf16.mxu0 0
      %1853 = vmatpush1.bf16.msra.mxu0 %v1836
      %1854 = vmatprep.subr.bf16.mxu0 0
      %1855 = vmatpush1.bf16.msra.mxu0 %v1837
      %1856 = vmatprep.subr.bf16.mxu0 0
      %1857 = vmatpush1.bf16.msra.mxu0 %v1838
      %1858 = vmatprep.subr.bf16.mxu0 0
      %1859 = vmatpush1.bf16.msra.mxu0 %v1839
      %1860 = vmatprep.subr.bf16.mxu0 0
      %1861 = vmatpush1.bf16.msra.mxu0 %v1840
      %1862 = vmatprep.subr.bf16.mxu0 0
      %1863 = vmatpush1.bf16.msra.mxu0 %v1841
      %1864 = vmatprep.subr.bf16.mxu0 0
      %1865 = vmatpush1.bf16.msra.mxu0 %v1842
      %1866 = vmatprep.subr.bf16.mxu0 0
      %1867 = vmatpush1.bf16.msra.mxu0 %v1843
      %1868 = vmatprep.subr.bf16.mxu0 0
      %1869 = vmatpush1.bf16.msra.mxu0 0
      %1870 = vmatprep.subr.bf16.mxu0 0
      %1871 = vmatpush1.bf16.msra.mxu0 0
      %1872 = vmatprep.subr.bf16.mxu0 0
      %1873 = vmatpush1.bf16.msra.mxu0 0
      %1874 = vmatprep.subr.bf16.mxu0 0
      %1875 = vmatpush1.bf16.msra.mxu0 0
      %1876 = vmatprep.subr.bf16.mxu0 0
      %1877 = vmatpush1.bf16.msra.mxu0 0
      %1878 = vmatprep.subr.bf16.mxu0 0
      %1879 = vmatpush1.bf16.msra.mxu0 0
      %1880 = vmatprep.subr.bf16.mxu0 0
      %1881 = vmatpush1.bf16.msra.mxu0 0
      %1882 = vmatprep.subr.bf16.mxu0 0
      %1883 = vmatpush1.bf16.msra.mxu0 0
      %1884 = vmatprep.mubr.bf16.mxu0 0
      %1885 = vmatmul.mubr.bf16.gmra.mrb[0].mxu0 %v1779
      %v1886 = vpop.f32.mrb[0].mxu0
      %v1887 = vadd.f32 0.0, %v1886
      %v1888 = vpop.f32.mrb[0].mxu0
      %v1889 = vpop.f32.mrb[0].mxu0
      %v1890 = vadd.f32 0.0, %v1889
      %v1891 = vpop.f32.mrb[0].mxu0
      %1892 = vmatprep.mubr.bf16.mxu0 0
      %1893 = vmatmul.mubr.bf16.gmra.mrb[0].mxu0 %v1780
      %v1894 = vpop.f32.mrb[0].mxu0
      %v1895 = vadd.f32 0.0, %v1894
      %v1896 = vpop.f32.mrb[0].mxu0
      %v1897 = vpop.f32.mrb[0].mxu0
      %v1898 = vadd.f32 0.0, %v1897
      %v1899 = vpop.f32.mrb[0].mxu0
      %1900 = vmatprep.mubr.bf16.mxu0 0
      %1901 = vmatmul.mubr.bf16.gmra.mrb[0].mxu0 %v1781
      %v1902 = vpop.f32.mrb[0].mxu0
      %v1903 = vadd.f32 0.0, %v1902
      %v1904 = vpop.f32.mrb[0].mxu0
      %v1905 = vpop.f32.mrb[0].mxu0
      %v1906 = vadd.f32 0.0, %v1905
      %v1907 = vpop.f32.mrb[0].mxu0
      %1908 = vmatprep.mubr.bf16.mxu0 0
      %1909 = vmatmul.mubr.bf16.gmra.mrb[0].mxu0 %v1782
      %v1910 = vpop.f32.mrb[0].mxu0
      %v1911 = vadd.f32 0.0, %v1910
      %v1912 = vpop.f32.mrb[0].mxu0
      %v1913 = vpop.f32.mrb[0].mxu0
      %v1914 = vadd.f32 0.0, %v1913
      %v1915 = vpop.f32.mrb[0].mxu0
      %1916 = vmatprep.mubr.bf16.mxu0 0
      %1917 = vmatmul.mubr.bf16.gmra.mrb[0].mxu0 %v1783
      %v1918 = vpop.f32.mrb[0].mxu0
      %v1919 = vadd.f32 0.0, %v1918
      %v1920 = vpop.f32.mrb[0].mxu0
      %v1921 = vpop.f32.mrb[0].mxu0
      %v1922 = vadd.f32 0.0, %v1921
      %v1923 = vpop.f32.mrb[0].mxu0
      %1924 = vmatprep.mubr.bf16.mxu0 0
      %1925 = vmatmul.mubr.bf16.gmra.mrb[0].mxu0 %v1784
      %v1926 = vpop.f32.mrb[0].mxu0
      %v1927 = vadd.f32 0.0, %v1926
      %v1928 = vpop.f32.mrb[0].mxu0
      %v1929 = vpop.f32.mrb[0].mxu0
      %v1930 = vadd.f32 0.0, %v1929
      %v1931 = vpop.f32.mrb[0].mxu0
      %1932 = vmatprep.mubr.bf16.mxu0 0
      %1933 = vmatmul.mubr.bf16.gmra.mrb[0].mxu0 %v1785
      %v1934 = vpop.f32.mrb[0].mxu0
      %v1935 = vadd.f32 0.0, %v1934
      %v1936 = vpop.f32.mrb[0].mxu0
      %v1937 = vpop.f32.mrb[0].mxu0
      %v1938 = vadd.f32 0.0, %v1937
      %v1939 = vpop.f32.mrb[0].mxu0
      %1940 = vmatprep.mubr.bf16.mxu0 0
      %1941 = vmatmul.mubr.bf16.gmra.mrb[0].mxu0 %v1786
      %v1942 = vpop.f32.mrb[0].mxu0
      %v1943 = vadd.f32 0.0, %v1942
      %v1944 = vpop.f32.mrb[0].mxu0
      %v1945 = vpop.f32.mrb[0].mxu0
      %v1946 = vadd.f32 0.0, %v1945
      %v1947 = vpop.f32.mrb[0].mxu0
      %1948 = vdwg.mxu0
      %v1949 = vadd.f32 %v1743, %v1887
      %v1950 = vadd.f32 %v1744, %v1890
      %v1951 = vadd.f32 %v1745, %v1895
      %v1952 = vadd.f32 %v1746, %v1898
      %v1953 = vadd.f32 %v1747, %v1903
      %v1954 = vadd.f32 %v1748, %v1906
      %v1955 = vadd.f32 %v1749, %v1911
      %v1956 = vadd.f32 %v1750, %v1914
      %v1957 = vadd.f32 %v1751, %v1919
      %v1958 = vadd.f32 %v1752, %v1922
      %v1959 = vadd.f32 %v1753, %v1927
      %v1960 = vadd.f32 %v1754, %v1930
      %v1961 = vadd.f32 %v1755, %v1935
      %v1962 = vadd.f32 %v1756, %v1938
      %v1963 = vadd.f32 %v1757, %v1943
      %v1964 = vadd.f32 %v1758, %v1946
      %v1965 = vpack.c.bf16 %v1776, %v1775
      %s1966 = scalar_lea.vmem %s3, 320
      %v1967 = vld [vmem:[%s1966] sm:$0xf]
      %v1968 = vld [vmem:[%s1966 + $0x4] sm:$0xf]
      %v1969 = vld [vmem:[%s1966 + $0x8] sm:$0xf]
      %v1970 = vld [vmem:[%s1966 + $0xc] sm:$0xf]
      %v1971 = vld [vmem:[%s1966 + $0x10] sm:$0xf]
      %v1972 = vld [vmem:[%s1966 + $0x14] sm:$0xf]
      %v1973 = vld [vmem:[%s1966 + $0x18] sm:$0xf]
      %v1974 = vld [vmem:[%s1966 + $0x1c] sm:$0xf]
      %v1975 = vld [vmem:[%s1966 + $0x20] sm:$0xf]
      %v1976 = vld [vmem:[%s1966 + $0x24] sm:$0xf]
      %v1977 = vld [vmem:[%s1966 + $0x28] sm:$0xf]
      %v1978 = vld [vmem:[%s1966 + $0x2c] sm:$0xf]
      %v1979 = vld [vmem:[%s1966 + $0x30] sm:$0xf]
      %v1980 = vld [vmem:[%s1966 + $0x34] sm:$0xf]
      %v1981 = vld [vmem:[%s1966 + $0x38] sm:$0xf]
      %v1982 = vld [vmem:[%s1966 + $0x3c] sm:$0xf]
      %v1999 = vunpack.c.l.b16 %v1967
      %v2000 = vunpack.c.l.b16 %v1968
      %v2001 = vunpack.c.l.b16 %v1969
      %v2002 = vunpack.c.l.b16 %v1970
      %v2003 = vunpack.c.l.b16 %v1971
      %v2004 = vunpack.c.l.b16 %v1972
      %v2005 = vunpack.c.l.b16 %v1973
      %v2006 = vunpack.c.l.b16 %v1974
      %v2007 = vunpack.c.l.b16 %v1975
      %v2008 = vunpack.c.l.b16 %v1976
      %v2009 = vunpack.c.l.b16 %v1977
      %v2010 = vunpack.c.l.b16 %v1978
      %v2011 = vunpack.c.l.b16 %v1979
      %v2012 = vunpack.c.l.b16 %v1980
      %v2013 = vunpack.c.l.b16 %v1981
      %v2014 = vunpack.c.l.b16 %v1982
      %v2015 = vpack.c.b16 %v2000, %v1999
      %v2016 = vpack.c.b16 %v2002, %v2001
      %v2017 = vpack.c.b16 %v2004, %v2003
      %v2018 = vpack.c.b16 %v2006, %v2005
      %v2019 = vpack.c.b16 %v2008, %v2007
      %v2020 = vpack.c.b16 %v2010, %v2009
      %v2021 = vpack.c.b16 %v2012, %v2011
      %v2022 = vpack.c.b16 %v2014, %v2013
      %2031 = vmatprep.subr.bf16.mxu0 0
      %2032 = vmatpush1.bf16.msra.mxu0 %v2015
      %2033 = vmatprep.subr.bf16.mxu0 0
      %2034 = vmatpush1.bf16.msra.mxu0 %v2016
      %2035 = vmatprep.subr.bf16.mxu0 0
      %2036 = vmatpush1.bf16.msra.mxu0 %v2017
      %2037 = vmatprep.subr.bf16.mxu0 0
      %2038 = vmatpush1.bf16.msra.mxu0 %v2018
      %2039 = vmatprep.subr.bf16.mxu0 0
      %2040 = vmatpush1.bf16.msra.mxu0 %v2019
      %2041 = vmatprep.subr.bf16.mxu0 0
      %2042 = vmatpush1.bf16.msra.mxu0 %v2020
      %2043 = vmatprep.subr.bf16.mxu0 0
      %2044 = vmatpush1.bf16.msra.mxu0 %v2021
      %2045 = vmatprep.subr.bf16.mxu0 0
      %2046 = vmatpush1.bf16.msra.mxu0 %v2022
      %2047 = vmatprep.subr.bf16.mxu0 0
      %2048 = vmatpush1.bf16.msra.mxu0 0
      %2049 = vmatprep.subr.bf16.mxu0 0
      %2050 = vmatpush1.bf16.msra.mxu0 0
      %2051 = vmatprep.subr.bf16.mxu0 0
      %2052 = vmatpush1.bf16.msra.mxu0 0
      %2053 = vmatprep.subr.bf16.mxu0 0
      %2054 = vmatpush1.bf16.msra.mxu0 0
      %2055 = vmatprep.subr.bf16.mxu0 0
      %2056 = vmatpush1.bf16.msra.mxu0 0
      %2057 = vmatprep.subr.bf16.mxu0 0
      %2058 = vmatpush1.bf16.msra.mxu0 0
      %2059 = vmatprep.subr.bf16.mxu0 0
      %2060 = vmatpush1.bf16.msra.mxu0 0
      %2061 = vmatprep.subr.bf16.mxu0 0
      %2062 = vmatpush1.bf16.msra.mxu0 0
      %2063 = vmatprep.mubr.bf16.mxu0 0
      %2064 = vmatmul.mubr.bf16.gmra.mrb[0].mxu0 %v1780
      %v2065 = vpop.f32.mrb[0].mxu0
      %v2066 = vadd.f32 0.0, %v2065
      %v2067 = vpop.f32.mrb[0].mxu0
      %v2068 = vpop.f32.mrb[0].mxu0
      %v2069 = vadd.f32 0.0, %v2068
      %v2070 = vpop.f32.mrb[0].mxu0
      %2071 = vmatprep.mubr.bf16.mxu0 0
      %2072 = vmatmul.mubr.bf16.gmra.mrb[0].mxu0 %v1781
      %v2073 = vpop.f32.mrb[0].mxu0
      %v2074 = vadd.f32 0.0, %v2073
      %v2075 = vpop.f32.mrb[0].mxu0
      %v2076 = vpop.f32.mrb[0].mxu0
      %v2077 = vadd.f32 0.0, %v2076
      %v2078 = vpop.f32.mrb[0].mxu0
      %2079 = vmatprep.mubr.bf16.mxu0 0
      %2080 = vmatmul.mubr.bf16.gmra.mrb[0].mxu0 %v1782
      %v2081 = vpop.f32.mrb[0].mxu0
      %v2082 = vadd.f32 0.0, %v2081
      %v2083 = vpop.f32.mrb[0].mxu0
      %v2084 = vpop.f32.mrb[0].mxu0
      %v2085 = vadd.f32 0.0, %v2084
      %v2086 = vpop.f32.mrb[0].mxu0
      %2087 = vmatprep.mubr.bf16.mxu0 0
      %2088 = vmatmul.mubr.bf16.gmra.mrb[0].mxu0 %v1783
      %v2089 = vpop.f32.mrb[0].mxu0
      %v2090 = vadd.f32 0.0, %v2089
      %v2091 = vpop.f32.mrb[0].mxu0
      %v2092 = vpop.f32.mrb[0].mxu0
      %v2093 = vadd.f32 0.0, %v2092
      %v2094 = vpop.f32.mrb[0].mxu0
      %2095 = vmatprep.mubr.bf16.mxu0 0
      %2096 = vmatmul.mubr.bf16.gmra.mrb[0].mxu0 %v1784
      %v2097 = vpop.f32.mrb[0].mxu0
      %v2098 = vadd.f32 0.0, %v2097
      %v2099 = vpop.f32.mrb[0].mxu0
      %v2100 = vpop.f32.mrb[0].mxu0
      %v2101 = vadd.f32 0.0, %v2100
      %v2102 = vpop.f32.mrb[0].mxu0
      %2103 = vmatprep.mubr.bf16.mxu0 0
      %2104 = vmatmul.mubr.bf16.gmra.mrb[0].mxu0 %v1785
      %v2105 = vpop.f32.mrb[0].mxu0
      %v2106 = vadd.f32 0.0, %v2105
      %v2107 = vpop.f32.mrb[0].mxu0
      %v2108 = vpop.f32.mrb[0].mxu0
      %v2109 = vadd.f32 0.0, %v2108
      %v2110 = vpop.f32.mrb[0].mxu0
      %2111 = vmatprep.mubr.bf16.mxu0 0
      %2112 = vmatmul.mubr.bf16.gmra.mrb[0].mxu0 %v1786
      %v2113 = vpop.f32.mrb[0].mxu0
      %v2114 = vadd.f32 0.0, %v2113
      %v2115 = vpop.f32.mrb[0].mxu0
      %v2116 = vpop.f32.mrb[0].mxu0
      %v2117 = vadd.f32 0.0, %v2116
      %v2118 = vpop.f32.mrb[0].mxu0
      %2119 = vmatprep.mubr.bf16.mxu0 0
      %2120 = vmatmul.mubr.bf16.gmra.mrb[0].mxu0 %v1965
      %v2121 = vpop.f32.mrb[0].mxu0
      %v2122 = vadd.f32 0.0, %v2121
      %v2123 = vpop.f32.mrb[0].mxu0
      %v2124 = vpop.f32.mrb[0].mxu0
      %v2125 = vadd.f32 0.0, %v2124
      %v2126 = vpop.f32.mrb[0].mxu0
      %2127 = vdwg.mxu0
      %v2128 = vadd.f32 %v1949, %v2066
      %v2129 = vadd.f32 %v1950, %v2069
      %v2130 = vadd.f32 %v1951, %v2074
      %v2131 = vadd.f32 %v1952, %v2077
      %v2132 = vadd.f32 %v1953, %v2082
      %v2133 = vadd.f32 %v1954, %v2085
      %v2134 = vadd.f32 %v1955, %v2090
      %v2135 = vadd.f32 %v1956, %v2093
      %v2136 = vadd.f32 %v1957, %v2098
      %v2137 = vadd.f32 %v1958, %v2101
      %v2138 = vadd.f32 %v1959, %v2106
      %v2139 = vadd.f32 %v1960, %v2109
      %v2140 = vadd.f32 %v1961, %v2114
      %v2141 = vadd.f32 %v1962, %v2117
      %v2142 = vadd.f32 %v1963, %v2122
      %v2143 = vadd.f32 %v1964, %v2125
      %v2144 = vpack.c.bf16 %v1778, %v1777
      %s2145 = scalar_lea.vmem %s3, 512
      %v2146 = vld [vmem:[%s2145] sm:$0xf]
      %v2147 = vld [vmem:[%s2145 + $0x4] sm:$0xf]
      %v2148 = vld [vmem:[%s2145 + $0x8] sm:$0xf]
      %v2149 = vld [vmem:[%s2145 + $0xc] sm:$0xf]
      %v2150 = vld [vmem:[%s2145 + $0x10] sm:$0xf]
      %v2151 = vld [vmem:[%s2145 + $0x14] sm:$0xf]
      %v2152 = vld [vmem:[%s2145 + $0x18] sm:$0xf]
      %v2153 = vld [vmem:[%s2145 + $0x1c] sm:$0xf]
      %v2154 = vld [vmem:[%s2145 + $0x20] sm:$0xf]
      %v2155 = vld [vmem:[%s2145 + $0x24] sm:$0xf]
      %v2156 = vld [vmem:[%s2145 + $0x28] sm:$0xf]
      %v2157 = vld [vmem:[%s2145 + $0x2c] sm:$0xf]
      %v2158 = vld [vmem:[%s2145 + $0x30] sm:$0xf]
      %v2159 = vld [vmem:[%s2145 + $0x34] sm:$0xf]
      %v2160 = vld [vmem:[%s2145 + $0x38] sm:$0xf]
      %v2161 = vld [vmem:[%s2145 + $0x3c] sm:$0xf]
      %v2178 = vunpack.c.l.b16 %v2146
      %v2179 = vunpack.c.l.b16 %v2147
      %v2180 = vunpack.c.l.b16 %v2148
      %v2181 = vunpack.c.l.b16 %v2149
      %v2182 = vunpack.c.l.b16 %v2150
      %v2183 = vunpack.c.l.b16 %v2151
      %v2184 = vunpack.c.l.b16 %v2152
      %v2185 = vunpack.c.l.b16 %v2153
      %v2186 = vunpack.c.l.b16 %v2154
      %v2187 = vunpack.c.l.b16 %v2155
      %v2188 = vunpack.c.l.b16 %v2156
      %v2189 = vunpack.c.l.b16 %v2157
      %v2190 = vunpack.c.l.b16 %v2158
      %v2191 = vunpack.c.l.b16 %v2159
      %v2192 = vunpack.c.l.b16 %v2160
      %v2193 = vunpack.c.l.b16 %v2161
      %v2194 = vpack.c.b16 %v2179, %v2178
      %v2195 = vpack.c.b16 %v2181, %v2180
      %v2196 = vpack.c.b16 %v2183, %v2182
      %v2197 = vpack.c.b16 %v2185, %v2184
      %v2198 = vpack.c.b16 %v2187, %v2186
      %v2199 = vpack.c.b16 %v2189, %v2188
      %v2200 = vpack.c.b16 %v2191, %v2190
      %v2201 = vpack.c.b16 %v2193, %v2192
      %2210 = vmatprep.subr.bf16.mxu0 0
      %2211 = vmatpush1.bf16.msra.mxu0 %v2194
      %2212 = vmatprep.subr.bf16.mxu0 0
      %2213 = vmatpush1.bf16.msra.mxu0 %v2195
      %2214 = vmatprep.subr.bf16.mxu0 0
      %2215 = vmatpush1.bf16.msra.mxu0 %v2196
      %2216 = vmatprep.subr.bf16.mxu0 0
      %2217 = vmatpush1.bf16.msra.mxu0 %v2197
      %2218 = vmatprep.subr.bf16.mxu0 0
      %2219 = vmatpush1.bf16.msra.mxu0 %v2198
      %2220 = vmatprep.subr.bf16.mxu0 0
      %2221 = vmatpush1.bf16.msra.mxu0 %v2199
      %2222 = vmatprep.subr.bf16.mxu0 0
      %2223 = vmatpush1.bf16.msra.mxu0 %v2200
      %2224 = vmatprep.subr.bf16.mxu0 0
      %2225 = vmatpush1.bf16.msra.mxu0 %v2201
      %2226 = vmatprep.subr.bf16.mxu0 0
      %2227 = vmatpush1.bf16.msra.mxu0 0
      %2228 = vmatprep.subr.bf16.mxu0 0
      %2229 = vmatpush1.bf16.msra.mxu0 0
      %2230 = vmatprep.subr.bf16.mxu0 0
      %2231 = vmatpush1.bf16.msra.mxu0 0
      %2232 = vmatprep.subr.bf16.mxu0 0
      %2233 = vmatpush1.bf16.msra.mxu0 0
      %2234 = vmatprep.subr.bf16.mxu0 0
      %2235 = vmatpush1.bf16.msra.mxu0 0
      %2236 = vmatprep.subr.bf16.mxu0 0
      %2237 = vmatpush1.bf16.msra.mxu0 0
      %2238 = vmatprep.subr.bf16.mxu0 0
      %2239 = vmatpush1.bf16.msra.mxu0 0
      %2240 = vmatprep.subr.bf16.mxu0 0
      %2241 = vmatpush1.bf16.msra.mxu0 0
      %2242 = vmatprep.mubr.bf16.mxu0 0
      %2243 = vmatmul.mubr.bf16.gmra.mrb[0].mxu0 %v1781
      %v2244 = vpop.f32.mrb[0].mxu0
      %v2245 = vadd.f32 0.0, %v2244
      %v2246 = vpop.f32.mrb[0].mxu0
      %v2247 = vpop.f32.mrb[0].mxu0
      %v2248 = vadd.f32 0.0, %v2247
      %v2249 = vpop.f32.mrb[0].mxu0
      %2250 = vmatprep.mubr.bf16.mxu0 0
      %2251 = vmatmul.mubr.bf16.gmra.mrb[0].mxu0 %v1782
      %v2252 = vpop.f32.mrb[0].mxu0
      %v2253 = vadd.f32 0.0, %v2252
      %v2254 = vpop.f32.mrb[0].mxu0
      %v2255 = vpop.f32.mrb[0].mxu0
      %v2256 = vadd.f32 0.0, %v2255
      %v2257 = vpop.f32.mrb[0].mxu0
      %2258 = vmatprep.mubr.bf16.mxu0 0
      %2259 = vmatmul.mubr.bf16.gmra.mrb[0].mxu0 %v1783
      %v2260 = vpop.f32.mrb[0].mxu0
      %v2261 = vadd.f32 0.0, %v2260
      %v2262 = vpop.f32.mrb[0].mxu0
      %v2263 = vpop.f32.mrb[0].mxu0
      %v2264 = vadd.f32 0.0, %v2263
      %v2265 = vpop.f32.mrb[0].mxu0
      %2266 = vmatprep.mubr.bf16.mxu0 0
      %2267 = vmatmul.mubr.bf16.gmra.mrb[0].mxu0 %v1784
      %v2268 = vpop.f32.mrb[0].mxu0
      %v2269 = vadd.f32 0.0, %v2268
      %v2270 = vpop.f32.mrb[0].mxu0
      %v2271 = vpop.f32.mrb[0].mxu0
      %v2272 = vadd.f32 0.0, %v2271
      %v2273 = vpop.f32.mrb[0].mxu0
      %2274 = vmatprep.mubr.bf16.mxu0 0
      %2275 = vmatmul.mubr.bf16.gmra.mrb[0].mxu0 %v1785
      %v2276 = vpop.f32.mrb[0].mxu0
      %v2277 = vadd.f32 0.0, %v2276
      %v2278 = vpop.f32.mrb[0].mxu0
      %v2279 = vpop.f32.mrb[0].mxu0
      %v2280 = vadd.f32 0.0, %v2279
      %v2281 = vpop.f32.mrb[0].mxu0
      %2282 = vmatprep.mubr.bf16.mxu0 0
      %2283 = vmatmul.mubr.bf16.gmra.mrb[0].mxu0 %v1786
      %v2284 = vpop.f32.mrb[0].mxu0
      %v2285 = vadd.f32 0.0, %v2284
      %v2286 = vpop.f32.mrb[0].mxu0
      %v2287 = vpop.f32.mrb[0].mxu0
      %v2288 = vadd.f32 0.0, %v2287
      %v2289 = vpop.f32.mrb[0].mxu0
      %2290 = vmatprep.mubr.bf16.mxu0 0
      %2291 = vmatmul.mubr.bf16.gmra.mrb[0].mxu0 %v1965
      %v2292 = vpop.f32.mrb[0].mxu0
      %v2293 = vadd.f32 0.0, %v2292
      %v2294 = vpop.f32.mrb[0].mxu0
      %v2295 = vpop.f32.mrb[0].mxu0
      %v2296 = vadd.f32 0.0, %v2295
      %v2297 = vpop.f32.mrb[0].mxu0
      %2298 = vmatprep.mubr.bf16.mxu0 0
      %2299 = vmatmul.mubr.bf16.gmra.mrb[0].mxu0 %v2144
      %v2300 = vpop.f32.mrb[0].mxu0
      %v2301 = vadd.f32 0.0, %v2300
      %v2302 = vpop.f32.mrb[0].mxu0
      %v2303 = vpop.f32.mrb[0].mxu0
      %v2304 = vadd.f32 0.0, %v2303
      %v2305 = vpop.f32.mrb[0].mxu0
      %2306 = vdwg.mxu0
      %v2307 = vadd.f32 %v2128, %v2245
      %v2308 = vadd.f32 %v2129, %v2248
      %v2309 = vadd.f32 %v2130, %v2253
      %v2310 = vadd.f32 %v2131, %v2256
      %v2311 = vadd.f32 %v2132, %v2261
      %v2312 = vadd.f32 %v2133, %v2264
      %v2313 = vadd.f32 %v2134, %v2269
      %v2314 = vadd.f32 %v2135, %v2272
      %v2315 = vadd.f32 %v2136, %v2277
      %v2316 = vadd.f32 %v2137, %v2280
      %v2317 = vadd.f32 %v2138, %v2285
      %v2318 = vadd.f32 %v2139, %v2288
      %v2319 = vadd.f32 %v2140, %v2293
      %v2320 = vadd.f32 %v2141, %v2296
      %v2321 = vadd.f32 %v2142, %v2301
      %v2322 = vadd.f32 %v2143, %v2304
      %v2323 = vpack.c.bf16 %v2308, %v2307
      %v2324 = vpack.c.bf16 %v2310, %v2309
      %v2325 = vpack.c.bf16 %v2312, %v2311
      %v2326 = vpack.c.bf16 %v2314, %v2313
      %v2327 = vpack.c.bf16 %v2316, %v2315
      %v2328 = vpack.c.bf16 %v2318, %v2317
      %v2329 = vpack.c.bf16 %v2320, %v2319
      %v2330 = vpack.c.bf16 %v2322, %v2321
      %v2339 = vunpack.c.l.b16 %v2323
      %v2340 = vunpack.c.h.b16 %v2323
      %v2341 = vunpack.c.l.b16 %v2324
      %v2342 = vunpack.c.h.b16 %v2324
      %v2343 = vunpack.c.l.b16 %v2325
      %v2344 = vunpack.c.h.b16 %v2325
      %v2345 = vunpack.c.l.b16 %v2326
      %v2346 = vunpack.c.h.b16 %v2326
      %v2347 = vunpack.c.l.b16 %v2327
      %v2348 = vunpack.c.h.b16 %v2327
      %v2349 = vunpack.c.l.b16 %v2328
      %v2350 = vunpack.c.h.b16 %v2328
      %v2351 = vunpack.c.l.b16 %v2329
      %v2352 = vunpack.c.h.b16 %v2329
      %v2353 = vunpack.c.l.b16 %v2330
      %v2354 = vunpack.c.h.b16 %v2330
      %v2355 = vpack.c.b16 %v2339, %v2339
      %v2356 = vpack.c.b16 %v2340, %v2340
      %v2357 = vpack.c.b16 %v2341, %v2341
      %v2358 = vpack.c.b16 %v2342, %v2342
      %v2359 = vpack.c.b16 %v2343, %v2343
      %v2360 = vpack.c.b16 %v2344, %v2344
      %v2361 = vpack.c.b16 %v2345, %v2345
      %v2362 = vpack.c.b16 %v2346, %v2346
      %v2363 = vpack.c.b16 %v2347, %v2347
      %v2364 = vpack.c.b16 %v2348, %v2348
      %v2365 = vpack.c.b16 %v2349, %v2349
      %v2366 = vpack.c.b16 %v2350, %v2350
      %v2367 = vpack.c.b16 %v2351, %v2351
      %v2368 = vpack.c.b16 %v2352, %v2352
      %v2369 = vpack.c.b16 %v2353, %v2353
      %v2370 = vpack.c.b16 %v2354, %v2354
      %2387 = vst [vmem:[%s439] sm:$0xf] %v2355
      %2388 = vst [vmem:[%s439 + $0x4] sm:$0xf] %v2356
      %2389 = vst [vmem:[%s439 + $0x8] sm:$0xf] %v2357
      %2390 = vst [vmem:[%s439 + $0xc] sm:$0xf] %v2358
      %2391 = vst [vmem:[%s439 + $0x10] sm:$0xf] %v2359
      %2392 = vst [vmem:[%s439 + $0x14] sm:$0xf] %v2360
      %2393 = vst [vmem:[%s439 + $0x18] sm:$0xf] %v2361
      %2394 = vst [vmem:[%s439 + $0x1c] sm:$0xf] %v2362
      %2395 = vst [vmem:[%s439 + $0x20] sm:$0xf] %v2363
      %2396 = vst [vmem:[%s439 + $0x24] sm:$0xf] %v2364
      %2397 = vst [vmem:[%s439 + $0x28] sm:$0xf] %v2365
      %2398 = vst [vmem:[%s439 + $0x2c] sm:$0xf] %v2366
      %2399 = vst [vmem:[%s439 + $0x30] sm:$0xf] %v2367
      %2400 = vst [vmem:[%s439 + $0x34] sm:$0xf] %v2368
      %2401 = vst [vmem:[%s439 + $0x38] sm:$0xf] %v2369
      %2402 = vst [vmem:[%s439 + $0x3c] sm:$0xf] %v2370
      %v2403 = vadd.f32 %v2307, %v2308
      %v2404 = vadd.f32 %v2403, %v2309
      %v2405 = vadd.f32 %v2404, %v2310
      %v2406 = vadd.f32 %v2405, %v2311
      %v2407 = vadd.f32 %v2406, %v2312
      %v2408 = vadd.f32 %v2407, %v2313
      %v2409 = vadd.f32 %v2408, %v2314
      %v2410 = vadd.f32 %v2409, %v2315
      %v2411 = vadd.f32 %v2410, %v2316
      %v2412 = vadd.f32 %v2411, %v2317
      %v2413 = vadd.f32 %v2412, %v2318
      %v2414 = vadd.f32 %v2413, %v2319
      %v2415 = vadd.f32 %v2414, %v2320
      %v2416 = vadd.f32 %v2415, %v2321
      %v2417 = vadd.f32 %v2416, %v2322
      %v2418 = vrot.slane %v2417, 4
      %v2419 = vadd.f32 %v2417, %v2418
      %v2420 = vrot.slane %v2419, 2
      %v2421 = vadd.f32 %v2419, %v2420
      %v2422 = vrot.slane %v2421, 1
      %v2423 = vadd.f32 %v2421, %v2422
      %2424 = vst [vmem:[%s447] sm:$0x1] %v2423
      %v2425 = vmul.f32 %v2307, %v2307
      %v2426 = vmul.f32 %v2308, %v2308
      %v2427 = vmul.f32 %v2309, %v2309
      %v2428 = vmul.f32 %v2310, %v2310
      %v2429 = vmul.f32 %v2311, %v2311
      %v2430 = vmul.f32 %v2312, %v2312
      %v2431 = vmul.f32 %v2313, %v2313
      %v2432 = vmul.f32 %v2314, %v2314
      %v2433 = vmul.f32 %v2315, %v2315
      %v2434 = vmul.f32 %v2316, %v2316
      %v2435 = vmul.f32 %v2317, %v2317
      %v2436 = vmul.f32 %v2318, %v2318
      %v2437 = vmul.f32 %v2319, %v2319
      %v2438 = vmul.f32 %v2320, %v2320
      %v2439 = vmul.f32 %v2321, %v2321
      %v2440 = vmul.f32 %v2322, %v2322
      %v2441 = vadd.f32 %v2425, %v2426
      %v2442 = vadd.f32 %v2441, %v2427
      %v2443 = vadd.f32 %v2442, %v2428
      %v2444 = vadd.f32 %v2443, %v2429
      %v2445 = vadd.f32 %v2444, %v2430
      %v2446 = vadd.f32 %v2445, %v2431
      %v2447 = vadd.f32 %v2446, %v2432
      %v2448 = vadd.f32 %v2447, %v2433
      %v2449 = vadd.f32 %v2448, %v2434
      %v2450 = vadd.f32 %v2449, %v2435
      %v2451 = vadd.f32 %v2450, %v2436
      %v2452 = vadd.f32 %v2451, %v2437
      %v2453 = vadd.f32 %v2452, %v2438
      %v2454 = vadd.f32 %v2453, %v2439
      %v2455 = vadd.f32 %v2454, %v2440
      %v2456 = vrot.slane %v2455, 4
      %v2457 = vadd.f32 %v2455, %v2456
      %v2458 = vrot.slane %v2457, 2
      %v2459 = vadd.f32 %v2457, %v2458
      %v2460 = vrot.slane %v2459, 1
      %v2461 = vadd.f32 %v2459, %v2460
      %2462 = vst [vmem:[%s454] sm:$0x1] %v2461
      %s2463 = smul.u32 8, %s25
      %p2464 = scmp.lt.s32.totalorder %s24, 1
      %s2465 = scalar_select %p2464, %s24, 1
      %p2466 = scmp.lt.s32.totalorder %s2463, 15
      %s2467 = scalar_select %p2466, %s2463, 15
      %s2468 = smul.addr %s2467, 2
      %s2469 = smul.addr %s2465, 32
      %s2470 = sadd.s32 %s2468, %s2469
      %s2471 = smul.addr %s2470, 4
      %s2472 = scalar_lea.vmem %s6, %s2471
      %p2473 = scmp.lt.s32.totalorder %s24, 1
      %s2474 = scalar_select %p2473, %s24, 1
      %p2475 = scmp.lt.s32.totalorder %s25, 1
      %s2476 = scalar_select %p2475, %s25, 1
      %s2477 = smul.addr %s2474, 2
      %s2478 = sadd.s32 %s2476, %s2477
      %s2479 = scalar_lea.vmem %s7, %s2478
      %p2480 = scmp.lt.s32.totalorder %s24, 1
      %s2481 = scalar_select %p2480, %s24, 1
      %p2482 = scmp.lt.s32.totalorder %s25, 1
      %s2483 = scalar_select %p2482, %s25, 1
      %s2484 = smul.addr %s2481, 2
      %s2485 = sadd.s32 %s2483, %s2484
      %s2486 = scalar_lea.vmem %s8, %s2485
      // Predicated region
      $region45: #{double_conv_forward.4} parent=43 // pred_check
        %p2487 = pneg %p199
      $region46: #{double_conv_forward.4} parent=43 // pred_check_branch
        %2489 = sbr.rel (%p2487) target = $region48
      $region47: #{double_conv_forward.4} parent=43 // pred_region
        %s2490 = smul.u32 8, %s25
      $region48: #{double_conv_forward.4} parent=43 // pred_fallthru
        _
      // Predicated region
      $region49: #{double_conv_forward.4} parent=43 // pred_check
        %p2491 = pneg %p227
      $region50: #{double_conv_forward.4} parent=43 // pred_check_branch
        %2493 = sbr.rel (%p2491) target = $region52
      $region51: #{double_conv_forward.4} parent=43 // pred_region
        _
      $region52: #{double_conv_forward.4} parent=43 // pred_fallthru
        _
      // Predicated region
      $region53: #{double_conv_forward.4} parent=43 // pred_check
        %p2494 = pneg %p255
      $region54: #{double_conv_forward.4} parent=43 // pred_check_branch
        %2496 = sbr.rel (%p2494) target = $region56
      $region55: #{double_conv_forward.4} parent=43 // pred_region
        _
      $region56: #{double_conv_forward.4} parent=43 // pred_fallthru
        _
    $region44: #{double_conv_forward.4} parent=5 // pred_fallthru
      _
    %p2497 = scmp.le.s32.totalorder 2, %s15
    // Predicated region
    $region57: #{double_conv_forward.4} parent=5 // pred_check
      %p2498 = pneg %p2497
    $region58: #{double_conv_forward.4} parent=5 // pred_check_branch
      %2500 = sbr.rel (%p2498) target = $region60
    $region59: #{double_conv_forward.4} parent=5 // pred_region
      %s2501 = ssub.s32 %s15, 2
      // Predicated region
      $region61: #{double_conv_forward.4} parent=59 // pred_check
        %p2502 = pneg %p205
      $region62: #{double_conv_forward.4} parent=59 // pred_check_branch
        %2504 = sbr.rel (%p2502) target = $region64
      $region63: #{double_conv_forward.4} parent=59 // pred_region
        %s2505 = smul.u32 8, %s27
        %p2506 = scmp.lt.s32.totalorder %s26, 1
        %s2507 = scalar_select %p2506, %s26, 1
        %p2508 = scmp.lt.s32.totalorder %s2505, 15
        %s2509 = scalar_select %p2508, %s2505, 15
        %s2510 = smul.addr %s2509, 2
        %s2511 = smul.addr %s2507, 32
        %s2512 = sadd.s32 %s2510, %s2511
        %s2513 = smul.addr %s2512, 4
        %s2514 = scalar_lea.vmem %s6, %s2513
      $region64: #{double_conv_forward.4} parent=59 // pred_fallthru
        _
      // Predicated region
      $region65: #{double_conv_forward.4} parent=59 // pred_check
        %p2515 = pneg %p233
      $region66: #{double_conv_forward.4} parent=59 // pred_check_branch
        %2517 = sbr.rel (%p2515) target = $region68
      $region67: #{double_conv_forward.4} parent=59 // pred_region
        %p2518 = scmp.lt.s32.totalorder %s26, 1
        %s2519 = scalar_select %p2518, %s26, 1
        %p2520 = scmp.lt.s32.totalorder %s27, 1
        %s2521 = scalar_select %p2520, %s27, 1
        %s2522 = smul.addr %s2519, 2
        %s2523 = sadd.s32 %s2521, %s2522
        %s2524 = scalar_lea.vmem %s7, %s2523
      $region68: #{double_conv_forward.4} parent=59 // pred_fallthru
        _
      // Predicated region
      $region69: #{double_conv_forward.4} parent=59 // pred_check
        %p2525 = pneg %p261
      $region70: #{double_conv_forward.4} parent=59 // pred_check_branch
        %2527 = sbr.rel (%p2525) target = $region72
      $region71: #{double_conv_forward.4} parent=59 // pred_region
        %p2528 = scmp.lt.s32.totalorder %s26, 1
        %s2529 = scalar_select %p2528, %s26, 1
        %p2530 = scmp.lt.s32.totalorder %s27, 1
        %s2531 = scalar_select %p2530, %s27, 1
        %s2532 = smul.addr %s2529, 2
        %s2533 = sadd.s32 %s2531, %s2532
        %s2534 = scalar_lea.vmem %s8, %s2533
      $region72: #{double_conv_forward.4} parent=59 // pred_fallthru
        _
    $region60: #{double_conv_forward.4} parent=5 // pred_fallthru
      _
  $region6: #{double_conv_forward.4} parent=0 // loop_footer
    %s19 = sadd.s32 1, %s15
  $region7: #{double_conv_forward.4} parent=0 // loop_footer_branch
    %14 = sbr.rel target = $region3
  $region8: #{double_conv_forward.4} parent=0 // loop_exit
    _

</llo_original>
